<compile_context>
chip_gen: v7x
topology: tpu7x:2x2x1
jax: 0.10.0
libtpu: 0.0.40
codegen_flags: <defaults>
</compile_context>

<pallas_src>
from functools import partial

import jax
import jax.numpy as jnp
from jax import lax
from jax.experimental import pallas as pl
from jax.experimental.pallas import tpu as pltpu


def _vmem_spec():
    return pl.BlockSpec(memory_space=pltpu.MemorySpace.VMEM)


def _round_up(x, m):
    return ((x + m - 1) // m) * m


# ---------------------------------------------------------------------------
# Fused GRU step (PyTorch GRU / GRUCell semantics, gate order r, z, n).
# wih / whh : (H, 3H) bf16  (gate blocks contiguous along the lane axis)
# bih / bhh : (1, 3H) f32
# x_bf      : (N, H) bf16   h : (N, H) f32
# ---------------------------------------------------------------------------
def _gru_step(x_bf, h, wih, whh, bih, bhh):
    H = h.shape[-1]
    gx = jnp.dot(x_bf, wih, preferred_element_type=jnp.float32) + bih
    gh = jnp.dot(h.astype(jnp.bfloat16), whh,
                 preferred_element_type=jnp.float32) + bhh
    r = jax.nn.sigmoid(gx[:, :H] + gh[:, :H])
    z = jax.nn.sigmoid(gx[:, H:2 * H] + gh[:, H:2 * H])
    n = jnp.tanh(gx[:, 2 * H:] + r * gh[:, 2 * H:])
    return (1.0 - z) * n + z * h


# ---------------------------------------------------------------------------
# Kernel 1: GRU over a sequence, output = hidden state at (real_length - 1).
# x_ref: (S, TILE_N, H) bf16 time-major; idx_ref: (TILE_N, 1) int32.
# Single (TILE_N, H) carry: h is frozen once t passes idx (freeze pattern).
# ---------------------------------------------------------------------------
def gru_encode_kernel(x_ref, idx_ref, wih_ref, whh_ref, bih_ref, bhh_ref,
                      out_ref, *, unroll):
    S, N, H = x_ref.shape
    wih = wih_ref[...]
    whh = whh_ref[...]
    bih = bih_ref[...]
    bhh = bhh_ref[...]
    idx = idx_ref[...]  # (N, 1) int32

    def body(t, h):
        x_t = x_ref[t]                                     # (N, H) bf16
        h_new = _gru_step(x_t, h, wih, whh, bih, bhh)
        # take h_new while t <= idx, then hold (== hidden at step idx).
        return jnp.where(t <= idx, h_new, h)

    h = lax.fori_loop(0, S, body, jnp.zeros((N, H), jnp.float32),
                      unroll=unroll)
    out_ref[...] = h


def gru_encode(ids, mask, embed_bf16, gru_params, *, tile_n=128):
    """ids/mask: (N, S) int32.  Returns (N, H) f32 encoded rows."""
    wih, whh, bih, bhh = gru_params
    N, S = ids.shape
    H = embed_bf16.shape[1]

    # PyTorch: real_length = count of zeros in mask; o[real_length - 1];
    # real_length == 0 wraps to the last step.
    lengths = jnp.sum((mask == 0).astype(jnp.int32), axis=-1)
    idx = ((lengths - 1) % S).astype(jnp.int32)

    tile_n = min(tile_n, _round_up(N, 8))
    n_pad = _round_up(N, tile_n)
    pad = n_pad - N
    ids_p = jnp.pad(ids.astype(jnp.int32), ((0, pad), (0, 0)))
    idx_p = jnp.pad(idx, (0, pad)).reshape(n_pad, 1)

    # Transpose the *int* ids (cheap) and gather a time-major bf16 block —
    # avoids an HBM-resident f32 transpose of the embeddings.
    x_tm = embed_bf16[ids_p.T]                             # (S, n_pad, H) bf16

    unroll = True if S <= 16 else 8
    grid = (n_pad // tile_n,)
    out = pl.pallas_call(
        partial(gru_encode_kernel, unroll=unroll),
        out_shape=jax.ShapeDtypeStruct((n_pad, H), jnp.float32),
        grid=grid,
        in_specs=[
            pl.BlockSpec((S, tile_n, H), lambda i: (0, i, 0)),   # pipelined rows
            pl.BlockSpec((tile_n, 1), lambda i: (i, 0)),
            pl.BlockSpec(wih.shape, lambda i: (0, 0)),           # weights resident
            pl.BlockSpec(whh.shape, lambda i: (0, 0)),
            pl.BlockSpec(bih.shape, lambda i: (0, 0)),
            pl.BlockSpec(bhh.shape, lambda i: (0, 0)),
        ],
        out_specs=pl.BlockSpec((tile_n, H), lambda i: (i, 0)),
        compiler_params=pltpu.CompilerParams(
            dimension_semantics=("parallel",)),                  # megacore on v7x
    )(x_tm, idx_p, wih, whh, bih, bhh)
    return out[:N]


# ---------------------------------------------------------------------------
# Kernel 2: episodic memory + fused output layer.
# ctx_ref: (T_C, B, H) f32; q/ac/ai: (B, H) f32 (B padded to a sublane multiple)
# gate: gw_td (5H,H) bf16, gw_q (H,H) bf16, gw_m (H,H) bf16, gb1 (1,H) f32,
#       gw2 (1,H) f32 (VPU row), gb2 (1,1) f32
# att/mem cells: fused GRU layout as above.
# output: ow1 (3H,H) bf16, ob1 (1,H) f32, ow2 (H,2) bf16, ob2 (1,2) f32
# ---------------------------------------------------------------------------
def episodic_output_kernel(ctx_ref, q_ref, ac_ref, ai_ref,
                           gw_td_ref, gw_q_ref, gw_m_ref, gb1_ref, gw2_ref,
                           gb2_ref,
                           awih_ref, awhh_ref, abih_ref, abhh_ref,
                           mwih_ref, mwhh_ref, mbih_ref, mbhh_ref,
                           ow1_ref, ob1_ref, ow2_ref, ob2_ref,
                           out_ref, *, num_episode):
    T_C, B, H = ctx_ref.shape
    q = q_ref[...]                                        # (B, H) f32
    gw_td = gw_td_ref[...]
    gw_q = gw_q_ref[...]
    gw_m = gw_m_ref[...]
    gb1 = gb1_ref[...]
    gw2 = gw2_ref[...]
    gb2 = gb2_ref[...]
    awih = awih_ref[...]
    awhh = awhh_ref[...]
    abih = abih_ref[...]
    abhh = abhh_ref[...]
    mwih = mwih_ref[...]
    mwhh = mwhh_ref[...]
    mbih = mbih_ref[...]
    mbhh = mbhh_ref[...]

    # q contribution to the gate MLP is invariant across episodes and time.
    q_contrib = jnp.dot(q.astype(jnp.bfloat16), gw_q,
                        preferred_element_type=jnp.float32)       # (B, H)

    def episode_body(_, memory):
        # memory contribution is invariant across the inner t-loop.
        base = (q_contrib
                + jnp.dot(memory.astype(jnp.bfloat16), gw_m,
                          preferred_element_type=jnp.float32)
                + gb1)                                            # (B, H)

        def step(t, hidden):
            c_t = ctx_ref[t]                                      # (B, H) f32
            # 5 time-dependent gate features -> single K=5H dot.
            feats = jnp.concatenate(
                [c_t, c_t * q, c_t * memory,
                 jnp.abs(c_t - q), jnp.abs(c_t - memory)], axis=-1)   # (B, 5H)
            h1 = jnp.tanh(
                jnp.dot(feats.astype(jnp.bfloat16), gw_td,
                        preferred_element_type=jnp.float32) + base)
            # degenerate (H -> 1) layer: VPU mul + lane reduce (XLU), not MXU.
            g = jax.nn.sigmoid(
                jnp.sum(h1 * gw2, axis=-1, keepdims=True) + gb2)      # (B, 1)
            h_att = _gru_step(c_t.astype(jnp.bfloat16), hidden,
                              awih, awhh, abih, abhh)
            return g * h_att + (1.0 - g) * hidden

        hidden = lax.fori_loop(0, T_C, step, jnp.zeros((B, H), jnp.float32),
                               unroll=True)
        return _gru_step(hidden.astype(jnp.bfloat16), memory,
                         mwih, mwhh, mbih, mbhh)

    memory = lax.fori_loop(0, num_episode, episode_body, q, unroll=True)

    # ---- fused output layer: Linear(3H->H) -> tanh -> Linear(H->2) -> softmax
    cat = jnp.concatenate([memory, ac_ref[...], ai_ref[...]], axis=-1)  # (B,3H)
    h = jnp.tanh(
        jnp.dot(cat.astype(jnp.bfloat16), ow1_ref[...],
                preferred_element_type=jnp.float32) + ob1_ref[...])
    logits = jnp.dot(h.astype(jnp.bfloat16), ow2_ref[...],
                     preferred_element_type=jnp.float32) + ob2_ref[...]
    m = jnp.max(logits, axis=-1, keepdims=True)
    e = jnp.exp(logits - m)
    out_ref[...] = e / jnp.sum(e, axis=-1, keepdims=True)


# ---------------------------------------------------------------------------
# Parameter construction (deterministic, synthetic — matches nn.Module shapes),
# pre-packed into the fused / bf16 layouts the kernels expect.
# ---------------------------------------------------------------------------
def init_params(key, vocab, hidden):
    keys = iter(jax.random.split(key, 32))

    def normal(shape, scale=0.1):
        return jax.random.normal(next(keys), shape, dtype=jnp.float32) * scale

    embed = normal((vocab, hidden))
    embed = embed.at[0].set(0.0).astype(jnp.bfloat16)      # padding_idx=0

    def gru_params():
        wih = normal((3 * hidden, hidden))                 # PyTorch (r,z,n) rows
        whh = normal((3 * hidden, hidden))
        bih = normal((3 * hidden,), 0.01)
        bhh = normal((3 * hidden,), 0.01)
        return (wih.T.astype(jnp.bfloat16),                # (H, 3H) fused
                whh.T.astype(jnp.bfloat16),
                bih.reshape(1, 3 * hidden),
                bhh.reshape(1, 3 * hidden))

    # gate: Linear(7H -> H), tanh, Linear(H -> 1), sigmoid
    g1_w = normal((hidden, 7 * hidden))
    g1_b = normal((hidden,), 0.01)
    g2_w = normal((1, hidden))
    g2_b = normal((1,), 0.01)
    blk = [g1_w[:, k * hidden:(k + 1) * hidden].T for k in range(7)]  # (H,H) each
    gate = (
        # time-dependent feature blocks in order [c, c*q, c*m, |c-q|, |c-m|]
        jnp.concatenate([blk[0], blk[3], blk[4], blk[5], blk[6]],
                        axis=0).astype(jnp.bfloat16),      # (5H, H)
        blk[2].astype(jnp.bfloat16),                       # q block      (H, H)
        blk[1].astype(jnp.bfloat16),                       # memory block (H, H)
        g1_b.reshape(1, hidden),
        g2_w,                                              # (1, H) f32 VPU row
        g2_b.reshape(1, 1),
    )

    # output: Linear(3H -> H), tanh, Linear(H -> 2), softmax
    o1_w = normal((hidden, 3 * hidden))
    o1_b = normal((hidden,), 0.01)
    o2_w = normal((2, hidden))
    o2_b = normal((2,), 0.01)
    output = (
        o1_w.T.astype(jnp.bfloat16),                       # (3H, H)
        o1_b.reshape(1, hidden),
        o2_w.T.astype(jnp.bfloat16),                       # (H, 2)
        o2_b.reshape(1, 2),
    )

    return dict(
        embed=embed,
        context_gru=gru_params(),
        question_gru=gru_params(),
        answer_gru=gru_params(),
        att_cell=gru_params(),
        mem_cell=gru_params(),
        gate=gate,
        output=output,
    )


# ---------------------------------------------------------------------------
# Forward pass (is_training=False path; mask-based final-state selection)
# ---------------------------------------------------------------------------
def dmn_forward(params, c_p, c_mask, q_p, q_mask,
                a_I_p, a_I_mask, a_II_p, a_II_mask, num_episode):
    embed = params["embed"]
    H = embed.shape[1]
    B, T_C, S_c = c_p.shape

    # ---- context encoder: GRU per (batch, sentence) ----
    ctx = gru_encode(c_p.reshape(B * T_C, S_c), c_mask.reshape(B * T_C, S_c),
                     embed, params["context_gru"])                  # (B*T_C, H)

    # ---- question encoder ----
    q_enc = gru_encode(q_p, q_mask, embed, params["question_gru"])  # (B, H)

    # ---- answer encoders (shared answer_gru): single merged call ----
    if a_I_p.shape == a_II_p.shape:
        a_enc = gru_encode(jnp.concatenate([a_I_p, a_II_p], axis=0),
                           jnp.concatenate([a_I_mask, a_II_mask], axis=0),
                           embed, params["answer_gru"])             # (2B, H)
        enc_ac, enc_ai = a_enc[:B], a_enc[B:]
    else:
        enc_ac = gru_encode(a_I_p, a_I_mask, embed, params["answer_gru"])
        enc_ai = gru_encode(a_II_p, a_II_mask, embed, params["answer_gru"])

    # ---- episodic memory + fused output layer (batch padded to sublanes) ----
    b_pad = _round_up(max(B, 8), 8)
    ctx_tm = jnp.transpose(ctx.reshape(B, T_C, H), (1, 0, 2))       # (T_C, B, H)
    ctx_tm = jnp.pad(ctx_tm, ((0, 0), (0, b_pad - B), (0, 0)))
    q_pad = jnp.pad(q_enc, ((0, b_pad - B), (0, 0)))
    ac_pad = jnp.pad(enc_ac, ((0, b_pad - B), (0, 0)))
    ai_pad = jnp.pad(enc_ai, ((0, b_pad - B), (0, 0)))

    probs = pl.pallas_call(
        partial(episodic_output_kernel, num_episode=num_episode),
        out_shape=jax.ShapeDtypeStruct((b_pad, 2), jnp.float32),
        in_specs=[_vmem_spec()] * 22,
        out_specs=_vmem_spec(),
    )(ctx_tm, q_pad, ac_pad, ai_pad,
      *params["gate"], *params["att_cell"], *params["mem_cell"],
      *params["output"])
    return probs[:B]


# ---------------------------------------------------------------------------
if __name__ == "__main__":
    B, T_C, S_c, S_q, S_a = 2, 3, 6, 5, 4
    VOCAB, HIDDEN, NUM_EPISODE = 50, 32, 2

    key = jax.random.PRNGKey(0)
    kp, kd = jax.random.split(key)
    params = init_params(kp, VOCAB, HIDDEN)

    def make_ids_mask(k, shape):
        k1, k2 = jax.random.split(k)
        S = shape[-1]
        lens = jax.random.randint(k1, shape[:-1], 1, S + 1)
        mask = (jnp.arange(S) >= lens[..., None]).astype(jnp.int32)  # 1=pad,0=real
        ids = jax.random.randint(k2, shape, 1, VOCAB)
        ids = jnp.where(mask == 0, ids, 0).astype(jnp.int32)         # pad id 0
        return ids, mask

    ks = jax.random.split(kd, 4)
    c_p, c_mask = make_ids_mask(ks[0], (B, T_C, S_c))
    q_p, q_mask = make_ids_mask(ks[1], (B, S_q))
    a_I_p, a_I_mask = make_ids_mask(ks[2], (B, S_a))
    a_II_p, a_II_mask = make_ids_mask(ks[3], (B, S_a))

    fwd = jax.jit(partial(dmn_forward, num_episode=NUM_EPISODE))
    out = fwd(params, c_p, c_mask, q_p, q_mask,
              a_I_p, a_I_mask, a_II_p, a_II_mask)
    out = jax.block_until_ready(out)
    assert out.shape == (B, 2)
    assert bool(jnp.all(jnp.isfinite(out)))
    print("KERNEL_OK")
</pallas_src>

<mosaic_0001>
module attributes {stable_mosaic.version = 11 : i64} {
  func.func @gru_encode_kernel(%arg0: i32, %arg1: memref<4x8x32xbf16, #tpu.memory_space<vmem>>, %arg2: memref<8x1xi32, #tpu.memory_space<vmem>>, %arg3: memref<32x96xbf16, #tpu.memory_space<vmem>>, %arg4: memref<32x96xbf16, #tpu.memory_space<vmem>>, %arg5: memref<1x96xf32, #tpu.memory_space<vmem>>, %arg6: memref<1x96xf32, #tpu.memory_space<vmem>>, %arg7: memref<8x32xf32, #tpu.memory_space<vmem>>) attributes {dimension_semantics = [#tpu.dimension_semantics<parallel>], iteration_bounds = array<i64: 1>, scalar_prefetch = 0 : i64, scratch_operands = 0 : i64, tpu.core_type = #tpu.core_type<tc>, window_params = [{transform_indices = @transform_0, window_bounds = array<i64: 4, 8, 32>}, {transform_indices = @transform_1, window_bounds = array<i64: 8, 1>}, {pipeline_mode = #tpu.pipeline_mode<synchronous>, transform_indices = @transform_2, window_bounds = array<i64: 32, 96>}, {pipeline_mode = #tpu.pipeline_mode<synchronous>, transform_indices = @transform_3, window_bounds = array<i64: 32, 96>}, {pipeline_mode = #tpu.pipeline_mode<synchronous>, transform_indices = @transform_4, window_bounds = array<i64: 1, 96>}, {pipeline_mode = #tpu.pipeline_mode<synchronous>, transform_indices = @transform_5, window_bounds = array<i64: 1, 96>}, {transform_indices = @transform_6, window_bounds = array<i64: 8, 32>}]} {
    %c0 = arith.constant 0 : index
    %c0_0 = arith.constant 0 : index
    %0 = vector.load %arg3[%c0, %c0_0] : memref<32x96xbf16, #tpu.memory_space<vmem>>, vector<32x96xbf16>
    %c0_1 = arith.constant 0 : index
    %c0_2 = arith.constant 0 : index
    %1 = vector.load %arg4[%c0_1, %c0_2] : memref<32x96xbf16, #tpu.memory_space<vmem>>, vector<32x96xbf16>
    %c0_3 = arith.constant 0 : index
    %c0_4 = arith.constant 0 : index
    %2 = vector.load %arg5[%c0_3, %c0_4] : memref<1x96xf32, #tpu.memory_space<vmem>>, vector<1x96xf32>
    %c0_5 = arith.constant 0 : index
    %c0_6 = arith.constant 0 : index
    %3 = vector.load %arg6[%c0_5, %c0_6] : memref<1x96xf32, #tpu.memory_space<vmem>>, vector<1x96xf32>
    %c0_7 = arith.constant 0 : index
    %c0_8 = arith.constant 0 : index
    %4 = vector.load %arg2[%c0_7, %c0_8] : memref<8x1xi32, #tpu.memory_space<vmem>>, vector<8x1xi32>
    %cst = arith.constant 0.000000e+00 : f32
    %5 = vector.broadcast %cst : f32 to vector<8x32xf32>
    %c0_i32 = arith.constant 0 : i32
    %6 = arith.index_cast %c0_i32 : i32 to index
    %c0_9 = arith.constant 0 : index
    %c0_10 = arith.constant 0 : index
    %7 = vector.load %arg1[%6, %c0_9, %c0_10] : memref<4x8x32xbf16, #tpu.memory_space<vmem>>, vector<1x8x32xbf16>
    %8 = vector.shape_cast %7 : vector<1x8x32xbf16> to vector<8x32xbf16>
    %cst_11 = arith.constant dense<0.000000e+00> : vector<8x96xf32>
    %9 = tpu.matmul %8, %0, %cst_11 {dimension_numbers = #tpu.dot_dimension_numbers<[1], [0], [0], [1], [0, 0, 1, 1], [], []>} : vector<8x32xbf16>, vector<32x96xbf16>, vector<8x96xf32> -> vector<8x96xf32>
    %10 = vector.broadcast %2 : vector<1x96xf32> to vector<8x96xf32>
    %11 = arith.addf %9, %10 : vector<8x96xf32>
    %12 = arith.truncf %5 : vector<8x32xf32> to vector<8x32xbf16>
    %cst_12 = arith.constant dense<0.000000e+00> : vector<8x96xf32>
    %13 = tpu.matmul %12, %1, %cst_12 {dimension_numbers = #tpu.dot_dimension_numbers<[1], [0], [0], [1], [0, 0, 1, 1], [], []>} : vector<8x32xbf16>, vector<32x96xbf16>, vector<8x96xf32> -> vector<8x96xf32>
    %14 = vector.broadcast %3 : vector<1x96xf32> to vector<8x96xf32>
    %15 = arith.addf %13, %14 : vector<8x96xf32>
    %16 = vector.extract_strided_slice %11 {offsets = [0, 0], sizes = [8, 32], strides = [1, 1]} : vector<8x96xf32> to vector<8x32xf32>
    %17 = vector.extract_strided_slice %15 {offsets = [0, 0], sizes = [8, 32], strides = [1, 1]} : vector<8x96xf32> to vector<8x32xf32>
    %18 = arith.addf %16, %17 : vector<8x32xf32>
    %19 = arith.negf %18 : vector<8x32xf32>
    %20 = math.exp %19 : vector<8x32xf32>
    %cst_13 = arith.constant 1.000000e+00 : f32
    %21 = vector.broadcast %cst_13 : f32 to vector<8x32xf32>
    %22 = arith.addf %21, %20 : vector<8x32xf32>
    %23 = arith.divf %21, %22 : vector<8x32xf32>
    %24 = vector.extract_strided_slice %11 {offsets = [0, 32], sizes = [8, 32], strides = [1, 1]} : vector<8x96xf32> to vector<8x32xf32>
    %25 = vector.extract_strided_slice %15 {offsets = [0, 32], sizes = [8, 32], strides = [1, 1]} : vector<8x96xf32> to vector<8x32xf32>
    %26 = arith.addf %24, %25 : vector<8x32xf32>
    %27 = arith.negf %26 : vector<8x32xf32>
    %28 = math.exp %27 : vector<8x32xf32>
    %cst_14 = arith.constant 1.000000e+00 : f32
    %29 = vector.broadcast %cst_14 : f32 to vector<8x32xf32>
    %30 = arith.addf %29, %28 : vector<8x32xf32>
    %31 = arith.divf %29, %30 : vector<8x32xf32>
    %32 = vector.extract_strided_slice %11 {offsets = [0, 64], sizes = [8, 32], strides = [1, 1]} : vector<8x96xf32> to vector<8x32xf32>
    %33 = vector.extract_strided_slice %15 {offsets = [0, 64], sizes = [8, 32], strides = [1, 1]} : vector<8x96xf32> to vector<8x32xf32>
    %34 = arith.mulf %23, %33 : vector<8x32xf32>
    %35 = arith.addf %32, %34 : vector<8x32xf32>
    %36 = math.tanh %35 : vector<8x32xf32>
    %cst_15 = arith.constant 1.000000e+00 : f32
    %37 = vector.broadcast %cst_15 : f32 to vector<8x32xf32>
    %38 = arith.subf %37, %31 : vector<8x32xf32>
    %39 = arith.mulf %38, %36 : vector<8x32xf32>
    %40 = arith.mulf %31, %5 : vector<8x32xf32>
    %41 = arith.addf %39, %40 : vector<8x32xf32>
    %42 = vector.broadcast %c0_i32 : i32 to vector<8x1xi32>
    %43 = arith.cmpi sle, %42, %4 : vector<8x1xi32>
    %44 = vector.shape_cast %43 : vector<8x1xi1> to vector<8x1xi1>
    %45 = vector.broadcast %44 : vector<8x1xi1> to vector<8x32xi1>
    %46 = arith.select %45, %41, %5 : vector<8x32xi1>, vector<8x32xf32>
    %c1_i32 = arith.constant 1 : i32
    %47 = arith.index_cast %c1_i32 : i32 to index
    %c0_16 = arith.constant 0 : index
    %c0_17 = arith.constant 0 : index
    %48 = vector.load %arg1[%47, %c0_16, %c0_17] : memref<4x8x32xbf16, #tpu.memory_space<vmem>>, vector<1x8x32xbf16>
    %49 = vector.shape_cast %48 : vector<1x8x32xbf16> to vector<8x32xbf16>
    %cst_18 = arith.constant dense<0.000000e+00> : vector<8x96xf32>
    %50 = tpu.matmul %49, %0, %cst_18 {dimension_numbers = #tpu.dot_dimension_numbers<[1], [0], [0], [1], [0, 0, 1, 1], [], []>} : vector<8x32xbf16>, vector<32x96xbf16>, vector<8x96xf32> -> vector<8x96xf32>
    %51 = vector.broadcast %2 : vector<1x96xf32> to vector<8x96xf32>
    %52 = arith.addf %50, %51 : vector<8x96xf32>
    %53 = arith.truncf %46 : vector<8x32xf32> to vector<8x32xbf16>
    %cst_19 = arith.constant dense<0.000000e+00> : vector<8x96xf32>
    %54 = tpu.matmul %53, %1, %cst_19 {dimension_numbers = #tpu.dot_dimension_numbers<[1], [0], [0], [1], [0, 0, 1, 1], [], []>} : vector<8x32xbf16>, vector<32x96xbf16>, vector<8x96xf32> -> vector<8x96xf32>
    %55 = vector.broadcast %3 : vector<1x96xf32> to vector<8x96xf32>
    %56 = arith.addf %54, %55 : vector<8x96xf32>
    %57 = vector.extract_strided_slice %52 {offsets = [0, 0], sizes = [8, 32], strides = [1, 1]} : vector<8x96xf32> to vector<8x32xf32>
    %58 = vector.extract_strided_slice %56 {offsets = [0, 0], sizes = [8, 32], strides = [1, 1]} : vector<8x96xf32> to vector<8x32xf32>
    %59 = arith.addf %57, %58 : vector<8x32xf32>
    %60 = arith.negf %59 : vector<8x32xf32>
    %61 = math.exp %60 : vector<8x32xf32>
    %cst_20 = arith.constant 1.000000e+00 : f32
    %62 = vector.broadcast %cst_20 : f32 to vector<8x32xf32>
    %63 = arith.addf %62, %61 : vector<8x32xf32>
    %64 = arith.divf %62, %63 : vector<8x32xf32>
    %65 = vector.extract_strided_slice %52 {offsets = [0, 32], sizes = [8, 32], strides = [1, 1]} : vector<8x96xf32> to vector<8x32xf32>
    %66 = vector.extract_strided_slice %56 {offsets = [0, 32], sizes = [8, 32], strides = [1, 1]} : vector<8x96xf32> to vector<8x32xf32>
    %67 = arith.addf %65, %66 : vector<8x32xf32>
    %68 = arith.negf %67 : vector<8x32xf32>
    %69 = math.exp %68 : vector<8x32xf32>
    %cst_21 = arith.constant 1.000000e+00 : f32
    %70 = vector.broadcast %cst_21 : f32 to vector<8x32xf32>
    %71 = arith.addf %70, %69 : vector<8x32xf32>
    %72 = arith.divf %70, %71 : vector<8x32xf32>
    %73 = vector.extract_strided_slice %52 {offsets = [0, 64], sizes = [8, 32], strides = [1, 1]} : vector<8x96xf32> to vector<8x32xf32>
    %74 = vector.extract_strided_slice %56 {offsets = [0, 64], sizes = [8, 32], strides = [1, 1]} : vector<8x96xf32> to vector<8x32xf32>
    %75 = arith.mulf %64, %74 : vector<8x32xf32>
    %76 = arith.addf %73, %75 : vector<8x32xf32>
    %77 = math.tanh %76 : vector<8x32xf32>
    %cst_22 = arith.constant 1.000000e+00 : f32
    %78 = vector.broadcast %cst_22 : f32 to vector<8x32xf32>
    %79 = arith.subf %78, %72 : vector<8x32xf32>
    %80 = arith.mulf %79, %77 : vector<8x32xf32>
    %81 = arith.mulf %72, %46 : vector<8x32xf32>
    %82 = arith.addf %80, %81 : vector<8x32xf32>
    %83 = vector.broadcast %c1_i32 : i32 to vector<8x1xi32>
    %84 = arith.cmpi sle, %83, %4 : vector<8x1xi32>
    %85 = vector.shape_cast %84 : vector<8x1xi1> to vector<8x1xi1>
    %86 = vector.broadcast %85 : vector<8x1xi1> to vector<8x32xi1>
    %87 = arith.select %86, %82, %46 : vector<8x32xi1>, vector<8x32xf32>
    %c2_i32 = arith.constant 2 : i32
    %88 = arith.index_cast %c2_i32 : i32 to index
    %c0_23 = arith.constant 0 : index
    %c0_24 = arith.constant 0 : index
    %89 = vector.load %arg1[%88, %c0_23, %c0_24] : memref<4x8x32xbf16, #tpu.memory_space<vmem>>, vector<1x8x32xbf16>
    %90 = vector.shape_cast %89 : vector<1x8x32xbf16> to vector<8x32xbf16>
    %cst_25 = arith.constant dense<0.000000e+00> : vector<8x96xf32>
    %91 = tpu.matmul %90, %0, %cst_25 {dimension_numbers = #tpu.dot_dimension_numbers<[1], [0], [0], [1], [0, 0, 1, 1], [], []>} : vector<8x32xbf16>, vector<32x96xbf16>, vector<8x96xf32> -> vector<8x96xf32>
    %92 = vector.broadcast %2 : vector<1x96xf32> to vector<8x96xf32>
    %93 = arith.addf %91, %92 : vector<8x96xf32>
    %94 = arith.truncf %87 : vector<8x32xf32> to vector<8x32xbf16>
    %cst_26 = arith.constant dense<0.000000e+00> : vector<8x96xf32>
    %95 = tpu.matmul %94, %1, %cst_26 {dimension_numbers = #tpu.dot_dimension_numbers<[1], [0], [0], [1], [0, 0, 1, 1], [], []>} : vector<8x32xbf16>, vector<32x96xbf16>, vector<8x96xf32> -> vector<8x96xf32>
    %96 = vector.broadcast %3 : vector<1x96xf32> to vector<8x96xf32>
    %97 = arith.addf %95, %96 : vector<8x96xf32>
    %98 = vector.extract_strided_slice %93 {offsets = [0, 0], sizes = [8, 32], strides = [1, 1]} : vector<8x96xf32> to vector<8x32xf32>
    %99 = vector.extract_strided_slice %97 {offsets = [0, 0], sizes = [8, 32], strides = [1, 1]} : vector<8x96xf32> to vector<8x32xf32>
    %100 = arith.addf %98, %99 : vector<8x32xf32>
    %101 = arith.negf %100 : vector<8x32xf32>
    %102 = math.exp %101 : vector<8x32xf32>
    %cst_27 = arith.constant 1.000000e+00 : f32
    %103 = vector.broadcast %cst_27 : f32 to vector<8x32xf32>
    %104 = arith.addf %103, %102 : vector<8x32xf32>
    %105 = arith.divf %103, %104 : vector<8x32xf32>
    %106 = vector.extract_strided_slice %93 {offsets = [0, 32], sizes = [8, 32], strides = [1, 1]} : vector<8x96xf32> to vector<8x32xf32>
    %107 = vector.extract_strided_slice %97 {offsets = [0, 32], sizes = [8, 32], strides = [1, 1]} : vector<8x96xf32> to vector<8x32xf32>
    %108 = arith.addf %106, %107 : vector<8x32xf32>
    %109 = arith.negf %108 : vector<8x32xf32>
    %110 = math.exp %109 : vector<8x32xf32>
    %cst_28 = arith.constant 1.000000e+00 : f32
    %111 = vector.broadcast %cst_28 : f32 to vector<8x32xf32>
    %112 = arith.addf %111, %110 : vector<8x32xf32>
    %113 = arith.divf %111, %112 : vector<8x32xf32>
    %114 = vector.extract_strided_slice %93 {offsets = [0, 64], sizes = [8, 32], strides = [1, 1]} : vector<8x96xf32> to vector<8x32xf32>
    %115 = vector.extract_strided_slice %97 {offsets = [0, 64], sizes = [8, 32], strides = [1, 1]} : vector<8x96xf32> to vector<8x32xf32>
    %116 = arith.mulf %105, %115 : vector<8x32xf32>
    %117 = arith.addf %114, %116 : vector<8x32xf32>
    %118 = math.tanh %117 : vector<8x32xf32>
    %cst_29 = arith.constant 1.000000e+00 : f32
    %119 = vector.broadcast %cst_29 : f32 to vector<8x32xf32>
    %120 = arith.subf %119, %113 : vector<8x32xf32>
    %121 = arith.mulf %120, %118 : vector<8x32xf32>
    %122 = arith.mulf %113, %87 : vector<8x32xf32>
    %123 = arith.addf %121, %122 : vector<8x32xf32>
    %124 = vector.broadcast %c2_i32 : i32 to vector<8x1xi32>
    %125 = arith.cmpi sle, %124, %4 : vector<8x1xi32>
    %126 = vector.shape_cast %125 : vector<8x1xi1> to vector<8x1xi1>
    %127 = vector.broadcast %126 : vector<8x1xi1> to vector<8x32xi1>
    %128 = arith.select %127, %123, %87 : vector<8x32xi1>, vector<8x32xf32>
    %c3_i32 = arith.constant 3 : i32
    %129 = arith.index_cast %c3_i32 : i32 to index
    %c0_30 = arith.constant 0 : index
    %c0_31 = arith.constant 0 : index
    %130 = vector.load %arg1[%129, %c0_30, %c0_31] : memref<4x8x32xbf16, #tpu.memory_space<vmem>>, vector<1x8x32xbf16>
    %131 = vector.shape_cast %130 : vector<1x8x32xbf16> to vector<8x32xbf16>
    %cst_32 = arith.constant dense<0.000000e+00> : vector<8x96xf32>
    %132 = tpu.matmul %131, %0, %cst_32 {dimension_numbers = #tpu.dot_dimension_numbers<[1], [0], [0], [1], [0, 0, 1, 1], [], []>} : vector<8x32xbf16>, vector<32x96xbf16>, vector<8x96xf32> -> vector<8x96xf32>
    %133 = vector.broadcast %2 : vector<1x96xf32> to vector<8x96xf32>
    %134 = arith.addf %132, %133 : vector<8x96xf32>
    %135 = arith.truncf %128 : vector<8x32xf32> to vector<8x32xbf16>
    %cst_33 = arith.constant dense<0.000000e+00> : vector<8x96xf32>
    %136 = tpu.matmul %135, %1, %cst_33 {dimension_numbers = #tpu.dot_dimension_numbers<[1], [0], [0], [1], [0, 0, 1, 1], [], []>} : vector<8x32xbf16>, vector<32x96xbf16>, vector<8x96xf32> -> vector<8x96xf32>
    %137 = vector.broadcast %3 : vector<1x96xf32> to vector<8x96xf32>
    %138 = arith.addf %136, %137 : vector<8x96xf32>
    %139 = vector.extract_strided_slice %134 {offsets = [0, 0], sizes = [8, 32], strides = [1, 1]} : vector<8x96xf32> to vector<8x32xf32>
    %140 = vector.extract_strided_slice %138 {offsets = [0, 0], sizes = [8, 32], strides = [1, 1]} : vector<8x96xf32> to vector<8x32xf32>
    %141 = arith.addf %139, %140 : vector<8x32xf32>
    %142 = arith.negf %141 : vector<8x32xf32>
    %143 = math.exp %142 : vector<8x32xf32>
    %cst_34 = arith.constant 1.000000e+00 : f32
    %144 = vector.broadcast %cst_34 : f32 to vector<8x32xf32>
    %145 = arith.addf %144, %143 : vector<8x32xf32>
    %146 = arith.divf %144, %145 : vector<8x32xf32>
    %147 = vector.extract_strided_slice %134 {offsets = [0, 32], sizes = [8, 32], strides = [1, 1]} : vector<8x96xf32> to vector<8x32xf32>
    %148 = vector.extract_strided_slice %138 {offsets = [0, 32], sizes = [8, 32], strides = [1, 1]} : vector<8x96xf32> to vector<8x32xf32>
    %149 = arith.addf %147, %148 : vector<8x32xf32>
    %150 = arith.negf %149 : vector<8x32xf32>
    %151 = math.exp %150 : vector<8x32xf32>
    %cst_35 = arith.constant 1.000000e+00 : f32
    %152 = vector.broadcast %cst_35 : f32 to vector<8x32xf32>
    %153 = arith.addf %152, %151 : vector<8x32xf32>
    %154 = arith.divf %152, %153 : vector<8x32xf32>
    %155 = vector.extract_strided_slice %134 {offsets = [0, 64], sizes = [8, 32], strides = [1, 1]} : vector<8x96xf32> to vector<8x32xf32>
    %156 = vector.extract_strided_slice %138 {offsets = [0, 64], sizes = [8, 32], strides = [1, 1]} : vector<8x96xf32> to vector<8x32xf32>
    %157 = arith.mulf %146, %156 : vector<8x32xf32>
    %158 = arith.addf %155, %157 : vector<8x32xf32>
    %159 = math.tanh %158 : vector<8x32xf32>
    %cst_36 = arith.constant 1.000000e+00 : f32
    %160 = vector.broadcast %cst_36 : f32 to vector<8x32xf32>
    %161 = arith.subf %160, %154 : vector<8x32xf32>
    %162 = arith.mulf %161, %159 : vector<8x32xf32>
    %163 = arith.mulf %154, %128 : vector<8x32xf32>
    %164 = arith.addf %162, %163 : vector<8x32xf32>
    %165 = vector.broadcast %c3_i32 : i32 to vector<8x1xi32>
    %166 = arith.cmpi sle, %165, %4 : vector<8x1xi32>
    %167 = vector.shape_cast %166 : vector<8x1xi1> to vector<8x1xi1>
    %168 = vector.broadcast %167 : vector<8x1xi1> to vector<8x32xi1>
    %169 = arith.select %168, %164, %128 : vector<8x32xi1>, vector<8x32xf32>
    %c4_i32 = arith.constant 4 : i32
    %c0_37 = arith.constant 0 : index
    %c0_38 = arith.constant 0 : index
    %170 = vector.load %arg7[%c0_37, %c0_38] : memref<8x32xf32, #tpu.memory_space<vmem>>, vector<8x32xf32>
    tpu.vector_store %arg7[%c0_37, %c0_38], %169 {strides = array<i32>} : memref<8x32xf32, #tpu.memory_space<vmem>>, vector<8x32xf32>,
    return
  }
  func.func @transform_0(%arg0: i32) -> (i32, i32, i32) {
    %c0_i32 = arith.constant 0 : i32
    %c0_i32_0 = arith.constant 0 : i32
    %c0_i32_1 = arith.constant 0 : i32
    return %c0_i32, %arg0, %c0_i32_0 : i32, i32, i32
  }
  func.func @transform_1(%arg0: i32) -> (i32, i32) {
    %c0_i32 = arith.constant 0 : i32
    %c0_i32_0 = arith.constant 0 : i32
    return %arg0, %c0_i32 : i32, i32
  }
  func.func @transform_2(%arg0: i32) -> (i32, i32) {
    %c0_i32 = arith.constant 0 : i32
    %c0_i32_0 = arith.constant 0 : i32
    %c0_i32_1 = arith.constant 0 : i32
    return %c0_i32, %c0_i32_0 : i32, i32
  }
  func.func @transform_3(%arg0: i32) -> (i32, i32) {
    %c0_i32 = arith.constant 0 : i32
    %c0_i32_0 = arith.constant 0 : i32
    %c0_i32_1 = arith.constant 0 : i32
    return %c0_i32, %c0_i32_0 : i32, i32
  }
  func.func @transform_4(%arg0: i32) -> (i32, i32) {
    %c0_i32 = arith.constant 0 : i32
    %c0_i32_0 = arith.constant 0 : i32
    %c0_i32_1 = arith.constant 0 : i32
    return %c0_i32, %c0_i32_0 : i32, i32
  }
  func.func @transform_5(%arg0: i32) -> (i32, i32) {
    %c0_i32 = arith.constant 0 : i32
    %c0_i32_0 = arith.constant 0 : i32
    %c0_i32_1 = arith.constant 0 : i32
    return %c0_i32, %c0_i32_0 : i32, i32
  }
  func.func @transform_6(%arg0: i32) -> (i32, i32) {
    %c0_i32 = arith.constant 0 : i32
    %c0_i32_0 = arith.constant 0 : i32
    return %arg0, %c0_i32 : i32, i32
  }
}

module attributes {stable_mosaic.version = 11 : i64} {
  func.func @gru_encode_kernel(%arg0: i32, %arg1: memref<6x8x32xbf16, #tpu.memory_space<vmem>>, %arg2: memref<8x1xi32, #tpu.memory_space<vmem>>, %arg3: memref<32x96xbf16, #tpu.memory_space<vmem>>, %arg4: memref<32x96xbf16, #tpu.memory_space<vmem>>, %arg5: memref<1x96xf32, #tpu.memory_space<vmem>>, %arg6: memref<1x96xf32, #tpu.memory_space<vmem>>, %arg7: memref<8x32xf32, #tpu.memory_space<vmem>>) attributes {dimension_semantics = [#tpu.dimension_semantics<parallel>], iteration_bounds = array<i64: 1>, scalar_prefetch = 0 : i64, scratch_operands = 0 : i64, tpu.core_type = #tpu.core_type<tc>, window_params = [{transform_indices = @transform_0, window_bounds = array<i64: 6, 8, 32>}, {transform_indices = @transform_1, window_bounds = array<i64: 8, 1>}, {pipeline_mode = #tpu.pipeline_mode<synchronous>, transform_indices = @transform_2, window_bounds = array<i64: 32, 96>}, {pipeline_mode = #tpu.pipeline_mode<synchronous>, transform_indices = @transform_3, window_bounds = array<i64: 32, 96>}, {pipeline_mode = #tpu.pipeline_mode<synchronous>, transform_indices = @transform_4, window_bounds = array<i64: 1, 96>}, {pipeline_mode = #tpu.pipeline_mode<synchronous>, transform_indices = @transform_5, window_bounds = array<i64: 1, 96>}, {transform_indices = @transform_6, window_bounds = array<i64: 8, 32>}]} {
    %c0 = arith.constant 0 : index
    %c0_0 = arith.constant 0 : index
    %0 = vector.load %arg3[%c0, %c0_0] : memref<32x96xbf16, #tpu.memory_space<vmem>>, vector<32x96xbf16>
    %c0_1 = arith.constant 0 : index
    %c0_2 = arith.constant 0 : index
    %1 = vector.load %arg4[%c0_1, %c0_2] : memref<32x96xbf16, #tpu.memory_space<vmem>>, vector<32x96xbf16>
    %c0_3 = arith.constant 0 : index
    %c0_4 = arith.constant 0 : index
    %2 = vector.load %arg5[%c0_3, %c0_4] : memref<1x96xf32, #tpu.memory_space<vmem>>, vector<1x96xf32>
    %c0_5 = arith.constant 0 : index
    %c0_6 = arith.constant 0 : index
    %3 = vector.load %arg6[%c0_5, %c0_6] : memref<1x96xf32, #tpu.memory_space<vmem>>, vector<1x96xf32>
    %c0_7 = arith.constant 0 : index
    %c0_8 = arith.constant 0 : index
    %4 = vector.load %arg2[%c0_7, %c0_8] : memref<8x1xi32, #tpu.memory_space<vmem>>, vector<8x1xi32>
    %cst = arith.constant 0.000000e+00 : f32
    %5 = vector.broadcast %cst : f32 to vector<8x32xf32>
    %c0_i32 = arith.constant 0 : i32
    %6 = arith.index_cast %c0_i32 : i32 to index
    %c0_9 = arith.constant 0 : index
    %c0_10 = arith.constant 0 : index
    %7 = vector.load %arg1[%6, %c0_9, %c0_10] : memref<6x8x32xbf16, #tpu.memory_space<vmem>>, vector<1x8x32xbf16>
    %8 = vector.shape_cast %7 : vector<1x8x32xbf16> to vector<8x32xbf16>
    %cst_11 = arith.constant dense<0.000000e+00> : vector<8x96xf32>
    %9 = tpu.matmul %8, %0, %cst_11 {dimension_numbers = #tpu.dot_dimension_numbers<[1], [0], [0], [1], [0, 0, 1, 1], [], []>} : vector<8x32xbf16>, vector<32x96xbf16>, vector<8x96xf32> -> vector<8x96xf32>
    %10 = vector.broadcast %2 : vector<1x96xf32> to vector<8x96xf32>
    %11 = arith.addf %9, %10 : vector<8x96xf32>
    %12 = arith.truncf %5 : vector<8x32xf32> to vector<8x32xbf16>
    %cst_12 = arith.constant dense<0.000000e+00> : vector<8x96xf32>
    %13 = tpu.matmul %12, %1, %cst_12 {dimension_numbers = #tpu.dot_dimension_numbers<[1], [0], [0], [1], [0, 0, 1, 1], [], []>} : vector<8x32xbf16>, vector<32x96xbf16>, vector<8x96xf32> -> vector<8x96xf32>
    %14 = vector.broadcast %3 : vector<1x96xf32> to vector<8x96xf32>
    %15 = arith.addf %13, %14 : vector<8x96xf32>
    %16 = vector.extract_strided_slice %11 {offsets = [0, 0], sizes = [8, 32], strides = [1, 1]} : vector<8x96xf32> to vector<8x32xf32>
    %17 = vector.extract_strided_slice %15 {offsets = [0, 0], sizes = [8, 32], strides = [1, 1]} : vector<8x96xf32> to vector<8x32xf32>
    %18 = arith.addf %16, %17 : vector<8x32xf32>
    %19 = arith.negf %18 : vector<8x32xf32>
    %20 = math.exp %19 : vector<8x32xf32>
    %cst_13 = arith.constant 1.000000e+00 : f32
    %21 = vector.broadcast %cst_13 : f32 to vector<8x32xf32>
    %22 = arith.addf %21, %20 : vector<8x32xf32>
    %23 = arith.divf %21, %22 : vector<8x32xf32>
    %24 = vector.extract_strided_slice %11 {offsets = [0, 32], sizes = [8, 32], strides = [1, 1]} : vector<8x96xf32> to vector<8x32xf32>
    %25 = vector.extract_strided_slice %15 {offsets = [0, 32], sizes = [8, 32], strides = [1, 1]} : vector<8x96xf32> to vector<8x32xf32>
    %26 = arith.addf %24, %25 : vector<8x32xf32>
    %27 = arith.negf %26 : vector<8x32xf32>
    %28 = math.exp %27 : vector<8x32xf32>
    %cst_14 = arith.constant 1.000000e+00 : f32
    %29 = vector.broadcast %cst_14 : f32 to vector<8x32xf32>
    %30 = arith.addf %29, %28 : vector<8x32xf32>
    %31 = arith.divf %29, %30 : vector<8x32xf32>
    %32 = vector.extract_strided_slice %11 {offsets = [0, 64], sizes = [8, 32], strides = [1, 1]} : vector<8x96xf32> to vector<8x32xf32>
    %33 = vector.extract_strided_slice %15 {offsets = [0, 64], sizes = [8, 32], strides = [1, 1]} : vector<8x96xf32> to vector<8x32xf32>
    %34 = arith.mulf %23, %33 : vector<8x32xf32>
    %35 = arith.addf %32, %34 : vector<8x32xf32>
    %36 = math.tanh %35 : vector<8x32xf32>
    %cst_15 = arith.constant 1.000000e+00 : f32
    %37 = vector.broadcast %cst_15 : f32 to vector<8x32xf32>
    %38 = arith.subf %37, %31 : vector<8x32xf32>
    %39 = arith.mulf %38, %36 : vector<8x32xf32>
    %40 = arith.mulf %31, %5 : vector<8x32xf32>
    %41 = arith.addf %39, %40 : vector<8x32xf32>
    %42 = vector.broadcast %c0_i32 : i32 to vector<8x1xi32>
    %43 = arith.cmpi sle, %42, %4 : vector<8x1xi32>
    %44 = vector.shape_cast %43 : vector<8x1xi1> to vector<8x1xi1>
    %45 = vector.broadcast %44 : vector<8x1xi1> to vector<8x32xi1>
    %46 = arith.select %45, %41, %5 : vector<8x32xi1>, vector<8x32xf32>
    %c1_i32 = arith.constant 1 : i32
    %47 = arith.index_cast %c1_i32 : i32 to index
    %c0_16 = arith.constant 0 : index
    %c0_17 = arith.constant 0 : index
    %48 = vector.load %arg1[%47, %c0_16, %c0_17] : memref<6x8x32xbf16, #tpu.memory_space<vmem>>, vector<1x8x32xbf16>
    %49 = vector.shape_cast %48 : vector<1x8x32xbf16> to vector<8x32xbf16>
    %cst_18 = arith.constant dense<0.000000e+00> : vector<8x96xf32>
    %50 = tpu.matmul %49, %0, %cst_18 {dimension_numbers = #tpu.dot_dimension_numbers<[1], [0], [0], [1], [0, 0, 1, 1], [], []>} : vector<8x32xbf16>, vector<32x96xbf16>, vector<8x96xf32> -> vector<8x96xf32>
    %51 = vector.broadcast %2 : vector<1x96xf32> to vector<8x96xf32>
    %52 = arith.addf %50, %51 : vector<8x96xf32>
    %53 = arith.truncf %46 : vector<8x32xf32> to vector<8x32xbf16>
    %cst_19 = arith.constant dense<0.000000e+00> : vector<8x96xf32>
    %54 = tpu.matmul %53, %1, %cst_19 {dimension_numbers = #tpu.dot_dimension_numbers<[1], [0], [0], [1], [0, 0, 1, 1], [], []>} : vector<8x32xbf16>, vector<32x96xbf16>, vector<8x96xf32> -> vector<8x96xf32>
    %55 = vector.broadcast %3 : vector<1x96xf32> to vector<8x96xf32>
    %56 = arith.addf %54, %55 : vector<8x96xf32>
    %57 = vector.extract_strided_slice %52 {offsets = [0, 0], sizes = [8, 32], strides = [1, 1]} : vector<8x96xf32> to vector<8x32xf32>
    %58 = vector.extract_strided_slice %56 {offsets = [0, 0], sizes = [8, 32], strides = [1, 1]} : vector<8x96xf32> to vector<8x32xf32>
    %59 = arith.addf %57, %58 : vector<8x32xf32>
    %60 = arith.negf %59 : vector<8x32xf32>
    %61 = math.exp %60 : vector<8x32xf32>
    %cst_20 = arith.constant 1.000000e+00 : f32
    %62 = vector.broadcast %cst_20 : f32 to vector<8x32xf32>
    %63 = arith.addf %62, %61 : vector<8x32xf32>
    %64 = arith.divf %62, %63 : vector<8x32xf32>
    %65 = vector.extract_strided_slice %52 {offsets = [0, 32], sizes = [8, 32], strides = [1, 1]} : vector<8x96xf32> to vector<8x32xf32>
    %66 = vector.extract_strided_slice %56 {offsets = [0, 32], sizes = [8, 32], strides = [1, 1]} : vector<8x96xf32> to vector<8x32xf32>
    %67 = arith.addf %65, %66 : vector<8x32xf32>
    %68 = arith.negf %67 : vector<8x32xf32>
    %69 = math.exp %68 : vector<8x32xf32>
    %cst_21 = arith.constant 1.000000e+00 : f32
    %70 = vector.broadcast %cst_21 : f32 to vector<8x32xf32>
    %71 = arith.addf %70, %69 : vector<8x32xf32>
    %72 = arith.divf %70, %71 : vector<8x32xf32>
    %73 = vector.extract_strided_slice %52 {offsets = [0, 64], sizes = [8, 32], strides = [1, 1]} : vector<8x96xf32> to vector<8x32xf32>
    %74 = vector.extract_strided_slice %56 {offsets = [0, 64], sizes = [8, 32], strides = [1, 1]} : vector<8x96xf32> to vector<8x32xf32>
    %75 = arith.mulf %64, %74 : vector<8x32xf32>
    %76 = arith.addf %73, %75 : vector<8x32xf32>
    %77 = math.tanh %76 : vector<8x32xf32>
    %cst_22 = arith.constant 1.000000e+00 : f32
    %78 = vector.broadcast %cst_22 : f32 to vector<8x32xf32>
    %79 = arith.subf %78, %72 : vector<8x32xf32>
    %80 = arith.mulf %79, %77 : vector<8x32xf32>
    %81 = arith.mulf %72, %46 : vector<8x32xf32>
    %82 = arith.addf %80, %81 : vector<8x32xf32>
    %83 = vector.broadcast %c1_i32 : i32 to vector<8x1xi32>
    %84 = arith.cmpi sle, %83, %4 : vector<8x1xi32>
    %85 = vector.shape_cast %84 : vector<8x1xi1> to vector<8x1xi1>
    %86 = vector.broadcast %85 : vector<8x1xi1> to vector<8x32xi1>
    %87 = arith.select %86, %82, %46 : vector<8x32xi1>, vector<8x32xf32>
    %c2_i32 = arith.constant 2 : i32
    %88 = arith.index_cast %c2_i32 : i32 to index
    %c0_23 = arith.constant 0 : index
    %c0_24 = arith.constant 0 : index
    %89 = vector.load %arg1[%88, %c0_23, %c0_24] : memref<6x8x32xbf16, #tpu.memory_space<vmem>>, vector<1x8x32xbf16>
    %90 = vector.shape_cast %89 : vector<1x8x32xbf16> to vector<8x32xbf16>
    %cst_25 = arith.constant dense<0.000000e+00> : vector<8x96xf32>
    %91 = tpu.matmul %90, %0, %cst_25 {dimension_numbers = #tpu.dot_dimension_numbers<[1], [0], [0], [1], [0, 0, 1, 1], [], []>} : vector<8x32xbf16>, vector<32x96xbf16>, vector<8x96xf32> -> vector<8x96xf32>
    %92 = vector.broadcast %2 : vector<1x96xf32> to vector<8x96xf32>
    %93 = arith.addf %91, %92 : vector<8x96xf32>
    %94 = arith.truncf %87 : vector<8x32xf32> to vector<8x32xbf16>
    %cst_26 = arith.constant dense<0.000000e+00> : vector<8x96xf32>
    %95 = tpu.matmul %94, %1, %cst_26 {dimension_numbers = #tpu.dot_dimension_numbers<[1], [0], [0], [1], [0, 0, 1, 1], [], []>} : vector<8x32xbf16>, vector<32x96xbf16>, vector<8x96xf32> -> vector<8x96xf32>
    %96 = vector.broadcast %3 : vector<1x96xf32> to vector<8x96xf32>
    %97 = arith.addf %95, %96 : vector<8x96xf32>
    %98 = vector.extract_strided_slice %93 {offsets = [0, 0], sizes = [8, 32], strides = [1, 1]} : vector<8x96xf32> to vector<8x32xf32>
    %99 = vector.extract_strided_slice %97 {offsets = [0, 0], sizes = [8, 32], strides = [1, 1]} : vector<8x96xf32> to vector<8x32xf32>
    %100 = arith.addf %98, %99 : vector<8x32xf32>
    %101 = arith.negf %100 : vector<8x32xf32>
    %102 = math.exp %101 : vector<8x32xf32>
    %cst_27 = arith.constant 1.000000e+00 : f32
    %103 = vector.broadcast %cst_27 : f32 to vector<8x32xf32>
    %104 = arith.addf %103, %102 : vector<8x32xf32>
    %105 = arith.divf %103, %104 : vector<8x32xf32>
    %106 = vector.extract_strided_slice %93 {offsets = [0, 32], sizes = [8, 32], strides = [1, 1]} : vector<8x96xf32> to vector<8x32xf32>
    %107 = vector.extract_strided_slice %97 {offsets = [0, 32], sizes = [8, 32], strides = [1, 1]} : vector<8x96xf32> to vector<8x32xf32>
    %108 = arith.addf %106, %107 : vector<8x32xf32>
    %109 = arith.negf %108 : vector<8x32xf32>
    %110 = math.exp %109 : vector<8x32xf32>
    %cst_28 = arith.constant 1.000000e+00 : f32
    %111 = vector.broadcast %cst_28 : f32 to vector<8x32xf32>
    %112 = arith.addf %111, %110 : vector<8x32xf32>
    %113 = arith.divf %111, %112 : vector<8x32xf32>
    %114 = vector.extract_strided_slice %93 {offsets = [0, 64], sizes = [8, 32], strides = [1, 1]} : vector<8x96xf32> to vector<8x32xf32>
    %115 = vector.extract_strided_slice %97 {offsets = [0, 64], sizes = [8, 32], strides = [1, 1]} : vector<8x96xf32> to vector<8x32xf32>
    %116 = arith.mulf %105, %115 : vector<8x32xf32>
    %117 = arith.addf %114, %116 : vector<8x32xf32>
    %118 = math.tanh %117 : vector<8x32xf32>
    %cst_29 = arith.constant 1.000000e+00 : f32
    %119 = vector.broadcast %cst_29 : f32 to vector<8x32xf32>
    %120 = arith.subf %119, %113 : vector<8x32xf32>
    %121 = arith.mulf %120, %118 : vector<8x32xf32>
    %122 = arith.mulf %113, %87 : vector<8x32xf32>
    %123 = arith.addf %121, %122 : vector<8x32xf32>
    %124 = vector.broadcast %c2_i32 : i32 to vector<8x1xi32>
    %125 = arith.cmpi sle, %124, %4 : vector<8x1xi32>
    %126 = vector.shape_cast %125 : vector<8x1xi1> to vector<8x1xi1>
    %127 = vector.broadcast %126 : vector<8x1xi1> to vector<8x32xi1>
    %128 = arith.select %127, %123, %87 : vector<8x32xi1>, vector<8x32xf32>
    %c3_i32 = arith.constant 3 : i32
    %129 = arith.index_cast %c3_i32 : i32 to index
    %c0_30 = arith.constant 0 : index
    %c0_31 = arith.constant 0 : index
    %130 = vector.load %arg1[%129, %c0_30, %c0_31] : memref<6x8x32xbf16, #tpu.memory_space<vmem>>, vector<1x8x32xbf16>
    %131 = vector.shape_cast %130 : vector<1x8x32xbf16> to vector<8x32xbf16>
    %cst_32 = arith.constant dense<0.000000e+00> : vector<8x96xf32>
    %132 = tpu.matmul %131, %0, %cst_32 {dimension_numbers = #tpu.dot_dimension_numbers<[1], [0], [0], [1], [0, 0, 1, 1], [], []>} : vector<8x32xbf16>, vector<32x96xbf16>, vector<8x96xf32> -> vector<8x96xf32>
    %133 = vector.broadcast %2 : vector<1x96xf32> to vector<8x96xf32>
    %134 = arith.addf %132, %133 : vector<8x96xf32>
    %135 = arith.truncf %128 : vector<8x32xf32> to vector<8x32xbf16>
    %cst_33 = arith.constant dense<0.000000e+00> : vector<8x96xf32>
    %136 = tpu.matmul %135, %1, %cst_33 {dimension_numbers = #tpu.dot_dimension_numbers<[1], [0], [0], [1], [0, 0, 1, 1], [], []>} : vector<8x32xbf16>, vector<32x96xbf16>, vector<8x96xf32> -> vector<8x96xf32>
    %137 = vector.broadcast %3 : vector<1x96xf32> to vector<8x96xf32>
    %138 = arith.addf %136, %137 : vector<8x96xf32>
    %139 = vector.extract_strided_slice %134 {offsets = [0, 0], sizes = [8, 32], strides = [1, 1]} : vector<8x96xf32> to vector<8x32xf32>
    %140 = vector.extract_strided_slice %138 {offsets = [0, 0], sizes = [8, 32], strides = [1, 1]} : vector<8x96xf32> to vector<8x32xf32>
    %141 = arith.addf %139, %140 : vector<8x32xf32>
    %142 = arith.negf %141 : vector<8x32xf32>
    %143 = math.exp %142 : vector<8x32xf32>
    %cst_34 = arith.constant 1.000000e+00 : f32
    %144 = vector.broadcast %cst_34 : f32 to vector<8x32xf32>
    %145 = arith.addf %144, %143 : vector<8x32xf32>
    %146 = arith.divf %144, %145 : vector<8x32xf32>
    %147 = vector.extract_strided_slice %134 {offsets = [0, 32], sizes = [8, 32], strides = [1, 1]} : vector<8x96xf32> to vector<8x32xf32>
    %148 = vector.extract_strided_slice %138 {offsets = [0, 32], sizes = [8, 32], strides = [1, 1]} : vector<8x96xf32> to vector<8x32xf32>
    %149 = arith.addf %147, %148 : vector<8x32xf32>
    %150 = arith.negf %149 : vector<8x32xf32>
    %151 = math.exp %150 : vector<8x32xf32>
    %cst_35 = arith.constant 1.000000e+00 : f32
    %152 = vector.broadcast %cst_35 : f32 to vector<8x32xf32>
    %153 = arith.addf %152, %151 : vector<8x32xf32>
    %154 = arith.divf %152, %153 : vector<8x32xf32>
    %155 = vector.extract_strided_slice %134 {offsets = [0, 64], sizes = [8, 32], strides = [1, 1]} : vector<8x96xf32> to vector<8x32xf32>
    %156 = vector.extract_strided_slice %138 {offsets = [0, 64], sizes = [8, 32], strides = [1, 1]} : vector<8x96xf32> to vector<8x32xf32>
    %157 = arith.mulf %146, %156 : vector<8x32xf32>
    %158 = arith.addf %155, %157 : vector<8x32xf32>
    %159 = math.tanh %158 : vector<8x32xf32>
    %cst_36 = arith.constant 1.000000e+00 : f32
    %160 = vector.broadcast %cst_36 : f32 to vector<8x32xf32>
    %161 = arith.subf %160, %154 : vector<8x32xf32>
    %162 = arith.mulf %161, %159 : vector<8x32xf32>
    %163 = arith.mulf %154, %128 : vector<8x32xf32>
    %164 = arith.addf %162, %163 : vector<8x32xf32>
    %165 = vector.broadcast %c3_i32 : i32 to vector<8x1xi32>
    %166 = arith.cmpi sle, %165, %4 : vector<8x1xi32>
    %167 = vector.shape_cast %166 : vector<8x1xi1> to vector<8x1xi1>
    %168 = vector.broadcast %167 : vector<8x1xi1> to vector<8x32xi1>
    %169 = arith.select %168, %164, %128 : vector<8x32xi1>, vector<8x32xf32>
    %c4_i32 = arith.constant 4 : i32
    %170 = arith.index_cast %c4_i32 : i32 to index
    %c0_37 = arith.constant 0 : index
    %c0_38 = arith.constant 0 : index
    %171 = vector.load %arg1[%170, %c0_37, %c0_38] : memref<6x8x32xbf16, #tpu.memory_space<vmem>>, vector<1x8x32xbf16>
    %172 = vector.shape_cast %171 : vector<1x8x32xbf16> to vector<8x32xbf16>
    %cst_39 = arith.constant dense<0.000000e+00> : vector<8x96xf32>
    %173 = tpu.matmul %172, %0, %cst_39 {dimension_numbers = #tpu.dot_dimension_numbers<[1], [0], [0], [1], [0, 0, 1, 1], [], []>} : vector<8x32xbf16>, vector<32x96xbf16>, vector<8x96xf32> -> vector<8x96xf32>
    %174 = vector.broadcast %2 : vector<1x96xf32> to vector<8x96xf32>
    %175 = arith.addf %173, %174 : vector<8x96xf32>
    %176 = arith.truncf %169 : vector<8x32xf32> to vector<8x32xbf16>
    %cst_40 = arith.constant dense<0.000000e+00> : vector<8x96xf32>
    %177 = tpu.matmul %176, %1, %cst_40 {dimension_numbers = #tpu.dot_dimension_numbers<[1], [0], [0], [1], [0, 0, 1, 1], [], []>} : vector<8x32xbf16>, vector<32x96xbf16>, vector<8x96xf32> -> vector<8x96xf32>
    %178 = vector.broadcast %3 : vector<1x96xf32> to vector<8x96xf32>
    %179 = arith.addf %177, %178 : vector<8x96xf32>
    %180 = vector.extract_strided_slice %175 {offsets = [0, 0], sizes = [8, 32], strides = [1, 1]} : vector<8x96xf32> to vector<8x32xf32>
    %181 = vector.extract_strided_slice %179 {offsets = [0, 0], sizes = [8, 32], strides = [1, 1]} : vector<8x96xf32> to vector<8x32xf32>
    %182 = arith.addf %180, %181 : vector<8x32xf32>
    %183 = arith.negf %182 : vector<8x32xf32>
    %184 = math.exp %183 : vector<8x32xf32>
    %cst_41 = arith.constant 1.000000e+00 : f32
    %185 = vector.broadcast %cst_41 : f32 to vector<8x32xf32>
    %186 = arith.addf %185, %184 : vector<8x32xf32>
    %187 = arith.divf %185, %186 : vector<8x32xf32>
    %188 = vector.extract_strided_slice %175 {offsets = [0, 32], sizes = [8, 32], strides = [1, 1]} : vector<8x96xf32> to vector<8x32xf32>
    %189 = vector.extract_strided_slice %179 {offsets = [0, 32], sizes = [8, 32], strides = [1, 1]} : vector<8x96xf32> to vector<8x32xf32>
    %190 = arith.addf %188, %189 : vector<8x32xf32>
    %191 = arith.negf %190 : vector<8x32xf32>
    %192 = math.exp %191 : vector<8x32xf32>
    %cst_42 = arith.constant 1.000000e+00 : f32
    %193 = vector.broadcast %cst_42 : f32 to vector<8x32xf32>
    %194 = arith.addf %193, %192 : vector<8x32xf32>
    %195 = arith.divf %193, %194 : vector<8x32xf32>
    %196 = vector.extract_strided_slice %175 {offsets = [0, 64], sizes = [8, 32], strides = [1, 1]} : vector<8x96xf32> to vector<8x32xf32>
    %197 = vector.extract_strided_slice %179 {offsets = [0, 64], sizes = [8, 32], strides = [1, 1]} : vector<8x96xf32> to vector<8x32xf32>
    %198 = arith.mulf %187, %197 : vector<8x32xf32>
    %199 = arith.addf %196, %198 : vector<8x32xf32>
    %200 = math.tanh %199 : vector<8x32xf32>
    %cst_43 = arith.constant 1.000000e+00 : f32
    %201 = vector.broadcast %cst_43 : f32 to vector<8x32xf32>
    %202 = arith.subf %201, %195 : vector<8x32xf32>
    %203 = arith.mulf %202, %200 : vector<8x32xf32>
    %204 = arith.mulf %195, %169 : vector<8x32xf32>
    %205 = arith.addf %203, %204 : vector<8x32xf32>
    %206 = vector.broadcast %c4_i32 : i32 to vector<8x1xi32>
    %207 = arith.cmpi sle, %206, %4 : vector<8x1xi32>
    %208 = vector.shape_cast %207 : vector<8x1xi1> to vector<8x1xi1>
    %209 = vector.broadcast %208 : vector<8x1xi1> to vector<8x32xi1>
    %210 = arith.select %209, %205, %169 : vector<8x32xi1>, vector<8x32xf32>
    %c5_i32 = arith.constant 5 : i32
    %211 = arith.index_cast %c5_i32 : i32 to index
    %c0_44 = arith.constant 0 : index
    %c0_45 = arith.constant 0 : index
    %212 = vector.load %arg1[%211, %c0_44, %c0_45] : memref<6x8x32xbf16, #tpu.memory_space<vmem>>, vector<1x8x32xbf16>
    %213 = vector.shape_cast %212 : vector<1x8x32xbf16> to vector<8x32xbf16>
    %cst_46 = arith.constant dense<0.000000e+00> : vector<8x96xf32>
    %214 = tpu.matmul %213, %0, %cst_46 {dimension_numbers = #tpu.dot_dimension_numbers<[1], [0], [0], [1], [0, 0, 1, 1], [], []>} : vector<8x32xbf16>, vector<32x96xbf16>, vector<8x96xf32> -> vector<8x96xf32>
    %215 = vector.broadcast %2 : vector<1x96xf32> to vector<8x96xf32>
    %216 = arith.addf %214, %215 : vector<8x96xf32>
    %217 = arith.truncf %210 : vector<8x32xf32> to vector<8x32xbf16>
    %cst_47 = arith.constant dense<0.000000e+00> : vector<8x96xf32>
    %218 = tpu.matmul %217, %1, %cst_47 {dimension_numbers = #tpu.dot_dimension_numbers<[1], [0], [0], [1], [0, 0, 1, 1], [], []>} : vector<8x32xbf16>, vector<32x96xbf16>, vector<8x96xf32> -> vector<8x96xf32>
    %219 = vector.broadcast %3 : vector<1x96xf32> to vector<8x96xf32>
    %220 = arith.addf %218, %219 : vector<8x96xf32>
    %221 = vector.extract_strided_slice %216 {offsets = [0, 0], sizes = [8, 32], strides = [1, 1]} : vector<8x96xf32> to vector<8x32xf32>
    %222 = vector.extract_strided_slice %220 {offsets = [0, 0], sizes = [8, 32], strides = [1, 1]} : vector<8x96xf32> to vector<8x32xf32>
    %223 = arith.addf %221, %222 : vector<8x32xf32>
    %224 = arith.negf %223 : vector<8x32xf32>
    %225 = math.exp %224 : vector<8x32xf32>
    %cst_48 = arith.constant 1.000000e+00 : f32
    %226 = vector.broadcast %cst_48 : f32 to vector<8x32xf32>
    %227 = arith.addf %226, %225 : vector<8x32xf32>
    %228 = arith.divf %226, %227 : vector<8x32xf32>
    %229 = vector.extract_strided_slice %216 {offsets = [0, 32], sizes = [8, 32], strides = [1, 1]} : vector<8x96xf32> to vector<8x32xf32>
    %230 = vector.extract_strided_slice %220 {offsets = [0, 32], sizes = [8, 32], strides = [1, 1]} : vector<8x96xf32> to vector<8x32xf32>
    %231 = arith.addf %229, %230 : vector<8x32xf32>
    %232 = arith.negf %231 : vector<8x32xf32>
    %233 = math.exp %232 : vector<8x32xf32>
    %cst_49 = arith.constant 1.000000e+00 : f32
    %234 = vector.broadcast %cst_49 : f32 to vector<8x32xf32>
    %235 = arith.addf %234, %233 : vector<8x32xf32>
    %236 = arith.divf %234, %235 : vector<8x32xf32>
    %237 = vector.extract_strided_slice %216 {offsets = [0, 64], sizes = [8, 32], strides = [1, 1]} : vector<8x96xf32> to vector<8x32xf32>
    %238 = vector.extract_strided_slice %220 {offsets = [0, 64], sizes = [8, 32], strides = [1, 1]} : vector<8x96xf32> to vector<8x32xf32>
    %239 = arith.mulf %228, %238 : vector<8x32xf32>
    %240 = arith.addf %237, %239 : vector<8x32xf32>
    %241 = math.tanh %240 : vector<8x32xf32>
    %cst_50 = arith.constant 1.000000e+00 : f32
    %242 = vector.broadcast %cst_50 : f32 to vector<8x32xf32>
    %243 = arith.subf %242, %236 : vector<8x32xf32>
    %244 = arith.mulf %243, %241 : vector<8x32xf32>
    %245 = arith.mulf %236, %210 : vector<8x32xf32>
    %246 = arith.addf %244, %245 : vector<8x32xf32>
    %247 = vector.broadcast %c5_i32 : i32 to vector<8x1xi32>
    %248 = arith.cmpi sle, %247, %4 : vector<8x1xi32>
    %249 = vector.shape_cast %248 : vector<8x1xi1> to vector<8x1xi1>
    %250 = vector.broadcast %249 : vector<8x1xi1> to vector<8x32xi1>
    %251 = arith.select %250, %246, %210 : vector<8x32xi1>, vector<8x32xf32>
    %c6_i32 = arith.constant 6 : i32
    %c0_51 = arith.constant 0 : index
    %c0_52 = arith.constant 0 : index
    %252 = vector.load %arg7[%c0_51, %c0_52] : memref<8x32xf32, #tpu.memory_space<vmem>>, vector<8x32xf32>
    tpu.vector_store %arg7[%c0_51, %c0_52], %251 {strides = array<i32>} : memref<8x32xf32, #tpu.memory_space<vmem>>, vector<8x32xf32>,
    return
  }
  func.func @transform_0(%arg0: i32) -> (i32, i32, i32) {
    %c0_i32 = arith.constant 0 : i32
    %c0_i32_0 = arith.constant 0 : i32
    %c0_i32_1 = arith.constant 0 : i32
    return %c0_i32, %arg0, %c0_i32_0 : i32, i32, i32
  }
  func.func @transform_1(%arg0: i32) -> (i32, i32) {
    %c0_i32 = arith.constant 0 : i32
    %c0_i32_0 = arith.constant 0 : i32
    return %arg0, %c0_i32 : i32, i32
  }
  func.func @transform_2(%arg0: i32) -> (i32, i32) {
    %c0_i32 = arith.constant 0 : i32
    %c0_i32_0 = arith.constant 0 : i32
    %c0_i32_1 = arith.constant 0 : i32
    return %c0_i32, %c0_i32_0 : i32, i32
  }
  func.func @transform_3(%arg0: i32) -> (i32, i32) {
    %c0_i32 = arith.constant 0 : i32
    %c0_i32_0 = arith.constant 0 : i32
    %c0_i32_1 = arith.constant 0 : i32
    return %c0_i32, %c0_i32_0 : i32, i32
  }
  func.func @transform_4(%arg0: i32) -> (i32, i32) {
    %c0_i32 = arith.constant 0 : i32
    %c0_i32_0 = arith.constant 0 : i32
    %c0_i32_1 = arith.constant 0 : i32
    return %c0_i32, %c0_i32_0 : i32, i32
  }
  func.func @transform_5(%arg0: i32) -> (i32, i32) {
    %c0_i32 = arith.constant 0 : i32
    %c0_i32_0 = arith.constant 0 : i32
    %c0_i32_1 = arith.constant 0 : i32
    return %c0_i32, %c0_i32_0 : i32, i32
  }
  func.func @transform_6(%arg0: i32) -> (i32, i32) {
    %c0_i32 = arith.constant 0 : i32
    %c0_i32_0 = arith.constant 0 : i32
    return %arg0, %c0_i32 : i32, i32
  }
}

module attributes {stable_mosaic.version = 11 : i64} {
  func.func @gru_encode_kernel(%arg0: i32, %arg1: memref<5x8x32xbf16, #tpu.memory_space<vmem>>, %arg2: memref<8x1xi32, #tpu.memory_space<vmem>>, %arg3: memref<32x96xbf16, #tpu.memory_space<vmem>>, %arg4: memref<32x96xbf16, #tpu.memory_space<vmem>>, %arg5: memref<1x96xf32, #tpu.memory_space<vmem>>, %arg6: memref<1x96xf32, #tpu.memory_space<vmem>>, %arg7: memref<8x32xf32, #tpu.memory_space<vmem>>) attributes {dimension_semantics = [#tpu.dimension_semantics<parallel>], iteration_bounds = array<i64: 1>, scalar_prefetch = 0 : i64, scratch_operands = 0 : i64, tpu.core_type = #tpu.core_type<tc>, window_params = [{transform_indices = @transform_0, window_bounds = array<i64: 5, 8, 32>}, {transform_indices = @transform_1, window_bounds = array<i64: 8, 1>}, {pipeline_mode = #tpu.pipeline_mode<synchronous>, transform_indices = @transform_2, window_bounds = array<i64: 32, 96>}, {pipeline_mode = #tpu.pipeline_mode<synchronous>, transform_indices = @transform_3, window_bounds = array<i64: 32, 96>}, {pipeline_mode = #tpu.pipeline_mode<synchronous>, transform_indices = @transform_4, window_bounds = array<i64: 1, 96>}, {pipeline_mode = #tpu.pipeline_mode<synchronous>, transform_indices = @transform_5, window_bounds = array<i64: 1, 96>}, {transform_indices = @transform_6, window_bounds = array<i64: 8, 32>}]} {
    %c0 = arith.constant 0 : index
    %c0_0 = arith.constant 0 : index
    %0 = vector.load %arg3[%c0, %c0_0] : memref<32x96xbf16, #tpu.memory_space<vmem>>, vector<32x96xbf16>
    %c0_1 = arith.constant 0 : index
    %c0_2 = arith.constant 0 : index
    %1 = vector.load %arg4[%c0_1, %c0_2] : memref<32x96xbf16, #tpu.memory_space<vmem>>, vector<32x96xbf16>
    %c0_3 = arith.constant 0 : index
    %c0_4 = arith.constant 0 : index
    %2 = vector.load %arg5[%c0_3, %c0_4] : memref<1x96xf32, #tpu.memory_space<vmem>>, vector<1x96xf32>
    %c0_5 = arith.constant 0 : index
    %c0_6 = arith.constant 0 : index
    %3 = vector.load %arg6[%c0_5, %c0_6] : memref<1x96xf32, #tpu.memory_space<vmem>>, vector<1x96xf32>
    %c0_7 = arith.constant 0 : index
    %c0_8 = arith.constant 0 : index
    %4 = vector.load %arg2[%c0_7, %c0_8] : memref<8x1xi32, #tpu.memory_space<vmem>>, vector<8x1xi32>
    %cst = arith.constant 0.000000e+00 : f32
    %5 = vector.broadcast %cst : f32 to vector<8x32xf32>
    %c0_i32 = arith.constant 0 : i32
    %6 = arith.index_cast %c0_i32 : i32 to index
    %c0_9 = arith.constant 0 : index
    %c0_10 = arith.constant 0 : index
    %7 = vector.load %arg1[%6, %c0_9, %c0_10] : memref<5x8x32xbf16, #tpu.memory_space<vmem>>, vector<1x8x32xbf16>
    %8 = vector.shape_cast %7 : vector<1x8x32xbf16> to vector<8x32xbf16>
    %cst_11 = arith.constant dense<0.000000e+00> : vector<8x96xf32>
    %9 = tpu.matmul %8, %0, %cst_11 {dimension_numbers = #tpu.dot_dimension_numbers<[1], [0], [0], [1], [0, 0, 1, 1], [], []>} : vector<8x32xbf16>, vector<32x96xbf16>, vector<8x96xf32> -> vector<8x96xf32>
    %10 = vector.broadcast %2 : vector<1x96xf32> to vector<8x96xf32>
    %11 = arith.addf %9, %10 : vector<8x96xf32>
    %12 = arith.truncf %5 : vector<8x32xf32> to vector<8x32xbf16>
    %cst_12 = arith.constant dense<0.000000e+00> : vector<8x96xf32>
    %13 = tpu.matmul %12, %1, %cst_12 {dimension_numbers = #tpu.dot_dimension_numbers<[1], [0], [0], [1], [0, 0, 1, 1], [], []>} : vector<8x32xbf16>, vector<32x96xbf16>, vector<8x96xf32> -> vector<8x96xf32>
    %14 = vector.broadcast %3 : vector<1x96xf32> to vector<8x96xf32>
    %15 = arith.addf %13, %14 : vector<8x96xf32>
    %16 = vector.extract_strided_slice %11 {offsets = [0, 0], sizes = [8, 32], strides = [1, 1]} : vector<8x96xf32> to vector<8x32xf32>
    %17 = vector.extract_strided_slice %15 {offsets = [0, 0], sizes = [8, 32], strides = [1, 1]} : vector<8x96xf32> to vector<8x32xf32>
    %18 = arith.addf %16, %17 : vector<8x32xf32>
    %19 = arith.negf %18 : vector<8x32xf32>
    %20 = math.exp %19 : vector<8x32xf32>
    %cst_13 = arith.constant 1.000000e+00 : f32
    %21 = vector.broadcast %cst_13 : f32 to vector<8x32xf32>
    %22 = arith.addf %21, %20 : vector<8x32xf32>
    %23 = arith.divf %21, %22 : vector<8x32xf32>
    %24 = vector.extract_strided_slice %11 {offsets = [0, 32], sizes = [8, 32], strides = [1, 1]} : vector<8x96xf32> to vector<8x32xf32>
    %25 = vector.extract_strided_slice %15 {offsets = [0, 32], sizes = [8, 32], strides = [1, 1]} : vector<8x96xf32> to vector<8x32xf32>
    %26 = arith.addf %24, %25 : vector<8x32xf32>
    %27 = arith.negf %26 : vector<8x32xf32>
    %28 = math.exp %27 : vector<8x32xf32>
    %cst_14 = arith.constant 1.000000e+00 : f32
    %29 = vector.broadcast %cst_14 : f32 to vector<8x32xf32>
    %30 = arith.addf %29, %28 : vector<8x32xf32>
    %31 = arith.divf %29, %30 : vector<8x32xf32>
    %32 = vector.extract_strided_slice %11 {offsets = [0, 64], sizes = [8, 32], strides = [1, 1]} : vector<8x96xf32> to vector<8x32xf32>
    %33 = vector.extract_strided_slice %15 {offsets = [0, 64], sizes = [8, 32], strides = [1, 1]} : vector<8x96xf32> to vector<8x32xf32>
    %34 = arith.mulf %23, %33 : vector<8x32xf32>
    %35 = arith.addf %32, %34 : vector<8x32xf32>
    %36 = math.tanh %35 : vector<8x32xf32>
    %cst_15 = arith.constant 1.000000e+00 : f32
    %37 = vector.broadcast %cst_15 : f32 to vector<8x32xf32>
    %38 = arith.subf %37, %31 : vector<8x32xf32>
    %39 = arith.mulf %38, %36 : vector<8x32xf32>
    %40 = arith.mulf %31, %5 : vector<8x32xf32>
    %41 = arith.addf %39, %40 : vector<8x32xf32>
    %42 = vector.broadcast %c0_i32 : i32 to vector<8x1xi32>
    %43 = arith.cmpi sle, %42, %4 : vector<8x1xi32>
    %44 = vector.shape_cast %43 : vector<8x1xi1> to vector<8x1xi1>
    %45 = vector.broadcast %44 : vector<8x1xi1> to vector<8x32xi1>
    %46 = arith.select %45, %41, %5 : vector<8x32xi1>, vector<8x32xf32>
    %c1_i32 = arith.constant 1 : i32
    %47 = arith.index_cast %c1_i32 : i32 to index
    %c0_16 = arith.constant 0 : index
    %c0_17 = arith.constant 0 : index
    %48 = vector.load %arg1[%47, %c0_16, %c0_17] : memref<5x8x32xbf16, #tpu.memory_space<vmem>>, vector<1x8x32xbf16>
    %49 = vector.shape_cast %48 : vector<1x8x32xbf16> to vector<8x32xbf16>
    %cst_18 = arith.constant dense<0.000000e+00> : vector<8x96xf32>
    %50 = tpu.matmul %49, %0, %cst_18 {dimension_numbers = #tpu.dot_dimension_numbers<[1], [0], [0], [1], [0, 0, 1, 1], [], []>} : vector<8x32xbf16>, vector<32x96xbf16>, vector<8x96xf32> -> vector<8x96xf32>
    %51 = vector.broadcast %2 : vector<1x96xf32> to vector<8x96xf32>
    %52 = arith.addf %50, %51 : vector<8x96xf32>
    %53 = arith.truncf %46 : vector<8x32xf32> to vector<8x32xbf16>
    %cst_19 = arith.constant dense<0.000000e+00> : vector<8x96xf32>
    %54 = tpu.matmul %53, %1, %cst_19 {dimension_numbers = #tpu.dot_dimension_numbers<[1], [0], [0], [1], [0, 0, 1, 1], [], []>} : vector<8x32xbf16>, vector<32x96xbf16>, vector<8x96xf32> -> vector<8x96xf32>
    %55 = vector.broadcast %3 : vector<1x96xf32> to vector<8x96xf32>
    %56 = arith.addf %54, %55 : vector<8x96xf32>
    %57 = vector.extract_strided_slice %52 {offsets = [0, 0], sizes = [8, 32], strides = [1, 1]} : vector<8x96xf32> to vector<8x32xf32>
    %58 = vector.extract_strided_slice %56 {offsets = [0, 0], sizes = [8, 32], strides = [1, 1]} : vector<8x96xf32> to vector<8x32xf32>
    %59 = arith.addf %57, %58 : vector<8x32xf32>
    %60 = arith.negf %59 : vector<8x32xf32>
    %61 = math.exp %60 : vector<8x32xf32>
    %cst_20 = arith.constant 1.000000e+00 : f32
    %62 = vector.broadcast %cst_20 : f32 to vector<8x32xf32>
    %63 = arith.addf %62, %61 : vector<8x32xf32>
    %64 = arith.divf %62, %63 : vector<8x32xf32>
    %65 = vector.extract_strided_slice %52 {offsets = [0, 32], sizes = [8, 32], strides = [1, 1]} : vector<8x96xf32> to vector<8x32xf32>
    %66 = vector.extract_strided_slice %56 {offsets = [0, 32], sizes = [8, 32], strides = [1, 1]} : vector<8x96xf32> to vector<8x32xf32>
    %67 = arith.addf %65, %66 : vector<8x32xf32>
    %68 = arith.negf %67 : vector<8x32xf32>
    %69 = math.exp %68 : vector<8x32xf32>
    %cst_21 = arith.constant 1.000000e+00 : f32
    %70 = vector.broadcast %cst_21 : f32 to vector<8x32xf32>
    %71 = arith.addf %70, %69 : vector<8x32xf32>
    %72 = arith.divf %70, %71 : vector<8x32xf32>
    %73 = vector.extract_strided_slice %52 {offsets = [0, 64], sizes = [8, 32], strides = [1, 1]} : vector<8x96xf32> to vector<8x32xf32>
    %74 = vector.extract_strided_slice %56 {offsets = [0, 64], sizes = [8, 32], strides = [1, 1]} : vector<8x96xf32> to vector<8x32xf32>
    %75 = arith.mulf %64, %74 : vector<8x32xf32>
    %76 = arith.addf %73, %75 : vector<8x32xf32>
    %77 = math.tanh %76 : vector<8x32xf32>
    %cst_22 = arith.constant 1.000000e+00 : f32
    %78 = vector.broadcast %cst_22 : f32 to vector<8x32xf32>
    %79 = arith.subf %78, %72 : vector<8x32xf32>
    %80 = arith.mulf %79, %77 : vector<8x32xf32>
    %81 = arith.mulf %72, %46 : vector<8x32xf32>
    %82 = arith.addf %80, %81 : vector<8x32xf32>
    %83 = vector.broadcast %c1_i32 : i32 to vector<8x1xi32>
    %84 = arith.cmpi sle, %83, %4 : vector<8x1xi32>
    %85 = vector.shape_cast %84 : vector<8x1xi1> to vector<8x1xi1>
    %86 = vector.broadcast %85 : vector<8x1xi1> to vector<8x32xi1>
    %87 = arith.select %86, %82, %46 : vector<8x32xi1>, vector<8x32xf32>
    %c2_i32 = arith.constant 2 : i32
    %88 = arith.index_cast %c2_i32 : i32 to index
    %c0_23 = arith.constant 0 : index
    %c0_24 = arith.constant 0 : index
    %89 = vector.load %arg1[%88, %c0_23, %c0_24] : memref<5x8x32xbf16, #tpu.memory_space<vmem>>, vector<1x8x32xbf16>
    %90 = vector.shape_cast %89 : vector<1x8x32xbf16> to vector<8x32xbf16>
    %cst_25 = arith.constant dense<0.000000e+00> : vector<8x96xf32>
    %91 = tpu.matmul %90, %0, %cst_25 {dimension_numbers = #tpu.dot_dimension_numbers<[1], [0], [0], [1], [0, 0, 1, 1], [], []>} : vector<8x32xbf16>, vector<32x96xbf16>, vector<8x96xf32> -> vector<8x96xf32>
    %92 = vector.broadcast %2 : vector<1x96xf32> to vector<8x96xf32>
    %93 = arith.addf %91, %92 : vector<8x96xf32>
    %94 = arith.truncf %87 : vector<8x32xf32> to vector<8x32xbf16>
    %cst_26 = arith.constant dense<0.000000e+00> : vector<8x96xf32>
    %95 = tpu.matmul %94, %1, %cst_26 {dimension_numbers = #tpu.dot_dimension_numbers<[1], [0], [0], [1], [0, 0, 1, 1], [], []>} : vector<8x32xbf16>, vector<32x96xbf16>, vector<8x96xf32> -> vector<8x96xf32>
    %96 = vector.broadcast %3 : vector<1x96xf32> to vector<8x96xf32>
    %97 = arith.addf %95, %96 : vector<8x96xf32>
    %98 = vector.extract_strided_slice %93 {offsets = [0, 0], sizes = [8, 32], strides = [1, 1]} : vector<8x96xf32> to vector<8x32xf32>
    %99 = vector.extract_strided_slice %97 {offsets = [0, 0], sizes = [8, 32], strides = [1, 1]} : vector<8x96xf32> to vector<8x32xf32>
    %100 = arith.addf %98, %99 : vector<8x32xf32>
    %101 = arith.negf %100 : vector<8x32xf32>
    %102 = math.exp %101 : vector<8x32xf32>
    %cst_27 = arith.constant 1.000000e+00 : f32
    %103 = vector.broadcast %cst_27 : f32 to vector<8x32xf32>
    %104 = arith.addf %103, %102 : vector<8x32xf32>
    %105 = arith.divf %103, %104 : vector<8x32xf32>
    %106 = vector.extract_strided_slice %93 {offsets = [0, 32], sizes = [8, 32], strides = [1, 1]} : vector<8x96xf32> to vector<8x32xf32>
    %107 = vector.extract_strided_slice %97 {offsets = [0, 32], sizes = [8, 32], strides = [1, 1]} : vector<8x96xf32> to vector<8x32xf32>
    %108 = arith.addf %106, %107 : vector<8x32xf32>
    %109 = arith.negf %108 : vector<8x32xf32>
    %110 = math.exp %109 : vector<8x32xf32>
    %cst_28 = arith.constant 1.000000e+00 : f32
    %111 = vector.broadcast %cst_28 : f32 to vector<8x32xf32>
    %112 = arith.addf %111, %110 : vector<8x32xf32>
    %113 = arith.divf %111, %112 : vector<8x32xf32>
    %114 = vector.extract_strided_slice %93 {offsets = [0, 64], sizes = [8, 32], strides = [1, 1]} : vector<8x96xf32> to vector<8x32xf32>
    %115 = vector.extract_strided_slice %97 {offsets = [0, 64], sizes = [8, 32], strides = [1, 1]} : vector<8x96xf32> to vector<8x32xf32>
    %116 = arith.mulf %105, %115 : vector<8x32xf32>
    %117 = arith.addf %114, %116 : vector<8x32xf32>
    %118 = math.tanh %117 : vector<8x32xf32>
    %cst_29 = arith.constant 1.000000e+00 : f32
    %119 = vector.broadcast %cst_29 : f32 to vector<8x32xf32>
    %120 = arith.subf %119, %113 : vector<8x32xf32>
    %121 = arith.mulf %120, %118 : vector<8x32xf32>
    %122 = arith.mulf %113, %87 : vector<8x32xf32>
    %123 = arith.addf %121, %122 : vector<8x32xf32>
    %124 = vector.broadcast %c2_i32 : i32 to vector<8x1xi32>
    %125 = arith.cmpi sle, %124, %4 : vector<8x1xi32>
    %126 = vector.shape_cast %125 : vector<8x1xi1> to vector<8x1xi1>
    %127 = vector.broadcast %126 : vector<8x1xi1> to vector<8x32xi1>
    %128 = arith.select %127, %123, %87 : vector<8x32xi1>, vector<8x32xf32>
    %c3_i32 = arith.constant 3 : i32
    %129 = arith.index_cast %c3_i32 : i32 to index
    %c0_30 = arith.constant 0 : index
    %c0_31 = arith.constant 0 : index
    %130 = vector.load %arg1[%129, %c0_30, %c0_31] : memref<5x8x32xbf16, #tpu.memory_space<vmem>>, vector<1x8x32xbf16>
    %131 = vector.shape_cast %130 : vector<1x8x32xbf16> to vector<8x32xbf16>
    %cst_32 = arith.constant dense<0.000000e+00> : vector<8x96xf32>
    %132 = tpu.matmul %131, %0, %cst_32 {dimension_numbers = #tpu.dot_dimension_numbers<[1], [0], [0], [1], [0, 0, 1, 1], [], []>} : vector<8x32xbf16>, vector<32x96xbf16>, vector<8x96xf32> -> vector<8x96xf32>
    %133 = vector.broadcast %2 : vector<1x96xf32> to vector<8x96xf32>
    %134 = arith.addf %132, %133 : vector<8x96xf32>
    %135 = arith.truncf %128 : vector<8x32xf32> to vector<8x32xbf16>
    %cst_33 = arith.constant dense<0.000000e+00> : vector<8x96xf32>
    %136 = tpu.matmul %135, %1, %cst_33 {dimension_numbers = #tpu.dot_dimension_numbers<[1], [0], [0], [1], [0, 0, 1, 1], [], []>} : vector<8x32xbf16>, vector<32x96xbf16>, vector<8x96xf32> -> vector<8x96xf32>
    %137 = vector.broadcast %3 : vector<1x96xf32> to vector<8x96xf32>
    %138 = arith.addf %136, %137 : vector<8x96xf32>
    %139 = vector.extract_strided_slice %134 {offsets = [0, 0], sizes = [8, 32], strides = [1, 1]} : vector<8x96xf32> to vector<8x32xf32>
    %140 = vector.extract_strided_slice %138 {offsets = [0, 0], sizes = [8, 32], strides = [1, 1]} : vector<8x96xf32> to vector<8x32xf32>
    %141 = arith.addf %139, %140 : vector<8x32xf32>
    %142 = arith.negf %141 : vector<8x32xf32>
    %143 = math.exp %142 : vector<8x32xf32>
    %cst_34 = arith.constant 1.000000e+00 : f32
    %144 = vector.broadcast %cst_34 : f32 to vector<8x32xf32>
    %145 = arith.addf %144, %143 : vector<8x32xf32>
    %146 = arith.divf %144, %145 : vector<8x32xf32>
    %147 = vector.extract_strided_slice %134 {offsets = [0, 32], sizes = [8, 32], strides = [1, 1]} : vector<8x96xf32> to vector<8x32xf32>
    %148 = vector.extract_strided_slice %138 {offsets = [0, 32], sizes = [8, 32], strides = [1, 1]} : vector<8x96xf32> to vector<8x32xf32>
    %149 = arith.addf %147, %148 : vector<8x32xf32>
    %150 = arith.negf %149 : vector<8x32xf32>
    %151 = math.exp %150 : vector<8x32xf32>
    %cst_35 = arith.constant 1.000000e+00 : f32
    %152 = vector.broadcast %cst_35 : f32 to vector<8x32xf32>
    %153 = arith.addf %152, %151 : vector<8x32xf32>
    %154 = arith.divf %152, %153 : vector<8x32xf32>
    %155 = vector.extract_strided_slice %134 {offsets = [0, 64], sizes = [8, 32], strides = [1, 1]} : vector<8x96xf32> to vector<8x32xf32>
    %156 = vector.extract_strided_slice %138 {offsets = [0, 64], sizes = [8, 32], strides = [1, 1]} : vector<8x96xf32> to vector<8x32xf32>
    %157 = arith.mulf %146, %156 : vector<8x32xf32>
    %158 = arith.addf %155, %157 : vector<8x32xf32>
    %159 = math.tanh %158 : vector<8x32xf32>
    %cst_36 = arith.constant 1.000000e+00 : f32
    %160 = vector.broadcast %cst_36 : f32 to vector<8x32xf32>
    %161 = arith.subf %160, %154 : vector<8x32xf32>
    %162 = arith.mulf %161, %159 : vector<8x32xf32>
    %163 = arith.mulf %154, %128 : vector<8x32xf32>
    %164 = arith.addf %162, %163 : vector<8x32xf32>
    %165 = vector.broadcast %c3_i32 : i32 to vector<8x1xi32>
    %166 = arith.cmpi sle, %165, %4 : vector<8x1xi32>
    %167 = vector.shape_cast %166 : vector<8x1xi1> to vector<8x1xi1>
    %168 = vector.broadcast %167 : vector<8x1xi1> to vector<8x32xi1>
    %169 = arith.select %168, %164, %128 : vector<8x32xi1>, vector<8x32xf32>
    %c4_i32 = arith.constant 4 : i32
    %170 = arith.index_cast %c4_i32 : i32 to index
    %c0_37 = arith.constant 0 : index
    %c0_38 = arith.constant 0 : index
    %171 = vector.load %arg1[%170, %c0_37, %c0_38] : memref<5x8x32xbf16, #tpu.memory_space<vmem>>, vector<1x8x32xbf16>
    %172 = vector.shape_cast %171 : vector<1x8x32xbf16> to vector<8x32xbf16>
    %cst_39 = arith.constant dense<0.000000e+00> : vector<8x96xf32>
    %173 = tpu.matmul %172, %0, %cst_39 {dimension_numbers = #tpu.dot_dimension_numbers<[1], [0], [0], [1], [0, 0, 1, 1], [], []>} : vector<8x32xbf16>, vector<32x96xbf16>, vector<8x96xf32> -> vector<8x96xf32>
    %174 = vector.broadcast %2 : vector<1x96xf32> to vector<8x96xf32>
    %175 = arith.addf %173, %174 : vector<8x96xf32>
    %176 = arith.truncf %169 : vector<8x32xf32> to vector<8x32xbf16>
    %cst_40 = arith.constant dense<0.000000e+00> : vector<8x96xf32>
    %177 = tpu.matmul %176, %1, %cst_40 {dimension_numbers = #tpu.dot_dimension_numbers<[1], [0], [0], [1], [0, 0, 1, 1], [], []>} : vector<8x32xbf16>, vector<32x96xbf16>, vector<8x96xf32> -> vector<8x96xf32>
    %178 = vector.broadcast %3 : vector<1x96xf32> to vector<8x96xf32>
    %179 = arith.addf %177, %178 : vector<8x96xf32>
    %180 = vector.extract_strided_slice %175 {offsets = [0, 0], sizes = [8, 32], strides = [1, 1]} : vector<8x96xf32> to vector<8x32xf32>
    %181 = vector.extract_strided_slice %179 {offsets = [0, 0], sizes = [8, 32], strides = [1, 1]} : vector<8x96xf32> to vector<8x32xf32>
    %182 = arith.addf %180, %181 : vector<8x32xf32>
    %183 = arith.negf %182 : vector<8x32xf32>
    %184 = math.exp %183 : vector<8x32xf32>
    %cst_41 = arith.constant 1.000000e+00 : f32
    %185 = vector.broadcast %cst_41 : f32 to vector<8x32xf32>
    %186 = arith.addf %185, %184 : vector<8x32xf32>
    %187 = arith.divf %185, %186 : vector<8x32xf32>
    %188 = vector.extract_strided_slice %175 {offsets = [0, 32], sizes = [8, 32], strides = [1, 1]} : vector<8x96xf32> to vector<8x32xf32>
    %189 = vector.extract_strided_slice %179 {offsets = [0, 32], sizes = [8, 32], strides = [1, 1]} : vector<8x96xf32> to vector<8x32xf32>
    %190 = arith.addf %188, %189 : vector<8x32xf32>
    %191 = arith.negf %190 : vector<8x32xf32>
    %192 = math.exp %191 : vector<8x32xf32>
    %cst_42 = arith.constant 1.000000e+00 : f32
    %193 = vector.broadcast %cst_42 : f32 to vector<8x32xf32>
    %194 = arith.addf %193, %192 : vector<8x32xf32>
    %195 = arith.divf %193, %194 : vector<8x32xf32>
    %196 = vector.extract_strided_slice %175 {offsets = [0, 64], sizes = [8, 32], strides = [1, 1]} : vector<8x96xf32> to vector<8x32xf32>
    %197 = vector.extract_strided_slice %179 {offsets = [0, 64], sizes = [8, 32], strides = [1, 1]} : vector<8x96xf32> to vector<8x32xf32>
    %198 = arith.mulf %187, %197 : vector<8x32xf32>
    %199 = arith.addf %196, %198 : vector<8x32xf32>
    %200 = math.tanh %199 : vector<8x32xf32>
    %cst_43 = arith.constant 1.000000e+00 : f32
    %201 = vector.broadcast %cst_43 : f32 to vector<8x32xf32>
    %202 = arith.subf %201, %195 : vector<8x32xf32>
    %203 = arith.mulf %202, %200 : vector<8x32xf32>
    %204 = arith.mulf %195, %169 : vector<8x32xf32>
    %205 = arith.addf %203, %204 : vector<8x32xf32>
    %206 = vector.broadcast %c4_i32 : i32 to vector<8x1xi32>
    %207 = arith.cmpi sle, %206, %4 : vector<8x1xi32>
    %208 = vector.shape_cast %207 : vector<8x1xi1> to vector<8x1xi1>
    %209 = vector.broadcast %208 : vector<8x1xi1> to vector<8x32xi1>
    %210 = arith.select %209, %205, %169 : vector<8x32xi1>, vector<8x32xf32>
    %c5_i32 = arith.constant 5 : i32
    %c0_44 = arith.constant 0 : index
    %c0_45 = arith.constant 0 : index
    %211 = vector.load %arg7[%c0_44, %c0_45] : memref<8x32xf32, #tpu.memory_space<vmem>>, vector<8x32xf32>
    tpu.vector_store %arg7[%c0_44, %c0_45], %210 {strides = array<i32>} : memref<8x32xf32, #tpu.memory_space<vmem>>, vector<8x32xf32>,
    return
  }
  func.func @transform_0(%arg0: i32) -> (i32, i32, i32) {
    %c0_i32 = arith.constant 0 : i32
    %c0_i32_0 = arith.constant 0 : i32
    %c0_i32_1 = arith.constant 0 : i32
    return %c0_i32, %arg0, %c0_i32_0 : i32, i32, i32
  }
  func.func @transform_1(%arg0: i32) -> (i32, i32) {
    %c0_i32 = arith.constant 0 : i32
    %c0_i32_0 = arith.constant 0 : i32
    return %arg0, %c0_i32 : i32, i32
  }
  func.func @transform_2(%arg0: i32) -> (i32, i32) {
    %c0_i32 = arith.constant 0 : i32
    %c0_i32_0 = arith.constant 0 : i32
    %c0_i32_1 = arith.constant 0 : i32
    return %c0_i32, %c0_i32_0 : i32, i32
  }
  func.func @transform_3(%arg0: i32) -> (i32, i32) {
    %c0_i32 = arith.constant 0 : i32
    %c0_i32_0 = arith.constant 0 : i32
    %c0_i32_1 = arith.constant 0 : i32
    return %c0_i32, %c0_i32_0 : i32, i32
  }
  func.func @transform_4(%arg0: i32) -> (i32, i32) {
    %c0_i32 = arith.constant 0 : i32
    %c0_i32_0 = arith.constant 0 : i32
    %c0_i32_1 = arith.constant 0 : i32
    return %c0_i32, %c0_i32_0 : i32, i32
  }
  func.func @transform_5(%arg0: i32) -> (i32, i32) {
    %c0_i32 = arith.constant 0 : i32
    %c0_i32_0 = arith.constant 0 : i32
    %c0_i32_1 = arith.constant 0 : i32
    return %c0_i32, %c0_i32_0 : i32, i32
  }
  func.func @transform_6(%arg0: i32) -> (i32, i32) {
    %c0_i32 = arith.constant 0 : i32
    %c0_i32_0 = arith.constant 0 : i32
    return %arg0, %c0_i32 : i32, i32
  }
}

module attributes {stable_mosaic.version = 11 : i64} {
  func.func @episodic_output_kernel(%arg0: memref<3x8x32xf32, #tpu.memory_space<vmem>>, %arg1: memref<8x32xf32, #tpu.memory_space<vmem>>, %arg2: memref<8x32xf32, #tpu.memory_space<vmem>>, %arg3: memref<8x32xf32, #tpu.memory_space<vmem>>, %arg4: memref<160x32xbf16, #tpu.memory_space<vmem>>, %arg5: memref<32x32xbf16, #tpu.memory_space<vmem>>, %arg6: memref<32x32xbf16, #tpu.memory_space<vmem>>, %arg7: memref<1x32xf32, #tpu.memory_space<vmem>>, %arg8: memref<1x32xf32, #tpu.memory_space<vmem>>, %arg9: memref<1x1xf32, #tpu.memory_space<vmem>>, %arg10: memref<32x96xbf16, #tpu.memory_space<vmem>>, %arg11: memref<32x96xbf16, #tpu.memory_space<vmem>>, %arg12: memref<1x96xf32, #tpu.memory_space<vmem>>, %arg13: memref<1x96xf32, #tpu.memory_space<vmem>>, %arg14: memref<32x96xbf16, #tpu.memory_space<vmem>>, %arg15: memref<32x96xbf16, #tpu.memory_space<vmem>>, %arg16: memref<1x96xf32, #tpu.memory_space<vmem>>, %arg17: memref<1x96xf32, #tpu.memory_space<vmem>>, %arg18: memref<96x32xbf16, #tpu.memory_space<vmem>>, %arg19: memref<1x32xf32, #tpu.memory_space<vmem>>, %arg20: memref<32x2xbf16, #tpu.memory_space<vmem>>, %arg21: memref<1x2xf32, #tpu.memory_space<vmem>>, %arg22: memref<8x2xf32, #tpu.memory_space<vmem>>) attributes {dimension_semantics = [], scalar_prefetch = 0 : i64, scratch_operands = 0 : i64, tpu.core_type = #tpu.core_type<tc>} {
    %c0 = arith.constant 0 : index
    %c0_0 = arith.constant 0 : index
    %0 = vector.load %arg1[%c0, %c0_0] : memref<8x32xf32, #tpu.memory_space<vmem>>, vector<8x32xf32>
    %c0_1 = arith.constant 0 : index
    %c0_2 = arith.constant 0 : index
    %1 = vector.load %arg4[%c0_1, %c0_2] : memref<160x32xbf16, #tpu.memory_space<vmem>>, vector<160x32xbf16>
    %c0_3 = arith.constant 0 : index
    %c0_4 = arith.constant 0 : index
    %2 = vector.load %arg5[%c0_3, %c0_4] : memref<32x32xbf16, #tpu.memory_space<vmem>>, vector<32x32xbf16>
    %c0_5 = arith.constant 0 : index
    %c0_6 = arith.constant 0 : index
    %3 = vector.load %arg6[%c0_5, %c0_6] : memref<32x32xbf16, #tpu.memory_space<vmem>>, vector<32x32xbf16>
    %c0_7 = arith.constant 0 : index
    %c0_8 = arith.constant 0 : index
    %4 = vector.load %arg7[%c0_7, %c0_8] : memref<1x32xf32, #tpu.memory_space<vmem>>, vector<1x32xf32>
    %c0_9 = arith.constant 0 : index
    %c0_10 = arith.constant 0 : index
    %5 = vector.load %arg8[%c0_9, %c0_10] : memref<1x32xf32, #tpu.memory_space<vmem>>, vector<1x32xf32>
    %c0_11 = arith.constant 0 : index
    %c0_12 = arith.constant 0 : index
    %6 = vector.load %arg9[%c0_11, %c0_12] : memref<1x1xf32, #tpu.memory_space<vmem>>, vector<1x1xf32>
    %c0_13 = arith.constant 0 : index
    %c0_14 = arith.constant 0 : index
    %7 = vector.load %arg10[%c0_13, %c0_14] : memref<32x96xbf16, #tpu.memory_space<vmem>>, vector<32x96xbf16>
    %c0_15 = arith.constant 0 : index
    %c0_16 = arith.constant 0 : index
    %8 = vector.load %arg11[%c0_15, %c0_16] : memref<32x96xbf16, #tpu.memory_space<vmem>>, vector<32x96xbf16>
    %c0_17 = arith.constant 0 : index
    %c0_18 = arith.constant 0 : index
    %9 = vector.load %arg12[%c0_17, %c0_18] : memref<1x96xf32, #tpu.memory_space<vmem>>, vector<1x96xf32>
    %c0_19 = arith.constant 0 : index
    %c0_20 = arith.constant 0 : index
    %10 = vector.load %arg13[%c0_19, %c0_20] : memref<1x96xf32, #tpu.memory_space<vmem>>, vector<1x96xf32>
    %c0_21 = arith.constant 0 : index
    %c0_22 = arith.constant 0 : index
    %11 = vector.load %arg14[%c0_21, %c0_22] : memref<32x96xbf16, #tpu.memory_space<vmem>>, vector<32x96xbf16>
    %c0_23 = arith.constant 0 : index
    %c0_24 = arith.constant 0 : index
    %12 = vector.load %arg15[%c0_23, %c0_24] : memref<32x96xbf16, #tpu.memory_space<vmem>>, vector<32x96xbf16>
    %c0_25 = arith.constant 0 : index
    %c0_26 = arith.constant 0 : index
    %13 = vector.load %arg16[%c0_25, %c0_26] : memref<1x96xf32, #tpu.memory_space<vmem>>, vector<1x96xf32>
    %c0_27 = arith.constant 0 : index
    %c0_28 = arith.constant 0 : index
    %14 = vector.load %arg17[%c0_27, %c0_28] : memref<1x96xf32, #tpu.memory_space<vmem>>, vector<1x96xf32>
    %15 = arith.truncf %0 : vector<8x32xf32> to vector<8x32xbf16>
    %cst = arith.constant dense<0.000000e+00> : vector<8x32xf32>
    %16 = tpu.matmul %15, %2, %cst {dimension_numbers = #tpu.dot_dimension_numbers<[1], [0], [0], [1], [0, 0, 1, 1], [], []>} : vector<8x32xbf16>, vector<32x32xbf16>, vector<8x32xf32> -> vector<8x32xf32>
    %c0_i32 = arith.constant 0 : i32
    %17 = arith.truncf %0 : vector<8x32xf32> to vector<8x32xbf16>
    %cst_29 = arith.constant dense<0.000000e+00> : vector<8x32xf32>
    %18 = tpu.matmul %17, %3, %cst_29 {dimension_numbers = #tpu.dot_dimension_numbers<[1], [0], [0], [1], [0, 0, 1, 1], [], []>} : vector<8x32xbf16>, vector<32x32xbf16>, vector<8x32xf32> -> vector<8x32xf32>
    %19 = arith.addf %16, %18 : vector<8x32xf32>
    %20 = vector.broadcast %4 : vector<1x32xf32> to vector<8x32xf32>
    %21 = arith.addf %19, %20 : vector<8x32xf32>
    %cst_30 = arith.constant 0.000000e+00 : f32
    %22 = vector.broadcast %cst_30 : f32 to vector<8x32xf32>
    %c0_i32_31 = arith.constant 0 : i32
    %23 = arith.index_cast %c0_i32_31 : i32 to index
    %c0_32 = arith.constant 0 : index
    %c0_33 = arith.constant 0 : index
    %24 = vector.load %arg0[%23, %c0_32, %c0_33] : memref<3x8x32xf32, #tpu.memory_space<vmem>>, vector<1x8x32xf32>
    %25 = vector.shape_cast %24 : vector<1x8x32xf32> to vector<8x32xf32>
    %26 = arith.mulf %25, %0 : vector<8x32xf32>
    %27 = arith.mulf %25, %0 : vector<8x32xf32>
    %28 = arith.subf %25, %0 : vector<8x32xf32>
    %29 = math.absf %28 : vector<8x32xf32>
    %30 = arith.subf %25, %0 : vector<8x32xf32>
    %31 = math.absf %30 : vector<8x32xf32>
    %32 = tpu.concatenate %25, %26, %27, %29, %31 in 1 : vector<8x32xf32>, vector<8x32xf32>, vector<8x32xf32>, vector<8x32xf32>, vector<8x32xf32> -> vector<8x160xf32>
    %33 = arith.truncf %32 : vector<8x160xf32> to vector<8x160xbf16>
    %cst_34 = arith.constant dense<0.000000e+00> : vector<8x32xf32>
    %34 = tpu.matmul %33, %1, %cst_34 {dimension_numbers = #tpu.dot_dimension_numbers<[1], [0], [0], [1], [0, 0, 1, 1], [], []>} : vector<8x160xbf16>, vector<160x32xbf16>, vector<8x32xf32> -> vector<8x32xf32>
    %35 = arith.addf %34, %21 : vector<8x32xf32>
    %36 = math.tanh %35 : vector<8x32xf32>
    %37 = vector.broadcast %5 : vector<1x32xf32> to vector<8x32xf32>
    %38 = arith.mulf %36, %37 : vector<8x32xf32>
    %cst_35 = arith.constant dense<0.000000e+00> : vector<8xf32>
    %39 = vector.multi_reduction <add>, %38, %cst_35 [1] : vector<8x32xf32> to vector<8xf32>
    %40 = vector.shape_cast %39 : vector<8xf32> to vector<8x1xf32>
    %41 = vector.broadcast %6 : vector<1x1xf32> to vector<8x1xf32>
    %42 = arith.addf %40, %41 : vector<8x1xf32>
    %43 = arith.negf %42 : vector<8x1xf32>
    %44 = math.exp %43 : vector<8x1xf32>
    %cst_36 = arith.constant 1.000000e+00 : f32
    %45 = vector.broadcast %cst_36 : f32 to vector<8x1xf32>
    %46 = arith.addf %45, %44 : vector<8x1xf32>
    %47 = arith.divf %45, %46 : vector<8x1xf32>
    %48 = arith.truncf %25 : vector<8x32xf32> to vector<8x32xbf16>
    %cst_37 = arith.constant dense<0.000000e+00> : vector<8x96xf32>
    %49 = tpu.matmul %48, %7, %cst_37 {dimension_numbers = #tpu.dot_dimension_numbers<[1], [0], [0], [1], [0, 0, 1, 1], [], []>} : vector<8x32xbf16>, vector<32x96xbf16>, vector<8x96xf32> -> vector<8x96xf32>
    %50 = vector.broadcast %9 : vector<1x96xf32> to vector<8x96xf32>
    %51 = arith.addf %49, %50 : vector<8x96xf32>
    %52 = arith.truncf %22 : vector<8x32xf32> to vector<8x32xbf16>
    %cst_38 = arith.constant dense<0.000000e+00> : vector<8x96xf32>
    %53 = tpu.matmul %52, %8, %cst_38 {dimension_numbers = #tpu.dot_dimension_numbers<[1], [0], [0], [1], [0, 0, 1, 1], [], []>} : vector<8x32xbf16>, vector<32x96xbf16>, vector<8x96xf32> -> vector<8x96xf32>
    %54 = vector.broadcast %10 : vector<1x96xf32> to vector<8x96xf32>
    %55 = arith.addf %53, %54 : vector<8x96xf32>
    %56 = vector.extract_strided_slice %51 {offsets = [0, 0], sizes = [8, 32], strides = [1, 1]} : vector<8x96xf32> to vector<8x32xf32>
    %57 = vector.extract_strided_slice %55 {offsets = [0, 0], sizes = [8, 32], strides = [1, 1]} : vector<8x96xf32> to vector<8x32xf32>
    %58 = arith.addf %56, %57 : vector<8x32xf32>
    %59 = arith.negf %58 : vector<8x32xf32>
    %60 = math.exp %59 : vector<8x32xf32>
    %cst_39 = arith.constant 1.000000e+00 : f32
    %61 = vector.broadcast %cst_39 : f32 to vector<8x32xf32>
    %62 = arith.addf %61, %60 : vector<8x32xf32>
    %63 = arith.divf %61, %62 : vector<8x32xf32>
    %64 = vector.extract_strided_slice %51 {offsets = [0, 32], sizes = [8, 32], strides = [1, 1]} : vector<8x96xf32> to vector<8x32xf32>
    %65 = vector.extract_strided_slice %55 {offsets = [0, 32], sizes = [8, 32], strides = [1, 1]} : vector<8x96xf32> to vector<8x32xf32>
    %66 = arith.addf %64, %65 : vector<8x32xf32>
    %67 = arith.negf %66 : vector<8x32xf32>
    %68 = math.exp %67 : vector<8x32xf32>
    %cst_40 = arith.constant 1.000000e+00 : f32
    %69 = vector.broadcast %cst_40 : f32 to vector<8x32xf32>
    %70 = arith.addf %69, %68 : vector<8x32xf32>
    %71 = arith.divf %69, %70 : vector<8x32xf32>
    %72 = vector.extract_strided_slice %51 {offsets = [0, 64], sizes = [8, 32], strides = [1, 1]} : vector<8x96xf32> to vector<8x32xf32>
    %73 = vector.extract_strided_slice %55 {offsets = [0, 64], sizes = [8, 32], strides = [1, 1]} : vector<8x96xf32> to vector<8x32xf32>
    %74 = arith.mulf %63, %73 : vector<8x32xf32>
    %75 = arith.addf %72, %74 : vector<8x32xf32>
    %76 = math.tanh %75 : vector<8x32xf32>
    %cst_41 = arith.constant 1.000000e+00 : f32
    %77 = vector.broadcast %cst_41 : f32 to vector<8x32xf32>
    %78 = arith.subf %77, %71 : vector<8x32xf32>
    %79 = arith.mulf %78, %76 : vector<8x32xf32>
    %80 = arith.mulf %71, %22 : vector<8x32xf32>
    %81 = arith.addf %79, %80 : vector<8x32xf32>
    %82 = vector.broadcast %47 : vector<8x1xf32> to vector<8x32xf32>
    %83 = arith.mulf %82, %81 : vector<8x32xf32>
    %cst_42 = arith.constant 1.000000e+00 : f32
    %84 = vector.broadcast %cst_42 : f32 to vector<8x1xf32>
    %85 = arith.subf %84, %47 : vector<8x1xf32>
    %86 = vector.broadcast %85 : vector<8x1xf32> to vector<8x32xf32>
    %87 = arith.mulf %86, %22 : vector<8x32xf32>
    %88 = arith.addf %83, %87 : vector<8x32xf32>
    %c1_i32 = arith.constant 1 : i32
    %89 = arith.index_cast %c1_i32 : i32 to index
    %c0_43 = arith.constant 0 : index
    %c0_44 = arith.constant 0 : index
    %90 = vector.load %arg0[%89, %c0_43, %c0_44] : memref<3x8x32xf32, #tpu.memory_space<vmem>>, vector<1x8x32xf32>
    %91 = vector.shape_cast %90 : vector<1x8x32xf32> to vector<8x32xf32>
    %92 = arith.mulf %91, %0 : vector<8x32xf32>
    %93 = arith.mulf %91, %0 : vector<8x32xf32>
    %94 = arith.subf %91, %0 : vector<8x32xf32>
    %95 = math.absf %94 : vector<8x32xf32>
    %96 = arith.subf %91, %0 : vector<8x32xf32>
    %97 = math.absf %96 : vector<8x32xf32>
    %98 = tpu.concatenate %91, %92, %93, %95, %97 in 1 : vector<8x32xf32>, vector<8x32xf32>, vector<8x32xf32>, vector<8x32xf32>, vector<8x32xf32> -> vector<8x160xf32>
    %99 = arith.truncf %98 : vector<8x160xf32> to vector<8x160xbf16>
    %cst_45 = arith.constant dense<0.000000e+00> : vector<8x32xf32>
    %100 = tpu.matmul %99, %1, %cst_45 {dimension_numbers = #tpu.dot_dimension_numbers<[1], [0], [0], [1], [0, 0, 1, 1], [], []>} : vector<8x160xbf16>, vector<160x32xbf16>, vector<8x32xf32> -> vector<8x32xf32>
    %101 = arith.addf %100, %21 : vector<8x32xf32>
    %102 = math.tanh %101 : vector<8x32xf32>
    %103 = vector.broadcast %5 : vector<1x32xf32> to vector<8x32xf32>
    %104 = arith.mulf %102, %103 : vector<8x32xf32>
    %cst_46 = arith.constant dense<0.000000e+00> : vector<8xf32>
    %105 = vector.multi_reduction <add>, %104, %cst_46 [1] : vector<8x32xf32> to vector<8xf32>
    %106 = vector.shape_cast %105 : vector<8xf32> to vector<8x1xf32>
    %107 = vector.broadcast %6 : vector<1x1xf32> to vector<8x1xf32>
    %108 = arith.addf %106, %107 : vector<8x1xf32>
    %109 = arith.negf %108 : vector<8x1xf32>
    %110 = math.exp %109 : vector<8x1xf32>
    %cst_47 = arith.constant 1.000000e+00 : f32
    %111 = vector.broadcast %cst_47 : f32 to vector<8x1xf32>
    %112 = arith.addf %111, %110 : vector<8x1xf32>
    %113 = arith.divf %111, %112 : vector<8x1xf32>
    %114 = arith.truncf %91 : vector<8x32xf32> to vector<8x32xbf16>
    %cst_48 = arith.constant dense<0.000000e+00> : vector<8x96xf32>
    %115 = tpu.matmul %114, %7, %cst_48 {dimension_numbers = #tpu.dot_dimension_numbers<[1], [0], [0], [1], [0, 0, 1, 1], [], []>} : vector<8x32xbf16>, vector<32x96xbf16>, vector<8x96xf32> -> vector<8x96xf32>
    %116 = vector.broadcast %9 : vector<1x96xf32> to vector<8x96xf32>
    %117 = arith.addf %115, %116 : vector<8x96xf32>
    %118 = arith.truncf %88 : vector<8x32xf32> to vector<8x32xbf16>
    %cst_49 = arith.constant dense<0.000000e+00> : vector<8x96xf32>
    %119 = tpu.matmul %118, %8, %cst_49 {dimension_numbers = #tpu.dot_dimension_numbers<[1], [0], [0], [1], [0, 0, 1, 1], [], []>} : vector<8x32xbf16>, vector<32x96xbf16>, vector<8x96xf32> -> vector<8x96xf32>
    %120 = vector.broadcast %10 : vector<1x96xf32> to vector<8x96xf32>
    %121 = arith.addf %119, %120 : vector<8x96xf32>
    %122 = vector.extract_strided_slice %117 {offsets = [0, 0], sizes = [8, 32], strides = [1, 1]} : vector<8x96xf32> to vector<8x32xf32>
    %123 = vector.extract_strided_slice %121 {offsets = [0, 0], sizes = [8, 32], strides = [1, 1]} : vector<8x96xf32> to vector<8x32xf32>
    %124 = arith.addf %122, %123 : vector<8x32xf32>
    %125 = arith.negf %124 : vector<8x32xf32>
    %126 = math.exp %125 : vector<8x32xf32>
    %cst_50 = arith.constant 1.000000e+00 : f32
    %127 = vector.broadcast %cst_50 : f32 to vector<8x32xf32>
    %128 = arith.addf %127, %126 : vector<8x32xf32>
    %129 = arith.divf %127, %128 : vector<8x32xf32>
    %130 = vector.extract_strided_slice %117 {offsets = [0, 32], sizes = [8, 32], strides = [1, 1]} : vector<8x96xf32> to vector<8x32xf32>
    %131 = vector.extract_strided_slice %121 {offsets = [0, 32], sizes = [8, 32], strides = [1, 1]} : vector<8x96xf32> to vector<8x32xf32>
    %132 = arith.addf %130, %131 : vector<8x32xf32>
    %133 = arith.negf %132 : vector<8x32xf32>
    %134 = math.exp %133 : vector<8x32xf32>
    %cst_51 = arith.constant 1.000000e+00 : f32
    %135 = vector.broadcast %cst_51 : f32 to vector<8x32xf32>
    %136 = arith.addf %135, %134 : vector<8x32xf32>
    %137 = arith.divf %135, %136 : vector<8x32xf32>
    %138 = vector.extract_strided_slice %117 {offsets = [0, 64], sizes = [8, 32], strides = [1, 1]} : vector<8x96xf32> to vector<8x32xf32>
    %139 = vector.extract_strided_slice %121 {offsets = [0, 64], sizes = [8, 32], strides = [1, 1]} : vector<8x96xf32> to vector<8x32xf32>
    %140 = arith.mulf %129, %139 : vector<8x32xf32>
    %141 = arith.addf %138, %140 : vector<8x32xf32>
    %142 = math.tanh %141 : vector<8x32xf32>
    %cst_52 = arith.constant 1.000000e+00 : f32
    %143 = vector.broadcast %cst_52 : f32 to vector<8x32xf32>
    %144 = arith.subf %143, %137 : vector<8x32xf32>
    %145 = arith.mulf %144, %142 : vector<8x32xf32>
    %146 = arith.mulf %137, %88 : vector<8x32xf32>
    %147 = arith.addf %145, %146 : vector<8x32xf32>
    %148 = vector.broadcast %113 : vector<8x1xf32> to vector<8x32xf32>
    %149 = arith.mulf %148, %147 : vector<8x32xf32>
    %cst_53 = arith.constant 1.000000e+00 : f32
    %150 = vector.broadcast %cst_53 : f32 to vector<8x1xf32>
    %151 = arith.subf %150, %113 : vector<8x1xf32>
    %152 = vector.broadcast %151 : vector<8x1xf32> to vector<8x32xf32>
    %153 = arith.mulf %152, %88 : vector<8x32xf32>
    %154 = arith.addf %149, %153 : vector<8x32xf32>
    %c2_i32 = arith.constant 2 : i32
    %155 = arith.index_cast %c2_i32 : i32 to index
    %c0_54 = arith.constant 0 : index
    %c0_55 = arith.constant 0 : index
    %156 = vector.load %arg0[%155, %c0_54, %c0_55] : memref<3x8x32xf32, #tpu.memory_space<vmem>>, vector<1x8x32xf32>
    %157 = vector.shape_cast %156 : vector<1x8x32xf32> to vector<8x32xf32>
    %158 = arith.mulf %157, %0 : vector<8x32xf32>
    %159 = arith.mulf %157, %0 : vector<8x32xf32>
    %160 = arith.subf %157, %0 : vector<8x32xf32>
    %161 = math.absf %160 : vector<8x32xf32>
    %162 = arith.subf %157, %0 : vector<8x32xf32>
    %163 = math.absf %162 : vector<8x32xf32>
    %164 = tpu.concatenate %157, %158, %159, %161, %163 in 1 : vector<8x32xf32>, vector<8x32xf32>, vector<8x32xf32>, vector<8x32xf32>, vector<8x32xf32> -> vector<8x160xf32>
    %165 = arith.truncf %164 : vector<8x160xf32> to vector<8x160xbf16>
    %cst_56 = arith.constant dense<0.000000e+00> : vector<8x32xf32>
    %166 = tpu.matmul %165, %1, %cst_56 {dimension_numbers = #tpu.dot_dimension_numbers<[1], [0], [0], [1], [0, 0, 1, 1], [], []>} : vector<8x160xbf16>, vector<160x32xbf16>, vector<8x32xf32> -> vector<8x32xf32>
    %167 = arith.addf %166, %21 : vector<8x32xf32>
    %168 = math.tanh %167 : vector<8x32xf32>
    %169 = vector.broadcast %5 : vector<1x32xf32> to vector<8x32xf32>
    %170 = arith.mulf %168, %169 : vector<8x32xf32>
    %cst_57 = arith.constant dense<0.000000e+00> : vector<8xf32>
    %171 = vector.multi_reduction <add>, %170, %cst_57 [1] : vector<8x32xf32> to vector<8xf32>
    %172 = vector.shape_cast %171 : vector<8xf32> to vector<8x1xf32>
    %173 = vector.broadcast %6 : vector<1x1xf32> to vector<8x1xf32>
    %174 = arith.addf %172, %173 : vector<8x1xf32>
    %175 = arith.negf %174 : vector<8x1xf32>
    %176 = math.exp %175 : vector<8x1xf32>
    %cst_58 = arith.constant 1.000000e+00 : f32
    %177 = vector.broadcast %cst_58 : f32 to vector<8x1xf32>
    %178 = arith.addf %177, %176 : vector<8x1xf32>
    %179 = arith.divf %177, %178 : vector<8x1xf32>
    %180 = arith.truncf %157 : vector<8x32xf32> to vector<8x32xbf16>
    %cst_59 = arith.constant dense<0.000000e+00> : vector<8x96xf32>
    %181 = tpu.matmul %180, %7, %cst_59 {dimension_numbers = #tpu.dot_dimension_numbers<[1], [0], [0], [1], [0, 0, 1, 1], [], []>} : vector<8x32xbf16>, vector<32x96xbf16>, vector<8x96xf32> -> vector<8x96xf32>
    %182 = vector.broadcast %9 : vector<1x96xf32> to vector<8x96xf32>
    %183 = arith.addf %181, %182 : vector<8x96xf32>
    %184 = arith.truncf %154 : vector<8x32xf32> to vector<8x32xbf16>
    %cst_60 = arith.constant dense<0.000000e+00> : vector<8x96xf32>
    %185 = tpu.matmul %184, %8, %cst_60 {dimension_numbers = #tpu.dot_dimension_numbers<[1], [0], [0], [1], [0, 0, 1, 1], [], []>} : vector<8x32xbf16>, vector<32x96xbf16>, vector<8x96xf32> -> vector<8x96xf32>
    %186 = vector.broadcast %10 : vector<1x96xf32> to vector<8x96xf32>
    %187 = arith.addf %185, %186 : vector<8x96xf32>
    %188 = vector.extract_strided_slice %183 {offsets = [0, 0], sizes = [8, 32], strides = [1, 1]} : vector<8x96xf32> to vector<8x32xf32>
    %189 = vector.extract_strided_slice %187 {offsets = [0, 0], sizes = [8, 32], strides = [1, 1]} : vector<8x96xf32> to vector<8x32xf32>
    %190 = arith.addf %188, %189 : vector<8x32xf32>
    %191 = arith.negf %190 : vector<8x32xf32>
    %192 = math.exp %191 : vector<8x32xf32>
    %cst_61 = arith.constant 1.000000e+00 : f32
    %193 = vector.broadcast %cst_61 : f32 to vector<8x32xf32>
    %194 = arith.addf %193, %192 : vector<8x32xf32>
    %195 = arith.divf %193, %194 : vector<8x32xf32>
    %196 = vector.extract_strided_slice %183 {offsets = [0, 32], sizes = [8, 32], strides = [1, 1]} : vector<8x96xf32> to vector<8x32xf32>
    %197 = vector.extract_strided_slice %187 {offsets = [0, 32], sizes = [8, 32], strides = [1, 1]} : vector<8x96xf32> to vector<8x32xf32>
    %198 = arith.addf %196, %197 : vector<8x32xf32>
    %199 = arith.negf %198 : vector<8x32xf32>
    %200 = math.exp %199 : vector<8x32xf32>
    %cst_62 = arith.constant 1.000000e+00 : f32
    %201 = vector.broadcast %cst_62 : f32 to vector<8x32xf32>
    %202 = arith.addf %201, %200 : vector<8x32xf32>
    %203 = arith.divf %201, %202 : vector<8x32xf32>
    %204 = vector.extract_strided_slice %183 {offsets = [0, 64], sizes = [8, 32], strides = [1, 1]} : vector<8x96xf32> to vector<8x32xf32>
    %205 = vector.extract_strided_slice %187 {offsets = [0, 64], sizes = [8, 32], strides = [1, 1]} : vector<8x96xf32> to vector<8x32xf32>
    %206 = arith.mulf %195, %205 : vector<8x32xf32>
    %207 = arith.addf %204, %206 : vector<8x32xf32>
    %208 = math.tanh %207 : vector<8x32xf32>
    %cst_63 = arith.constant 1.000000e+00 : f32
    %209 = vector.broadcast %cst_63 : f32 to vector<8x32xf32>
    %210 = arith.subf %209, %203 : vector<8x32xf32>
    %211 = arith.mulf %210, %208 : vector<8x32xf32>
    %212 = arith.mulf %203, %154 : vector<8x32xf32>
    %213 = arith.addf %211, %212 : vector<8x32xf32>
    %214 = vector.broadcast %179 : vector<8x1xf32> to vector<8x32xf32>
    %215 = arith.mulf %214, %213 : vector<8x32xf32>
    %cst_64 = arith.constant 1.000000e+00 : f32
    %216 = vector.broadcast %cst_64 : f32 to vector<8x1xf32>
    %217 = arith.subf %216, %179 : vector<8x1xf32>
    %218 = vector.broadcast %217 : vector<8x1xf32> to vector<8x32xf32>
    %219 = arith.mulf %218, %154 : vector<8x32xf32>
    %220 = arith.addf %215, %219 : vector<8x32xf32>
    %c3_i32 = arith.constant 3 : i32
    %221 = arith.truncf %220 : vector<8x32xf32> to vector<8x32xbf16>
    %cst_65 = arith.constant dense<0.000000e+00> : vector<8x96xf32>
    %222 = tpu.matmul %221, %11, %cst_65 {dimension_numbers = #tpu.dot_dimension_numbers<[1], [0], [0], [1], [0, 0, 1, 1], [], []>} : vector<8x32xbf16>, vector<32x96xbf16>, vector<8x96xf32> -> vector<8x96xf32>
    %223 = vector.broadcast %13 : vector<1x96xf32> to vector<8x96xf32>
    %224 = arith.addf %222, %223 : vector<8x96xf32>
    %225 = arith.truncf %0 : vector<8x32xf32> to vector<8x32xbf16>
    %cst_66 = arith.constant dense<0.000000e+00> : vector<8x96xf32>
    %226 = tpu.matmul %225, %12, %cst_66 {dimension_numbers = #tpu.dot_dimension_numbers<[1], [0], [0], [1], [0, 0, 1, 1], [], []>} : vector<8x32xbf16>, vector<32x96xbf16>, vector<8x96xf32> -> vector<8x96xf32>
    %227 = vector.broadcast %14 : vector<1x96xf32> to vector<8x96xf32>
    %228 = arith.addf %226, %227 : vector<8x96xf32>
    %229 = vector.extract_strided_slice %224 {offsets = [0, 0], sizes = [8, 32], strides = [1, 1]} : vector<8x96xf32> to vector<8x32xf32>
    %230 = vector.extract_strided_slice %228 {offsets = [0, 0], sizes = [8, 32], strides = [1, 1]} : vector<8x96xf32> to vector<8x32xf32>
    %231 = arith.addf %229, %230 : vector<8x32xf32>
    %232 = arith.negf %231 : vector<8x32xf32>
    %233 = math.exp %232 : vector<8x32xf32>
    %cst_67 = arith.constant 1.000000e+00 : f32
    %234 = vector.broadcast %cst_67 : f32 to vector<8x32xf32>
    %235 = arith.addf %234, %233 : vector<8x32xf32>
    %236 = arith.divf %234, %235 : vector<8x32xf32>
    %237 = vector.extract_strided_slice %224 {offsets = [0, 32], sizes = [8, 32], strides = [1, 1]} : vector<8x96xf32> to vector<8x32xf32>
    %238 = vector.extract_strided_slice %228 {offsets = [0, 32], sizes = [8, 32], strides = [1, 1]} : vector<8x96xf32> to vector<8x32xf32>
    %239 = arith.addf %237, %238 : vector<8x32xf32>
    %240 = arith.negf %239 : vector<8x32xf32>
    %241 = math.exp %240 : vector<8x32xf32>
    %cst_68 = arith.constant 1.000000e+00 : f32
    %242 = vector.broadcast %cst_68 : f32 to vector<8x32xf32>
    %243 = arith.addf %242, %241 : vector<8x32xf32>
    %244 = arith.divf %242, %243 : vector<8x32xf32>
    %245 = vector.extract_strided_slice %224 {offsets = [0, 64], sizes = [8, 32], strides = [1, 1]} : vector<8x96xf32> to vector<8x32xf32>
    %246 = vector.extract_strided_slice %228 {offsets = [0, 64], sizes = [8, 32], strides = [1, 1]} : vector<8x96xf32> to vector<8x32xf32>
    %247 = arith.mulf %236, %246 : vector<8x32xf32>
    %248 = arith.addf %245, %247 : vector<8x32xf32>
    %249 = math.tanh %248 : vector<8x32xf32>
    %cst_69 = arith.constant 1.000000e+00 : f32
    %250 = vector.broadcast %cst_69 : f32 to vector<8x32xf32>
    %251 = arith.subf %250, %244 : vector<8x32xf32>
    %252 = arith.mulf %251, %249 : vector<8x32xf32>
    %253 = arith.mulf %244, %0 : vector<8x32xf32>
    %254 = arith.addf %252, %253 : vector<8x32xf32>
    %c1_i32_70 = arith.constant 1 : i32
    %255 = arith.truncf %254 : vector<8x32xf32> to vector<8x32xbf16>
    %cst_71 = arith.constant dense<0.000000e+00> : vector<8x32xf32>
    %256 = tpu.matmul %255, %3, %cst_71 {dimension_numbers = #tpu.dot_dimension_numbers<[1], [0], [0], [1], [0, 0, 1, 1], [], []>} : vector<8x32xbf16>, vector<32x32xbf16>, vector<8x32xf32> -> vector<8x32xf32>
    %257 = arith.addf %16, %256 : vector<8x32xf32>
    %258 = vector.broadcast %4 : vector<1x32xf32> to vector<8x32xf32>
    %259 = arith.addf %257, %258 : vector<8x32xf32>
    %cst_72 = arith.constant 0.000000e+00 : f32
    %260 = vector.broadcast %cst_72 : f32 to vector<8x32xf32>
    %c0_i32_73 = arith.constant 0 : i32
    %261 = arith.index_cast %c0_i32_73 : i32 to index
    %c0_74 = arith.constant 0 : index
    %c0_75 = arith.constant 0 : index
    %262 = vector.load %arg0[%261, %c0_74, %c0_75] : memref<3x8x32xf32, #tpu.memory_space<vmem>>, vector<1x8x32xf32>
    %263 = vector.shape_cast %262 : vector<1x8x32xf32> to vector<8x32xf32>
    %264 = arith.mulf %263, %0 : vector<8x32xf32>
    %265 = arith.mulf %263, %254 : vector<8x32xf32>
    %266 = arith.subf %263, %0 : vector<8x32xf32>
    %267 = math.absf %266 : vector<8x32xf32>
    %268 = arith.subf %263, %254 : vector<8x32xf32>
    %269 = math.absf %268 : vector<8x32xf32>
    %270 = tpu.concatenate %263, %264, %265, %267, %269 in 1 : vector<8x32xf32>, vector<8x32xf32>, vector<8x32xf32>, vector<8x32xf32>, vector<8x32xf32> -> vector<8x160xf32>
    %271 = arith.truncf %270 : vector<8x160xf32> to vector<8x160xbf16>
    %cst_76 = arith.constant dense<0.000000e+00> : vector<8x32xf32>
    %272 = tpu.matmul %271, %1, %cst_76 {dimension_numbers = #tpu.dot_dimension_numbers<[1], [0], [0], [1], [0, 0, 1, 1], [], []>} : vector<8x160xbf16>, vector<160x32xbf16>, vector<8x32xf32> -> vector<8x32xf32>
    %273 = arith.addf %272, %259 : vector<8x32xf32>
    %274 = math.tanh %273 : vector<8x32xf32>
    %275 = vector.broadcast %5 : vector<1x32xf32> to vector<8x32xf32>
    %276 = arith.mulf %274, %275 : vector<8x32xf32>
    %cst_77 = arith.constant dense<0.000000e+00> : vector<8xf32>
    %277 = vector.multi_reduction <add>, %276, %cst_77 [1] : vector<8x32xf32> to vector<8xf32>
    %278 = vector.shape_cast %277 : vector<8xf32> to vector<8x1xf32>
    %279 = vector.broadcast %6 : vector<1x1xf32> to vector<8x1xf32>
    %280 = arith.addf %278, %279 : vector<8x1xf32>
    %281 = arith.negf %280 : vector<8x1xf32>
    %282 = math.exp %281 : vector<8x1xf32>
    %cst_78 = arith.constant 1.000000e+00 : f32
    %283 = vector.broadcast %cst_78 : f32 to vector<8x1xf32>
    %284 = arith.addf %283, %282 : vector<8x1xf32>
    %285 = arith.divf %283, %284 : vector<8x1xf32>
    %286 = arith.truncf %263 : vector<8x32xf32> to vector<8x32xbf16>
    %cst_79 = arith.constant dense<0.000000e+00> : vector<8x96xf32>
    %287 = tpu.matmul %286, %7, %cst_79 {dimension_numbers = #tpu.dot_dimension_numbers<[1], [0], [0], [1], [0, 0, 1, 1], [], []>} : vector<8x32xbf16>, vector<32x96xbf16>, vector<8x96xf32> -> vector<8x96xf32>
    %288 = vector.broadcast %9 : vector<1x96xf32> to vector<8x96xf32>
    %289 = arith.addf %287, %288 : vector<8x96xf32>
    %290 = arith.truncf %260 : vector<8x32xf32> to vector<8x32xbf16>
    %cst_80 = arith.constant dense<0.000000e+00> : vector<8x96xf32>
    %291 = tpu.matmul %290, %8, %cst_80 {dimension_numbers = #tpu.dot_dimension_numbers<[1], [0], [0], [1], [0, 0, 1, 1], [], []>} : vector<8x32xbf16>, vector<32x96xbf16>, vector<8x96xf32> -> vector<8x96xf32>
    %292 = vector.broadcast %10 : vector<1x96xf32> to vector<8x96xf32>
    %293 = arith.addf %291, %292 : vector<8x96xf32>
    %294 = vector.extract_strided_slice %289 {offsets = [0, 0], sizes = [8, 32], strides = [1, 1]} : vector<8x96xf32> to vector<8x32xf32>
    %295 = vector.extract_strided_slice %293 {offsets = [0, 0], sizes = [8, 32], strides = [1, 1]} : vector<8x96xf32> to vector<8x32xf32>
    %296 = arith.addf %294, %295 : vector<8x32xf32>
    %297 = arith.negf %296 : vector<8x32xf32>
    %298 = math.exp %297 : vector<8x32xf32>
    %cst_81 = arith.constant 1.000000e+00 : f32
    %299 = vector.broadcast %cst_81 : f32 to vector<8x32xf32>
    %300 = arith.addf %299, %298 : vector<8x32xf32>
    %301 = arith.divf %299, %300 : vector<8x32xf32>
    %302 = vector.extract_strided_slice %289 {offsets = [0, 32], sizes = [8, 32], strides = [1, 1]} : vector<8x96xf32> to vector<8x32xf32>
    %303 = vector.extract_strided_slice %293 {offsets = [0, 32], sizes = [8, 32], strides = [1, 1]} : vector<8x96xf32> to vector<8x32xf32>
    %304 = arith.addf %302, %303 : vector<8x32xf32>
    %305 = arith.negf %304 : vector<8x32xf32>
    %306 = math.exp %305 : vector<8x32xf32>
    %cst_82 = arith.constant 1.000000e+00 : f32
    %307 = vector.broadcast %cst_82 : f32 to vector<8x32xf32>
    %308 = arith.addf %307, %306 : vector<8x32xf32>
    %309 = arith.divf %307, %308 : vector<8x32xf32>
    %310 = vector.extract_strided_slice %289 {offsets = [0, 64], sizes = [8, 32], strides = [1, 1]} : vector<8x96xf32> to vector<8x32xf32>
    %311 = vector.extract_strided_slice %293 {offsets = [0, 64], sizes = [8, 32], strides = [1, 1]} : vector<8x96xf32> to vector<8x32xf32>
    %312 = arith.mulf %301, %311 : vector<8x32xf32>
    %313 = arith.addf %310, %312 : vector<8x32xf32>
    %314 = math.tanh %313 : vector<8x32xf32>
    %cst_83 = arith.constant 1.000000e+00 : f32
    %315 = vector.broadcast %cst_83 : f32 to vector<8x32xf32>
    %316 = arith.subf %315, %309 : vector<8x32xf32>
    %317 = arith.mulf %316, %314 : vector<8x32xf32>
    %318 = arith.mulf %309, %260 : vector<8x32xf32>
    %319 = arith.addf %317, %318 : vector<8x32xf32>
    %320 = vector.broadcast %285 : vector<8x1xf32> to vector<8x32xf32>
    %321 = arith.mulf %320, %319 : vector<8x32xf32>
    %cst_84 = arith.constant 1.000000e+00 : f32
    %322 = vector.broadcast %cst_84 : f32 to vector<8x1xf32>
    %323 = arith.subf %322, %285 : vector<8x1xf32>
    %324 = vector.broadcast %323 : vector<8x1xf32> to vector<8x32xf32>
    %325 = arith.mulf %324, %260 : vector<8x32xf32>
    %326 = arith.addf %321, %325 : vector<8x32xf32>
    %c1_i32_85 = arith.constant 1 : i32
    %327 = arith.index_cast %c1_i32_85 : i32 to index
    %c0_86 = arith.constant 0 : index
    %c0_87 = arith.constant 0 : index
    %328 = vector.load %arg0[%327, %c0_86, %c0_87] : memref<3x8x32xf32, #tpu.memory_space<vmem>>, vector<1x8x32xf32>
    %329 = vector.shape_cast %328 : vector<1x8x32xf32> to vector<8x32xf32>
    %330 = arith.mulf %329, %0 : vector<8x32xf32>
    %331 = arith.mulf %329, %254 : vector<8x32xf32>
    %332 = arith.subf %329, %0 : vector<8x32xf32>
    %333 = math.absf %332 : vector<8x32xf32>
    %334 = arith.subf %329, %254 : vector<8x32xf32>
    %335 = math.absf %334 : vector<8x32xf32>
    %336 = tpu.concatenate %329, %330, %331, %333, %335 in 1 : vector<8x32xf32>, vector<8x32xf32>, vector<8x32xf32>, vector<8x32xf32>, vector<8x32xf32> -> vector<8x160xf32>
    %337 = arith.truncf %336 : vector<8x160xf32> to vector<8x160xbf16>
    %cst_88 = arith.constant dense<0.000000e+00> : vector<8x32xf32>
    %338 = tpu.matmul %337, %1, %cst_88 {dimension_numbers = #tpu.dot_dimension_numbers<[1], [0], [0], [1], [0, 0, 1, 1], [], []>} : vector<8x160xbf16>, vector<160x32xbf16>, vector<8x32xf32> -> vector<8x32xf32>
    %339 = arith.addf %338, %259 : vector<8x32xf32>
    %340 = math.tanh %339 : vector<8x32xf32>
    %341 = vector.broadcast %5 : vector<1x32xf32> to vector<8x32xf32>
    %342 = arith.mulf %340, %341 : vector<8x32xf32>
    %cst_89 = arith.constant dense<0.000000e+00> : vector<8xf32>
    %343 = vector.multi_reduction <add>, %342, %cst_89 [1] : vector<8x32xf32> to vector<8xf32>
    %344 = vector.shape_cast %343 : vector<8xf32> to vector<8x1xf32>
    %345 = vector.broadcast %6 : vector<1x1xf32> to vector<8x1xf32>
    %346 = arith.addf %344, %345 : vector<8x1xf32>
    %347 = arith.negf %346 : vector<8x1xf32>
    %348 = math.exp %347 : vector<8x1xf32>
    %cst_90 = arith.constant 1.000000e+00 : f32
    %349 = vector.broadcast %cst_90 : f32 to vector<8x1xf32>
    %350 = arith.addf %349, %348 : vector<8x1xf32>
    %351 = arith.divf %349, %350 : vector<8x1xf32>
    %352 = arith.truncf %329 : vector<8x32xf32> to vector<8x32xbf16>
    %cst_91 = arith.constant dense<0.000000e+00> : vector<8x96xf32>
    %353 = tpu.matmul %352, %7, %cst_91 {dimension_numbers = #tpu.dot_dimension_numbers<[1], [0], [0], [1], [0, 0, 1, 1], [], []>} : vector<8x32xbf16>, vector<32x96xbf16>, vector<8x96xf32> -> vector<8x96xf32>
    %354 = vector.broadcast %9 : vector<1x96xf32> to vector<8x96xf32>
    %355 = arith.addf %353, %354 : vector<8x96xf32>
    %356 = arith.truncf %326 : vector<8x32xf32> to vector<8x32xbf16>
    %cst_92 = arith.constant dense<0.000000e+00> : vector<8x96xf32>
    %357 = tpu.matmul %356, %8, %cst_92 {dimension_numbers = #tpu.dot_dimension_numbers<[1], [0], [0], [1], [0, 0, 1, 1], [], []>} : vector<8x32xbf16>, vector<32x96xbf16>, vector<8x96xf32> -> vector<8x96xf32>
    %358 = vector.broadcast %10 : vector<1x96xf32> to vector<8x96xf32>
    %359 = arith.addf %357, %358 : vector<8x96xf32>
    %360 = vector.extract_strided_slice %355 {offsets = [0, 0], sizes = [8, 32], strides = [1, 1]} : vector<8x96xf32> to vector<8x32xf32>
    %361 = vector.extract_strided_slice %359 {offsets = [0, 0], sizes = [8, 32], strides = [1, 1]} : vector<8x96xf32> to vector<8x32xf32>
    %362 = arith.addf %360, %361 : vector<8x32xf32>
    %363 = arith.negf %362 : vector<8x32xf32>
    %364 = math.exp %363 : vector<8x32xf32>
    %cst_93 = arith.constant 1.000000e+00 : f32
    %365 = vector.broadcast %cst_93 : f32 to vector<8x32xf32>
    %366 = arith.addf %365, %364 : vector<8x32xf32>
    %367 = arith.divf %365, %366 : vector<8x32xf32>
    %368 = vector.extract_strided_slice %355 {offsets = [0, 32], sizes = [8, 32], strides = [1, 1]} : vector<8x96xf32> to vector<8x32xf32>
    %369 = vector.extract_strided_slice %359 {offsets = [0, 32], sizes = [8, 32], strides = [1, 1]} : vector<8x96xf32> to vector<8x32xf32>
    %370 = arith.addf %368, %369 : vector<8x32xf32>
    %371 = arith.negf %370 : vector<8x32xf32>
    %372 = math.exp %371 : vector<8x32xf32>
    %cst_94 = arith.constant 1.000000e+00 : f32
    %373 = vector.broadcast %cst_94 : f32 to vector<8x32xf32>
    %374 = arith.addf %373, %372 : vector<8x32xf32>
    %375 = arith.divf %373, %374 : vector<8x32xf32>
    %376 = vector.extract_strided_slice %355 {offsets = [0, 64], sizes = [8, 32], strides = [1, 1]} : vector<8x96xf32> to vector<8x32xf32>
    %377 = vector.extract_strided_slice %359 {offsets = [0, 64], sizes = [8, 32], strides = [1, 1]} : vector<8x96xf32> to vector<8x32xf32>
    %378 = arith.mulf %367, %377 : vector<8x32xf32>
    %379 = arith.addf %376, %378 : vector<8x32xf32>
    %380 = math.tanh %379 : vector<8x32xf32>
    %cst_95 = arith.constant 1.000000e+00 : f32
    %381 = vector.broadcast %cst_95 : f32 to vector<8x32xf32>
    %382 = arith.subf %381, %375 : vector<8x32xf32>
    %383 = arith.mulf %382, %380 : vector<8x32xf32>
    %384 = arith.mulf %375, %326 : vector<8x32xf32>
    %385 = arith.addf %383, %384 : vector<8x32xf32>
    %386 = vector.broadcast %351 : vector<8x1xf32> to vector<8x32xf32>
    %387 = arith.mulf %386, %385 : vector<8x32xf32>
    %cst_96 = arith.constant 1.000000e+00 : f32
    %388 = vector.broadcast %cst_96 : f32 to vector<8x1xf32>
    %389 = arith.subf %388, %351 : vector<8x1xf32>
    %390 = vector.broadcast %389 : vector<8x1xf32> to vector<8x32xf32>
    %391 = arith.mulf %390, %326 : vector<8x32xf32>
    %392 = arith.addf %387, %391 : vector<8x32xf32>
    %c2_i32_97 = arith.constant 2 : i32
    %393 = arith.index_cast %c2_i32_97 : i32 to index
    %c0_98 = arith.constant 0 : index
    %c0_99 = arith.constant 0 : index
    %394 = vector.load %arg0[%393, %c0_98, %c0_99] : memref<3x8x32xf32, #tpu.memory_space<vmem>>, vector<1x8x32xf32>
    %395 = vector.shape_cast %394 : vector<1x8x32xf32> to vector<8x32xf32>
    %396 = arith.mulf %395, %0 : vector<8x32xf32>
    %397 = arith.mulf %395, %254 : vector<8x32xf32>
    %398 = arith.subf %395, %0 : vector<8x32xf32>
    %399 = math.absf %398 : vector<8x32xf32>
    %400 = arith.subf %395, %254 : vector<8x32xf32>
    %401 = math.absf %400 : vector<8x32xf32>
    %402 = tpu.concatenate %395, %396, %397, %399, %401 in 1 : vector<8x32xf32>, vector<8x32xf32>, vector<8x32xf32>, vector<8x32xf32>, vector<8x32xf32> -> vector<8x160xf32>
    %403 = arith.truncf %402 : vector<8x160xf32> to vector<8x160xbf16>
    %cst_100 = arith.constant dense<0.000000e+00> : vector<8x32xf32>
    %404 = tpu.matmul %403, %1, %cst_100 {dimension_numbers = #tpu.dot_dimension_numbers<[1], [0], [0], [1], [0, 0, 1, 1], [], []>} : vector<8x160xbf16>, vector<160x32xbf16>, vector<8x32xf32> -> vector<8x32xf32>
    %405 = arith.addf %404, %259 : vector<8x32xf32>
    %406 = math.tanh %405 : vector<8x32xf32>
    %407 = vector.broadcast %5 : vector<1x32xf32> to vector<8x32xf32>
    %408 = arith.mulf %406, %407 : vector<8x32xf32>
    %cst_101 = arith.constant dense<0.000000e+00> : vector<8xf32>
    %409 = vector.multi_reduction <add>, %408, %cst_101 [1] : vector<8x32xf32> to vector<8xf32>
    %410 = vector.shape_cast %409 : vector<8xf32> to vector<8x1xf32>
    %411 = vector.broadcast %6 : vector<1x1xf32> to vector<8x1xf32>
    %412 = arith.addf %410, %411 : vector<8x1xf32>
    %413 = arith.negf %412 : vector<8x1xf32>
    %414 = math.exp %413 : vector<8x1xf32>
    %cst_102 = arith.constant 1.000000e+00 : f32
    %415 = vector.broadcast %cst_102 : f32 to vector<8x1xf32>
    %416 = arith.addf %415, %414 : vector<8x1xf32>
    %417 = arith.divf %415, %416 : vector<8x1xf32>
    %418 = arith.truncf %395 : vector<8x32xf32> to vector<8x32xbf16>
    %cst_103 = arith.constant dense<0.000000e+00> : vector<8x96xf32>
    %419 = tpu.matmul %418, %7, %cst_103 {dimension_numbers = #tpu.dot_dimension_numbers<[1], [0], [0], [1], [0, 0, 1, 1], [], []>} : vector<8x32xbf16>, vector<32x96xbf16>, vector<8x96xf32> -> vector<8x96xf32>
    %420 = vector.broadcast %9 : vector<1x96xf32> to vector<8x96xf32>
    %421 = arith.addf %419, %420 : vector<8x96xf32>
    %422 = arith.truncf %392 : vector<8x32xf32> to vector<8x32xbf16>
    %cst_104 = arith.constant dense<0.000000e+00> : vector<8x96xf32>
    %423 = tpu.matmul %422, %8, %cst_104 {dimension_numbers = #tpu.dot_dimension_numbers<[1], [0], [0], [1], [0, 0, 1, 1], [], []>} : vector<8x32xbf16>, vector<32x96xbf16>, vector<8x96xf32> -> vector<8x96xf32>
    %424 = vector.broadcast %10 : vector<1x96xf32> to vector<8x96xf32>
    %425 = arith.addf %423, %424 : vector<8x96xf32>
    %426 = vector.extract_strided_slice %421 {offsets = [0, 0], sizes = [8, 32], strides = [1, 1]} : vector<8x96xf32> to vector<8x32xf32>
    %427 = vector.extract_strided_slice %425 {offsets = [0, 0], sizes = [8, 32], strides = [1, 1]} : vector<8x96xf32> to vector<8x32xf32>
    %428 = arith.addf %426, %427 : vector<8x32xf32>
    %429 = arith.negf %428 : vector<8x32xf32>
    %430 = math.exp %429 : vector<8x32xf32>
    %cst_105 = arith.constant 1.000000e+00 : f32
    %431 = vector.broadcast %cst_105 : f32 to vector<8x32xf32>
    %432 = arith.addf %431, %430 : vector<8x32xf32>
    %433 = arith.divf %431, %432 : vector<8x32xf32>
    %434 = vector.extract_strided_slice %421 {offsets = [0, 32], sizes = [8, 32], strides = [1, 1]} : vector<8x96xf32> to vector<8x32xf32>
    %435 = vector.extract_strided_slice %425 {offsets = [0, 32], sizes = [8, 32], strides = [1, 1]} : vector<8x96xf32> to vector<8x32xf32>
    %436 = arith.addf %434, %435 : vector<8x32xf32>
    %437 = arith.negf %436 : vector<8x32xf32>
    %438 = math.exp %437 : vector<8x32xf32>
    %cst_106 = arith.constant 1.000000e+00 : f32
    %439 = vector.broadcast %cst_106 : f32 to vector<8x32xf32>
    %440 = arith.addf %439, %438 : vector<8x32xf32>
    %441 = arith.divf %439, %440 : vector<8x32xf32>
    %442 = vector.extract_strided_slice %421 {offsets = [0, 64], sizes = [8, 32], strides = [1, 1]} : vector<8x96xf32> to vector<8x32xf32>
    %443 = vector.extract_strided_slice %425 {offsets = [0, 64], sizes = [8, 32], strides = [1, 1]} : vector<8x96xf32> to vector<8x32xf32>
    %444 = arith.mulf %433, %443 : vector<8x32xf32>
    %445 = arith.addf %442, %444 : vector<8x32xf32>
    %446 = math.tanh %445 : vector<8x32xf32>
    %cst_107 = arith.constant 1.000000e+00 : f32
    %447 = vector.broadcast %cst_107 : f32 to vector<8x32xf32>
    %448 = arith.subf %447, %441 : vector<8x32xf32>
    %449 = arith.mulf %448, %446 : vector<8x32xf32>
    %450 = arith.mulf %441, %392 : vector<8x32xf32>
    %451 = arith.addf %449, %450 : vector<8x32xf32>
    %452 = vector.broadcast %417 : vector<8x1xf32> to vector<8x32xf32>
    %453 = arith.mulf %452, %451 : vector<8x32xf32>
    %cst_108 = arith.constant 1.000000e+00 : f32
    %454 = vector.broadcast %cst_108 : f32 to vector<8x1xf32>
    %455 = arith.subf %454, %417 : vector<8x1xf32>
    %456 = vector.broadcast %455 : vector<8x1xf32> to vector<8x32xf32>
    %457 = arith.mulf %456, %392 : vector<8x32xf32>
    %458 = arith.addf %453, %457 : vector<8x32xf32>
    %c3_i32_109 = arith.constant 3 : i32
    %459 = arith.truncf %458 : vector<8x32xf32> to vector<8x32xbf16>
    %cst_110 = arith.constant dense<0.000000e+00> : vector<8x96xf32>
    %460 = tpu.matmul %459, %11, %cst_110 {dimension_numbers = #tpu.dot_dimension_numbers<[1], [0], [0], [1], [0, 0, 1, 1], [], []>} : vector<8x32xbf16>, vector<32x96xbf16>, vector<8x96xf32> -> vector<8x96xf32>
    %461 = vector.broadcast %13 : vector<1x96xf32> to vector<8x96xf32>
    %462 = arith.addf %460, %461 : vector<8x96xf32>
    %463 = arith.truncf %254 : vector<8x32xf32> to vector<8x32xbf16>
    %cst_111 = arith.constant dense<0.000000e+00> : vector<8x96xf32>
    %464 = tpu.matmul %463, %12, %cst_111 {dimension_numbers = #tpu.dot_dimension_numbers<[1], [0], [0], [1], [0, 0, 1, 1], [], []>} : vector<8x32xbf16>, vector<32x96xbf16>, vector<8x96xf32> -> vector<8x96xf32>
    %465 = vector.broadcast %14 : vector<1x96xf32> to vector<8x96xf32>
    %466 = arith.addf %464, %465 : vector<8x96xf32>
    %467 = vector.extract_strided_slice %462 {offsets = [0, 0], sizes = [8, 32], strides = [1, 1]} : vector<8x96xf32> to vector<8x32xf32>
    %468 = vector.extract_strided_slice %466 {offsets = [0, 0], sizes = [8, 32], strides = [1, 1]} : vector<8x96xf32> to vector<8x32xf32>
    %469 = arith.addf %467, %468 : vector<8x32xf32>
    %470 = arith.negf %469 : vector<8x32xf32>
    %471 = math.exp %470 : vector<8x32xf32>
    %cst_112 = arith.constant 1.000000e+00 : f32
    %472 = vector.broadcast %cst_112 : f32 to vector<8x32xf32>
    %473 = arith.addf %472, %471 : vector<8x32xf32>
    %474 = arith.divf %472, %473 : vector<8x32xf32>
    %475 = vector.extract_strided_slice %462 {offsets = [0, 32], sizes = [8, 32], strides = [1, 1]} : vector<8x96xf32> to vector<8x32xf32>
    %476 = vector.extract_strided_slice %466 {offsets = [0, 32], sizes = [8, 32], strides = [1, 1]} : vector<8x96xf32> to vector<8x32xf32>
    %477 = arith.addf %475, %476 : vector<8x32xf32>
    %478 = arith.negf %477 : vector<8x32xf32>
    %479 = math.exp %478 : vector<8x32xf32>
    %cst_113 = arith.constant 1.000000e+00 : f32
    %480 = vector.broadcast %cst_113 : f32 to vector<8x32xf32>
    %481 = arith.addf %480, %479 : vector<8x32xf32>
    %482 = arith.divf %480, %481 : vector<8x32xf32>
    %483 = vector.extract_strided_slice %462 {offsets = [0, 64], sizes = [8, 32], strides = [1, 1]} : vector<8x96xf32> to vector<8x32xf32>
    %484 = vector.extract_strided_slice %466 {offsets = [0, 64], sizes = [8, 32], strides = [1, 1]} : vector<8x96xf32> to vector<8x32xf32>
    %485 = arith.mulf %474, %484 : vector<8x32xf32>
    %486 = arith.addf %483, %485 : vector<8x32xf32>
    %487 = math.tanh %486 : vector<8x32xf32>
    %cst_114 = arith.constant 1.000000e+00 : f32
    %488 = vector.broadcast %cst_114 : f32 to vector<8x32xf32>
    %489 = arith.subf %488, %482 : vector<8x32xf32>
    %490 = arith.mulf %489, %487 : vector<8x32xf32>
    %491 = arith.mulf %482, %254 : vector<8x32xf32>
    %492 = arith.addf %490, %491 : vector<8x32xf32>
    %c0_115 = arith.constant 0 : index
    %c0_116 = arith.constant 0 : index
    %493 = vector.load %arg2[%c0_115, %c0_116] : memref<8x32xf32, #tpu.memory_space<vmem>>, vector<8x32xf32>
    %c0_117 = arith.constant 0 : index
    %c0_118 = arith.constant 0 : index
    %494 = vector.load %arg3[%c0_117, %c0_118] : memref<8x32xf32, #tpu.memory_space<vmem>>, vector<8x32xf32>
    %495 = tpu.concatenate %492, %493, %494 in 1 : vector<8x32xf32>, vector<8x32xf32>, vector<8x32xf32> -> vector<8x96xf32>
    %496 = arith.truncf %495 : vector<8x96xf32> to vector<8x96xbf16>
    %c0_119 = arith.constant 0 : index
    %c0_120 = arith.constant 0 : index
    %497 = vector.load %arg18[%c0_119, %c0_120] : memref<96x32xbf16, #tpu.memory_space<vmem>>, vector<96x32xbf16>
    %cst_121 = arith.constant dense<0.000000e+00> : vector<8x32xf32>
    %498 = tpu.matmul %496, %497, %cst_121 {dimension_numbers = #tpu.dot_dimension_numbers<[1], [0], [0], [1], [0, 0, 1, 1], [], []>} : vector<8x96xbf16>, vector<96x32xbf16>, vector<8x32xf32> -> vector<8x32xf32>
    %c0_122 = arith.constant 0 : index
    %c0_123 = arith.constant 0 : index
    %499 = vector.load %arg19[%c0_122, %c0_123] : memref<1x32xf32, #tpu.memory_space<vmem>>, vector<1x32xf32>
    %500 = vector.broadcast %499 : vector<1x32xf32> to vector<8x32xf32>
    %501 = arith.addf %498, %500 : vector<8x32xf32>
    %502 = math.tanh %501 : vector<8x32xf32>
    %503 = arith.truncf %502 : vector<8x32xf32> to vector<8x32xbf16>
    %c0_124 = arith.constant 0 : index
    %c0_125 = arith.constant 0 : index
    %504 = vector.load %arg20[%c0_124, %c0_125] : memref<32x2xbf16, #tpu.memory_space<vmem>>, vector<32x2xbf16>
    %cst_126 = arith.constant dense<0.000000e+00> : vector<8x2xf32>
    %505 = tpu.matmul %503, %504, %cst_126 {dimension_numbers = #tpu.dot_dimension_numbers<[1], [0], [0], [1], [0, 0, 1, 1], [], []>} : vector<8x32xbf16>, vector<32x2xbf16>, vector<8x2xf32> -> vector<8x2xf32>
    %c0_127 = arith.constant 0 : index
    %c0_128 = arith.constant 0 : index
    %506 = vector.load %arg21[%c0_127, %c0_128] : memref<1x2xf32, #tpu.memory_space<vmem>>, vector<1x2xf32>
    %507 = vector.broadcast %506 : vector<1x2xf32> to vector<8x2xf32>
    %508 = arith.addf %505, %507 : vector<8x2xf32>
    %cst_129 = arith.constant dense<0xFF800000> : vector<8xf32>
    %509 = vector.multi_reduction <maximumf>, %508, %cst_129 [1] : vector<8x2xf32> to vector<8xf32>
    %510 = vector.shape_cast %509 : vector<8xf32> to vector<8x1xf32>
    %511 = vector.broadcast %510 : vector<8x1xf32> to vector<8x2xf32>
    %512 = arith.subf %508, %511 : vector<8x2xf32>
    %513 = math.exp %512 : vector<8x2xf32>
    %cst_130 = arith.constant dense<0.000000e+00> : vector<8xf32>
    %514 = vector.multi_reduction <add>, %513, %cst_130 [1] : vector<8x2xf32> to vector<8xf32>
    %515 = vector.shape_cast %514 : vector<8xf32> to vector<8x1xf32>
    %516 = vector.broadcast %515 : vector<8x1xf32> to vector<8x2xf32>
    %517 = arith.divf %513, %516 : vector<8x2xf32>
    %c0_131 = arith.constant 0 : index
    %c0_132 = arith.constant 0 : index
    %518 = vector.load %arg22[%c0_131, %c0_132] : memref<8x2xf32, #tpu.memory_space<vmem>>, vector<8x2xf32>
    tpu.vector_store %arg22[%c0_131, %c0_132], %517 {strides = array<i32>} : memref<8x2xf32, #tpu.memory_space<vmem>>, vector<8x2xf32>,
    return
  }
}

</mosaic_0001>

<llo_original>
// kernel: dmn_forward.5
$region0: #{dmn_forward.5}
  #allocation0 [shape = 'u32[]', space=smem, size = 0x4, offset = 0x4, fixed_abs, tag = 'smem constant byte address 0x4 - core index']
  #allocation1 [shape = 'u32[144,128]{1,0:T(1,128)}', space=vmem, size = 0x12000, scoped, tag = 'internal scratch']
  %s0 = inlined_call_operand.vmem [shape: bf16[5,8,32], index: 0, kind: input, shape index: {}]
  %s1 = inlined_call_operand.vmem [shape: s32[8,1], index: 1, kind: input, shape index: {}]
  %s2 = inlined_call_operand.vmem [shape: bf16[32,96], index: 2, kind: input, shape index: {}]
  %s3 = inlined_call_operand.vmem [shape: bf16[32,96], index: 3, kind: input, shape index: {}]
  %s4 = inlined_call_operand.vmem [shape: f32[1,96], index: 4, kind: input, shape index: {}]
  %s5 = inlined_call_operand.vmem [shape: f32[1,96], index: 5, kind: input, shape index: {}]
  %s6 = inlined_call_operand.vmem [shape: f32[8,32], index: 6, kind: output, shape index: {}]
  %s7 = sld [smem:[#allocation0]]
  $region34: #{dmn_forward.5} parent=0
    _
  %s9 = ssub.s32 1, %s7
  %s10 = scalar_select 0, %s9, %s7
  // Predicated region
  $region2: #{dmn_forward.5} parent=0 // pred_check
    _
  $region3: #{dmn_forward.5} parent=0 // pred_check_branch
    %12 = sbr.rel (0) target = $region5
  $region4: #{dmn_forward.5} parent=0 // pred_region
    _
  $region5: #{dmn_forward.5} parent=0 // pred_fallthru
    _
  // Predicated region
  $region6: #{dmn_forward.5} parent=0 // pred_check
    _
  $region7: #{dmn_forward.5} parent=0 // pred_check_branch
    %14 = sbr.rel (0) target = $region9
  $region8: #{dmn_forward.5} parent=0 // pred_region
    _
  $region9: #{dmn_forward.5} parent=0 // pred_fallthru
    _
  // Predicated region
  $region10: #{dmn_forward.5} parent=0 // pred_check
    _
  $region11: #{dmn_forward.5} parent=0 // pred_check_branch
    %16 = sbr.rel (0) target = $region13
  $region12: #{dmn_forward.5} parent=0 // pred_region
    _
  $region13: #{dmn_forward.5} parent=0 // pred_fallthru
    _
  // Predicated region
  $region14: #{dmn_forward.5} parent=0 // pred_check
    _
  $region15: #{dmn_forward.5} parent=0 // pred_check_branch
    %18 = sbr.rel (0) target = $region17
  $region16: #{dmn_forward.5} parent=0 // pred_region
    _
  $region17: #{dmn_forward.5} parent=0 // pred_fallthru
    _
  // Predicated region
  $region18: #{dmn_forward.5} parent=0 // pred_check
    _
  $region19: #{dmn_forward.5} parent=0 // pred_check_branch
    %20 = sbr.rel (0) target = $region21
  $region20: #{dmn_forward.5} parent=0 // pred_region
    _
  $region21: #{dmn_forward.5} parent=0 // pred_fallthru
    _
  // Predicated region
  $region22: #{dmn_forward.5} parent=0 // pred_check
    _
  $region23: #{dmn_forward.5} parent=0 // pred_check_branch
    %22 = sbr.rel (0) target = $region25
  $region24: #{dmn_forward.5} parent=0 // pred_region
    _
  $region25: #{dmn_forward.5} parent=0 // pred_fallthru
    _
  %v24 = vld [vmem:[%s2] sm:$0xf]
  %v25 = vld [vmem:[%s2 + $0x4] sm:$0xf]
  %v26 = vld [vmem:[%s2 + $0x8] sm:$0xf]
  %v27 = vld [vmem:[%s2 + $0xc] sm:$0xf]
  %v28 = vld [vmem:[%s3] sm:$0xf]
  %v29 = vld [vmem:[%s3 + $0x4] sm:$0xf]
  %v30 = vld [vmem:[%s3 + $0x8] sm:$0xf]
  %v31 = vld [vmem:[%s3 + $0xc] sm:$0xf]
  %v32 = vld [vmem:[%s4] sm:$0x1]
  %v33 = vld [vmem:[%s5] sm:$0x1]
  %v34 = vld [vmem:[%s1] sm:$0xff]
  %v35 = vld [vmem:[%s0] sm:$0xf]
  %v37 = vlaneseq
  %v38 = vshrl.u32 %v37, 7
  %v39 = vsub.s32 0, %v38
  %v40 = vrot.slane %v32, %v39
  %v46 = vunpack.c.l.b16 %v24
  %v47 = vunpack.c.l.b16 %v25
  %v48 = vunpack.c.l.b16 %v26
  %v49 = vunpack.c.l.b16 %v27
  %v50 = vpack.c.b16 %v47, %v46
  %v51 = vpack.c.b16 %v49, %v48
  %vm54 = vcmask 261120
  %v56 = vsel %vm54, %v35, 0
  %58 = vmatprep.subr.bf16.mxu0 0
  %59 = vmatpush1.bf16.msra.mxu0 %v50
  %60 = vmatprep.subr.bf16.mxu0 0
  %61 = vmatpush1.bf16.msra.mxu0 %v51
  %62 = vmatprep.subr.bf16.mxu0 0
  %63 = vmatpush1.bf16.msra.mxu0 0
  %64 = vmatprep.subr.bf16.mxu0 0
  %65 = vmatpush1.bf16.msra.mxu0 0
  %66 = vmatprep.subr.bf16.mxu0 0
  %67 = vmatpush1.bf16.msra.mxu0 0
  %68 = vmatprep.subr.bf16.mxu0 0
  %69 = vmatpush1.bf16.msra.mxu0 0
  %70 = vmatprep.subr.bf16.mxu0 0
  %71 = vmatpush1.bf16.msra.mxu0 0
  %72 = vmatprep.subr.bf16.mxu0 0
  %73 = vmatpush1.bf16.msra.mxu0 0
  %74 = vmatprep.subr.bf16.mxu0 0
  %75 = vmatpush1.bf16.msra.mxu0 0
  %76 = vmatprep.subr.bf16.mxu0 0
  %77 = vmatpush1.bf16.msra.mxu0 0
  %78 = vmatprep.subr.bf16.mxu0 0
  %79 = vmatpush1.bf16.msra.mxu0 0
  %80 = vmatprep.subr.bf16.mxu0 0
  %81 = vmatpush1.bf16.msra.mxu0 0
  %82 = vmatprep.subr.bf16.mxu0 0
  %83 = vmatpush1.bf16.msra.mxu0 0
  %84 = vmatprep.subr.bf16.mxu0 0
  %85 = vmatpush1.bf16.msra.mxu0 0
  %86 = vmatprep.subr.bf16.mxu0 0
  %87 = vmatpush1.bf16.msra.mxu0 0
  %88 = vmatprep.subr.bf16.mxu0 0
  %89 = vmatpush1.bf16.msra.mxu0 0
  %90 = vmatprep.mubr.bf16.mxu0 0
  %91 = vmatmul.mubr.bf16.gmra.mrb[0].mxu0 %v56
  %v92 = vpop.f32.mrb[0].mxu0
  %v93 = vadd.f32 %v40, %v92
  %v94 = vpop.f32.mrb[0].mxu0
  %v95 = vpop.f32.mrb[0].mxu0
  %v96 = vpop.f32.mrb[0].mxu0
  %97 = vdwg.mxu0
  %v99 = vlaneseq
  %v100 = vshrl.u32 %v99, 7
  %v101 = vsub.s32 0, %v100
  %v102 = vrot.slane %v33, %v101
  %v108 = vunpack.c.l.b16 %v28
  %v109 = vunpack.c.l.b16 %v29
  %v110 = vunpack.c.l.b16 %v30
  %v111 = vunpack.c.l.b16 %v31
  %v112 = vpack.c.b16 %v109, %v108
  %v113 = vpack.c.b16 %v111, %v110
  %v117 = vsel %vm54, 0, 0
  %119 = vmatprep.subr.bf16.mxu0 0
  %120 = vmatpush1.bf16.msra.mxu0 %v112
  %121 = vmatprep.subr.bf16.mxu0 0
  %122 = vmatpush1.bf16.msra.mxu0 %v113
  %123 = vmatprep.subr.bf16.mxu0 0
  %124 = vmatpush1.bf16.msra.mxu0 0
  %125 = vmatprep.subr.bf16.mxu0 0
  %126 = vmatpush1.bf16.msra.mxu0 0
  %127 = vmatprep.subr.bf16.mxu0 0
  %128 = vmatpush1.bf16.msra.mxu0 0
  %129 = vmatprep.subr.bf16.mxu0 0
  %130 = vmatpush1.bf16.msra.mxu0 0
  %131 = vmatprep.subr.bf16.mxu0 0
  %132 = vmatpush1.bf16.msra.mxu0 0
  %133 = vmatprep.subr.bf16.mxu0 0
  %134 = vmatpush1.bf16.msra.mxu0 0
  %135 = vmatprep.subr.bf16.mxu0 0
  %136 = vmatpush1.bf16.msra.mxu0 0
  %137 = vmatprep.subr.bf16.mxu0 0
  %138 = vmatpush1.bf16.msra.mxu0 0
  %139 = vmatprep.subr.bf16.mxu0 0
  %140 = vmatpush1.bf16.msra.mxu0 0
  %141 = vmatprep.subr.bf16.mxu0 0
  %142 = vmatpush1.bf16.msra.mxu0 0
  %143 = vmatprep.subr.bf16.mxu0 0
  %144 = vmatpush1.bf16.msra.mxu0 0
  %145 = vmatprep.subr.bf16.mxu0 0
  %146 = vmatpush1.bf16.msra.mxu0 0
  %147 = vmatprep.subr.bf16.mxu0 0
  %148 = vmatpush1.bf16.msra.mxu0 0
  %149 = vmatprep.subr.bf16.mxu0 0
  %150 = vmatpush1.bf16.msra.mxu0 0
  %151 = vmatprep.mubr.bf16.mxu0 0
  %152 = vmatmul.mubr.bf16.gmra.mrb[0].mxu0 %v117
  %v153 = vpop.f32.mrb[0].mxu0
  %v154 = vadd.f32 %v102, %v153
  %v155 = vpop.f32.mrb[0].mxu0
  %v156 = vpop.f32.mrb[0].mxu0
  %v157 = vpop.f32.mrb[0].mxu0
  %158 = vdwg.mxu0
  %v159 = vadd.f32 %v93, %v154
  %v160 = vxor.u32 %v159, 2147483648
  %v161 = vmul.f32 %v160, 1.442695
  %v162 = vpow.pop %v161
  %v163 = vadd.f32 %v162, 1.0
  %v164 = vrcp.pop %v163
  %v165 = vmul.f32 1.0, %v164
  %167 = vrot.lane.b32.xlu0 %v154, 64
  %v168 = vpop.permute.xlu0 %167
  %v170 = vmul.f32 %v165, %v168
  %172 = vrot.lane.b32.xlu0 %v170, 64
  %v173 = vpop.permute.xlu0 %172
  %v175 = vadd.f32 %v93, %v173
  %v176 = vtanh.pop %v175
  %v177 = vsub.f32 1.0, %v165
  %179 = vrot.lane.b32.xlu0 %v176, 96
  %v180 = vpop.permute.xlu0 %179
  %v182 = vmul.f32 %v177, %v180
  %v183 = vmul.f32 %v165, 0.0
  %v184 = vadd.f32 %v182, %v183
  %vm185 = vcmp.ge.s32.totalorder %v34, 0
  %v186 = vsel %vm185, 1, 0
  %187 = vset.pattern.permute.xlu0 0
  %188 = vperm.xlu0 %187, %v186
  %v189 = vpop.permute.xlu0 %188
  %vm190 = vcmp.eq.s32.totalorder %v189, 1
  %v191 = vsel %vm190, %v184, 0.0
  %s192 = scalar_lea.vmem %s0, 4
  %v193 = vld [vmem:[%s192] sm:$0xf]
  %v195 = vsel %vm54, %v193, 0
  %197 = vmatprep.subr.bf16.mxu0 0
  %198 = vmatpush1.bf16.msra.mxu0 %v50
  %199 = vmatprep.subr.bf16.mxu0 0
  %200 = vmatpush1.bf16.msra.mxu0 %v51
  %201 = vmatprep.subr.bf16.mxu0 0
  %202 = vmatpush1.bf16.msra.mxu0 0
  %203 = vmatprep.subr.bf16.mxu0 0
  %204 = vmatpush1.bf16.msra.mxu0 0
  %205 = vmatprep.subr.bf16.mxu0 0
  %206 = vmatpush1.bf16.msra.mxu0 0
  %207 = vmatprep.subr.bf16.mxu0 0
  %208 = vmatpush1.bf16.msra.mxu0 0
  %209 = vmatprep.subr.bf16.mxu0 0
  %210 = vmatpush1.bf16.msra.mxu0 0
  %211 = vmatprep.subr.bf16.mxu0 0
  %212 = vmatpush1.bf16.msra.mxu0 0
  %213 = vmatprep.subr.bf16.mxu0 0
  %214 = vmatpush1.bf16.msra.mxu0 0
  %215 = vmatprep.subr.bf16.mxu0 0
  %216 = vmatpush1.bf16.msra.mxu0 0
  %217 = vmatprep.subr.bf16.mxu0 0
  %218 = vmatpush1.bf16.msra.mxu0 0
  %219 = vmatprep.subr.bf16.mxu0 0
  %220 = vmatpush1.bf16.msra.mxu0 0
  %221 = vmatprep.subr.bf16.mxu0 0
  %222 = vmatpush1.bf16.msra.mxu0 0
  %223 = vmatprep.subr.bf16.mxu0 0
  %224 = vmatpush1.bf16.msra.mxu0 0
  %225 = vmatprep.subr.bf16.mxu0 0
  %226 = vmatpush1.bf16.msra.mxu0 0
  %227 = vmatprep.subr.bf16.mxu0 0
  %228 = vmatpush1.bf16.msra.mxu0 0
  %229 = vmatprep.mubr.bf16.mxu0 0
  %230 = vmatmul.mubr.bf16.gmra.mrb[0].mxu0 %v195
  %v231 = vpop.f32.mrb[0].mxu0
  %v232 = vadd.f32 %v40, %v231
  %v233 = vpop.f32.mrb[0].mxu0
  %v234 = vpop.f32.mrb[0].mxu0
  %v235 = vpop.f32.mrb[0].mxu0
  %236 = vdwg.mxu0
  %v237 = vpack.c.bf16 %v191, %v191
  %239 = vrot.lane.b32.xlu0 %v237, 96
  %v240 = vpop.permute.xlu0 %239
  %v242 = vsel %vm54, %v240, 0
  %244 = vmatprep.subr.bf16.mxu0 0
  %245 = vmatpush1.bf16.msra.mxu0 %v112
  %246 = vmatprep.subr.bf16.mxu0 0
  %247 = vmatpush1.bf16.msra.mxu0 %v113
  %248 = vmatprep.subr.bf16.mxu0 0
  %249 = vmatpush1.bf16.msra.mxu0 0
  %250 = vmatprep.subr.bf16.mxu0 0
  %251 = vmatpush1.bf16.msra.mxu0 0
  %252 = vmatprep.subr.bf16.mxu0 0
  %253 = vmatpush1.bf16.msra.mxu0 0
  %254 = vmatprep.subr.bf16.mxu0 0
  %255 = vmatpush1.bf16.msra.mxu0 0
  %256 = vmatprep.subr.bf16.mxu0 0
  %257 = vmatpush1.bf16.msra.mxu0 0
  %258 = vmatprep.subr.bf16.mxu0 0
  %259 = vmatpush1.bf16.msra.mxu0 0
  %260 = vmatprep.subr.bf16.mxu0 0
  %261 = vmatpush1.bf16.msra.mxu0 0
  %262 = vmatprep.subr.bf16.mxu0 0
  %263 = vmatpush1.bf16.msra.mxu0 0
  %264 = vmatprep.subr.bf16.mxu0 0
  %265 = vmatpush1.bf16.msra.mxu0 0
  %266 = vmatprep.subr.bf16.mxu0 0
  %267 = vmatpush1.bf16.msra.mxu0 0
  %268 = vmatprep.subr.bf16.mxu0 0
  %269 = vmatpush1.bf16.msra.mxu0 0
  %270 = vmatprep.subr.bf16.mxu0 0
  %271 = vmatpush1.bf16.msra.mxu0 0
  %272 = vmatprep.subr.bf16.mxu0 0
  %273 = vmatpush1.bf16.msra.mxu0 0
  %274 = vmatprep.subr.bf16.mxu0 0
  %275 = vmatpush1.bf16.msra.mxu0 0
  %276 = vmatprep.mubr.bf16.mxu0 0
  %277 = vmatmul.mubr.bf16.gmra.mrb[0].mxu0 %v242
  %v278 = vpop.f32.mrb[0].mxu0
  %v279 = vadd.f32 %v102, %v278
  %v280 = vpop.f32.mrb[0].mxu0
  %v281 = vpop.f32.mrb[0].mxu0
  %v282 = vpop.f32.mrb[0].mxu0
  %283 = vdwg.mxu0
  %v284 = vadd.f32 %v232, %v279
  %v285 = vxor.u32 %v284, 2147483648
  %v286 = vmul.f32 %v285, 1.442695
  %v287 = vpow.pop %v286
  %v288 = vadd.f32 %v287, 1.0
  %v289 = vrcp.pop %v288
  %v290 = vmul.f32 1.0, %v289
  %292 = vrot.lane.b32.xlu0 %v279, 64
  %v293 = vpop.permute.xlu0 %292
  %v295 = vmul.f32 %v290, %v293
  %297 = vrot.lane.b32.xlu0 %v295, 64
  %v298 = vpop.permute.xlu0 %297
  %v300 = vadd.f32 %v232, %v298
  %v301 = vtanh.pop %v300
  %v302 = vsub.f32 1.0, %v290
  %304 = vrot.lane.b32.xlu0 %v301, 96
  %v305 = vpop.permute.xlu0 %304
  %v307 = vmul.f32 %v302, %v305
  %v308 = vmul.f32 %v290, %v191
  %v309 = vadd.f32 %v307, %v308
  %vm310 = vcmp.ge.s32.totalorder %v34, 1
  %v311 = vsel %vm310, 1, 0
  %312 = vset.pattern.permute.xlu0 0
  %313 = vperm.xlu0 %312, %v311
  %v314 = vpop.permute.xlu0 %313
  %vm315 = vcmp.eq.s32.totalorder %v314, 1
  %v316 = vsel %vm315, %v309, %v191
  %s317 = scalar_lea.vmem %s0, 8
  %v318 = vld [vmem:[%s317] sm:$0xf]
  %v320 = vsel %vm54, %v318, 0
  %322 = vmatprep.subr.bf16.mxu0 0
  %323 = vmatpush1.bf16.msra.mxu0 %v50
  %324 = vmatprep.subr.bf16.mxu0 0
  %325 = vmatpush1.bf16.msra.mxu0 %v51
  %326 = vmatprep.subr.bf16.mxu0 0
  %327 = vmatpush1.bf16.msra.mxu0 0
  %328 = vmatprep.subr.bf16.mxu0 0
  %329 = vmatpush1.bf16.msra.mxu0 0
  %330 = vmatprep.subr.bf16.mxu0 0
  %331 = vmatpush1.bf16.msra.mxu0 0
  %332 = vmatprep.subr.bf16.mxu0 0
  %333 = vmatpush1.bf16.msra.mxu0 0
  %334 = vmatprep.subr.bf16.mxu0 0
  %335 = vmatpush1.bf16.msra.mxu0 0
  %336 = vmatprep.subr.bf16.mxu0 0
  %337 = vmatpush1.bf16.msra.mxu0 0
  %338 = vmatprep.subr.bf16.mxu0 0
  %339 = vmatpush1.bf16.msra.mxu0 0
  %340 = vmatprep.subr.bf16.mxu0 0
  %341 = vmatpush1.bf16.msra.mxu0 0
  %342 = vmatprep.subr.bf16.mxu0 0
  %343 = vmatpush1.bf16.msra.mxu0 0
  %344 = vmatprep.subr.bf16.mxu0 0
  %345 = vmatpush1.bf16.msra.mxu0 0
  %346 = vmatprep.subr.bf16.mxu0 0
  %347 = vmatpush1.bf16.msra.mxu0 0
  %348 = vmatprep.subr.bf16.mxu0 0
  %349 = vmatpush1.bf16.msra.mxu0 0
  %350 = vmatprep.subr.bf16.mxu0 0
  %351 = vmatpush1.bf16.msra.mxu0 0
  %352 = vmatprep.subr.bf16.mxu0 0
  %353 = vmatpush1.bf16.msra.mxu0 0
  %354 = vmatprep.mubr.bf16.mxu0 0
  %355 = vmatmul.mubr.bf16.gmra.mrb[0].mxu0 %v320
  %v356 = vpop.f32.mrb[0].mxu0
  %v357 = vadd.f32 %v40, %v356
  %v358 = vpop.f32.mrb[0].mxu0
  %v359 = vpop.f32.mrb[0].mxu0
  %v360 = vpop.f32.mrb[0].mxu0
  %361 = vdwg.mxu0
  %v362 = vpack.c.bf16 %v316, %v316
  %364 = vrot.lane.b32.xlu0 %v362, 96
  %v365 = vpop.permute.xlu0 %364
  %v367 = vsel %vm54, %v365, 0
  %369 = vmatprep.subr.bf16.mxu0 0
  %370 = vmatpush1.bf16.msra.mxu0 %v112
  %371 = vmatprep.subr.bf16.mxu0 0
  %372 = vmatpush1.bf16.msra.mxu0 %v113
  %373 = vmatprep.subr.bf16.mxu0 0
  %374 = vmatpush1.bf16.msra.mxu0 0
  %375 = vmatprep.subr.bf16.mxu0 0
  %376 = vmatpush1.bf16.msra.mxu0 0
  %377 = vmatprep.subr.bf16.mxu0 0
  %378 = vmatpush1.bf16.msra.mxu0 0
  %379 = vmatprep.subr.bf16.mxu0 0
  %380 = vmatpush1.bf16.msra.mxu0 0
  %381 = vmatprep.subr.bf16.mxu0 0
  %382 = vmatpush1.bf16.msra.mxu0 0
  %383 = vmatprep.subr.bf16.mxu0 0
  %384 = vmatpush1.bf16.msra.mxu0 0
  %385 = vmatprep.subr.bf16.mxu0 0
  %386 = vmatpush1.bf16.msra.mxu0 0
  %387 = vmatprep.subr.bf16.mxu0 0
  %388 = vmatpush1.bf16.msra.mxu0 0
  %389 = vmatprep.subr.bf16.mxu0 0
  %390 = vmatpush1.bf16.msra.mxu0 0
  %391 = vmatprep.subr.bf16.mxu0 0
  %392 = vmatpush1.bf16.msra.mxu0 0
  %393 = vmatprep.subr.bf16.mxu0 0
  %394 = vmatpush1.bf16.msra.mxu0 0
  %395 = vmatprep.subr.bf16.mxu0 0
  %396 = vmatpush1.bf16.msra.mxu0 0
  %397 = vmatprep.subr.bf16.mxu0 0
  %398 = vmatpush1.bf16.msra.mxu0 0
  %399 = vmatprep.subr.bf16.mxu0 0
  %400 = vmatpush1.bf16.msra.mxu0 0
  %401 = vmatprep.mubr.bf16.mxu0 0
  %402 = vmatmul.mubr.bf16.gmra.mrb[0].mxu0 %v367
  %v403 = vpop.f32.mrb[0].mxu0
  %v404 = vadd.f32 %v102, %v403
  %v405 = vpop.f32.mrb[0].mxu0
  %v406 = vpop.f32.mrb[0].mxu0
  %v407 = vpop.f32.mrb[0].mxu0
  %408 = vdwg.mxu0
  %v409 = vadd.f32 %v357, %v404
  %v410 = vxor.u32 %v409, 2147483648
  %v411 = vmul.f32 %v410, 1.442695
  %v412 = vpow.pop %v411
  %v413 = vadd.f32 %v412, 1.0
  %v414 = vrcp.pop %v413
  %v415 = vmul.f32 1.0, %v414
  %417 = vrot.lane.b32.xlu0 %v404, 64
  %v418 = vpop.permute.xlu0 %417
  %v420 = vmul.f32 %v415, %v418
  %422 = vrot.lane.b32.xlu0 %v420, 64
  %v423 = vpop.permute.xlu0 %422
  %v425 = vadd.f32 %v357, %v423
  %v426 = vtanh.pop %v425
  %v427 = vsub.f32 1.0, %v415
  %429 = vrot.lane.b32.xlu0 %v426, 96
  %v430 = vpop.permute.xlu0 %429
  %v432 = vmul.f32 %v427, %v430
  %v433 = vmul.f32 %v415, %v316
  %v434 = vadd.f32 %v432, %v433
  %vm435 = vcmp.ge.s32.totalorder %v34, 2
  %v436 = vsel %vm435, 1, 0
  %437 = vset.pattern.permute.xlu0 0
  %438 = vperm.xlu0 %437, %v436
  %v439 = vpop.permute.xlu0 %438
  %vm440 = vcmp.eq.s32.totalorder %v439, 1
  %v441 = vsel %vm440, %v434, %v316
  %s442 = scalar_lea.vmem %s0, 12
  %v443 = vld [vmem:[%s442] sm:$0xf]
  %v445 = vsel %vm54, %v443, 0
  %447 = vmatprep.subr.bf16.mxu0 0
  %448 = vmatpush1.bf16.msra.mxu0 %v50
  %449 = vmatprep.subr.bf16.mxu0 0
  %450 = vmatpush1.bf16.msra.mxu0 %v51
  %451 = vmatprep.subr.bf16.mxu0 0
  %452 = vmatpush1.bf16.msra.mxu0 0
  %453 = vmatprep.subr.bf16.mxu0 0
  %454 = vmatpush1.bf16.msra.mxu0 0
  %455 = vmatprep.subr.bf16.mxu0 0
  %456 = vmatpush1.bf16.msra.mxu0 0
  %457 = vmatprep.subr.bf16.mxu0 0
  %458 = vmatpush1.bf16.msra.mxu0 0
  %459 = vmatprep.subr.bf16.mxu0 0
  %460 = vmatpush1.bf16.msra.mxu0 0
  %461 = vmatprep.subr.bf16.mxu0 0
  %462 = vmatpush1.bf16.msra.mxu0 0
  %463 = vmatprep.subr.bf16.mxu0 0
  %464 = vmatpush1.bf16.msra.mxu0 0
  %465 = vmatprep.subr.bf16.mxu0 0
  %466 = vmatpush1.bf16.msra.mxu0 0
  %467 = vmatprep.subr.bf16.mxu0 0
  %468 = vmatpush1.bf16.msra.mxu0 0
  %469 = vmatprep.subr.bf16.mxu0 0
  %470 = vmatpush1.bf16.msra.mxu0 0
  %471 = vmatprep.subr.bf16.mxu0 0
  %472 = vmatpush1.bf16.msra.mxu0 0
  %473 = vmatprep.subr.bf16.mxu0 0
  %474 = vmatpush1.bf16.msra.mxu0 0
  %475 = vmatprep.subr.bf16.mxu0 0
  %476 = vmatpush1.bf16.msra.mxu0 0
  %477 = vmatprep.subr.bf16.mxu0 0
  %478 = vmatpush1.bf16.msra.mxu0 0
  %479 = vmatprep.mubr.bf16.mxu0 0
  %480 = vmatmul.mubr.bf16.gmra.mrb[0].mxu0 %v445
  %v481 = vpop.f32.mrb[0].mxu0
  %v482 = vadd.f32 %v40, %v481
  %v483 = vpop.f32.mrb[0].mxu0
  %v484 = vpop.f32.mrb[0].mxu0
  %v485 = vpop.f32.mrb[0].mxu0
  %486 = vdwg.mxu0
  %v487 = vpack.c.bf16 %v441, %v441
  %489 = vrot.lane.b32.xlu0 %v487, 96
  %v490 = vpop.permute.xlu0 %489
  %v492 = vsel %vm54, %v490, 0
  %494 = vmatprep.subr.bf16.mxu0 0
  %495 = vmatpush1.bf16.msra.mxu0 %v112
  %496 = vmatprep.subr.bf16.mxu0 0
  %497 = vmatpush1.bf16.msra.mxu0 %v113
  %498 = vmatprep.subr.bf16.mxu0 0
  %499 = vmatpush1.bf16.msra.mxu0 0
  %500 = vmatprep.subr.bf16.mxu0 0
  %501 = vmatpush1.bf16.msra.mxu0 0
  %502 = vmatprep.subr.bf16.mxu0 0
  %503 = vmatpush1.bf16.msra.mxu0 0
  %504 = vmatprep.subr.bf16.mxu0 0
  %505 = vmatpush1.bf16.msra.mxu0 0
  %506 = vmatprep.subr.bf16.mxu0 0
  %507 = vmatpush1.bf16.msra.mxu0 0
  %508 = vmatprep.subr.bf16.mxu0 0
  %509 = vmatpush1.bf16.msra.mxu0 0
  %510 = vmatprep.subr.bf16.mxu0 0
  %511 = vmatpush1.bf16.msra.mxu0 0
  %512 = vmatprep.subr.bf16.mxu0 0
  %513 = vmatpush1.bf16.msra.mxu0 0
  %514 = vmatprep.subr.bf16.mxu0 0
  %515 = vmatpush1.bf16.msra.mxu0 0
  %516 = vmatprep.subr.bf16.mxu0 0
  %517 = vmatpush1.bf16.msra.mxu0 0
  %518 = vmatprep.subr.bf16.mxu0 0
  %519 = vmatpush1.bf16.msra.mxu0 0
  %520 = vmatprep.subr.bf16.mxu0 0
  %521 = vmatpush1.bf16.msra.mxu0 0
  %522 = vmatprep.subr.bf16.mxu0 0
  %523 = vmatpush1.bf16.msra.mxu0 0
  %524 = vmatprep.subr.bf16.mxu0 0
  %525 = vmatpush1.bf16.msra.mxu0 0
  %526 = vmatprep.mubr.bf16.mxu0 0
  %527 = vmatmul.mubr.bf16.gmra.mrb[0].mxu0 %v492
  %v528 = vpop.f32.mrb[0].mxu0
  %v529 = vadd.f32 %v102, %v528
  %v530 = vpop.f32.mrb[0].mxu0
  %v531 = vpop.f32.mrb[0].mxu0
  %v532 = vpop.f32.mrb[0].mxu0
  %533 = vdwg.mxu0
  %v534 = vadd.f32 %v482, %v529
  %v535 = vxor.u32 %v534, 2147483648
  %v536 = vmul.f32 %v535, 1.442695
  %v537 = vpow.pop %v536
  %v538 = vadd.f32 %v537, 1.0
  %v539 = vrcp.pop %v538
  %v540 = vmul.f32 1.0, %v539
  %542 = vrot.lane.b32.xlu0 %v529, 64
  %v543 = vpop.permute.xlu0 %542
  %v545 = vmul.f32 %v540, %v543
  %547 = vrot.lane.b32.xlu0 %v545, 64
  %v548 = vpop.permute.xlu0 %547
  %v550 = vadd.f32 %v482, %v548
  %v551 = vtanh.pop %v550
  %v552 = vsub.f32 1.0, %v540
  %554 = vrot.lane.b32.xlu0 %v551, 96
  %v555 = vpop.permute.xlu0 %554
  %v557 = vmul.f32 %v552, %v555
  %v558 = vmul.f32 %v540, %v441
  %v559 = vadd.f32 %v557, %v558
  %vm560 = vcmp.ge.s32.totalorder %v34, 3
  %v561 = vsel %vm560, 1, 0
  %562 = vset.pattern.permute.xlu0 0
  %563 = vperm.xlu0 %562, %v561
  %v564 = vpop.permute.xlu0 %563
  %vm565 = vcmp.eq.s32.totalorder %v564, 1
  %v566 = vsel %vm565, %v559, %v441
  %s567 = scalar_lea.vmem %s0, 16
  %v568 = vld [vmem:[%s567] sm:$0xf]
  %v570 = vsel %vm54, %v568, 0
  %572 = vmatprep.subr.bf16.mxu0 0
  %573 = vmatpush1.bf16.msra.mxu0 %v50
  %574 = vmatprep.subr.bf16.mxu0 0
  %575 = vmatpush1.bf16.msra.mxu0 %v51
  %576 = vmatprep.subr.bf16.mxu0 0
  %577 = vmatpush1.bf16.msra.mxu0 0
  %578 = vmatprep.subr.bf16.mxu0 0
  %579 = vmatpush1.bf16.msra.mxu0 0
  %580 = vmatprep.subr.bf16.mxu0 0
  %581 = vmatpush1.bf16.msra.mxu0 0
  %582 = vmatprep.subr.bf16.mxu0 0
  %583 = vmatpush1.bf16.msra.mxu0 0
  %584 = vmatprep.subr.bf16.mxu0 0
  %585 = vmatpush1.bf16.msra.mxu0 0
  %586 = vmatprep.subr.bf16.mxu0 0
  %587 = vmatpush1.bf16.msra.mxu0 0
  %588 = vmatprep.subr.bf16.mxu0 0
  %589 = vmatpush1.bf16.msra.mxu0 0
  %590 = vmatprep.subr.bf16.mxu0 0
  %591 = vmatpush1.bf16.msra.mxu0 0
  %592 = vmatprep.subr.bf16.mxu0 0
  %593 = vmatpush1.bf16.msra.mxu0 0
  %594 = vmatprep.subr.bf16.mxu0 0
  %595 = vmatpush1.bf16.msra.mxu0 0
  %596 = vmatprep.subr.bf16.mxu0 0
  %597 = vmatpush1.bf16.msra.mxu0 0
  %598 = vmatprep.subr.bf16.mxu0 0
  %599 = vmatpush1.bf16.msra.mxu0 0
  %600 = vmatprep.subr.bf16.mxu0 0
  %601 = vmatpush1.bf16.msra.mxu0 0
  %602 = vmatprep.subr.bf16.mxu0 0
  %603 = vmatpush1.bf16.msra.mxu0 0
  %604 = vmatprep.mubr.bf16.mxu0 0
  %605 = vmatmul.mubr.bf16.gmra.mrb[0].mxu0 %v570
  %v606 = vpop.f32.mrb[0].mxu0
  %v607 = vadd.f32 %v40, %v606
  %v608 = vpop.f32.mrb[0].mxu0
  %v609 = vpop.f32.mrb[0].mxu0
  %v610 = vpop.f32.mrb[0].mxu0
  %611 = vdwg.mxu0
  %v612 = vpack.c.bf16 %v566, %v566
  %614 = vrot.lane.b32.xlu0 %v612, 96
  %v615 = vpop.permute.xlu0 %614
  %v617 = vsel %vm54, %v615, 0
  %619 = vmatprep.subr.bf16.mxu0 0
  %620 = vmatpush1.bf16.msra.mxu0 %v112
  %621 = vmatprep.subr.bf16.mxu0 0
  %622 = vmatpush1.bf16.msra.mxu0 %v113
  %623 = vmatprep.subr.bf16.mxu0 0
  %624 = vmatpush1.bf16.msra.mxu0 0
  %625 = vmatprep.subr.bf16.mxu0 0
  %626 = vmatpush1.bf16.msra.mxu0 0
  %627 = vmatprep.subr.bf16.mxu0 0
  %628 = vmatpush1.bf16.msra.mxu0 0
  %629 = vmatprep.subr.bf16.mxu0 0
  %630 = vmatpush1.bf16.msra.mxu0 0
  %631 = vmatprep.subr.bf16.mxu0 0
  %632 = vmatpush1.bf16.msra.mxu0 0
  %633 = vmatprep.subr.bf16.mxu0 0
  %634 = vmatpush1.bf16.msra.mxu0 0
  %635 = vmatprep.subr.bf16.mxu0 0
  %636 = vmatpush1.bf16.msra.mxu0 0
  %637 = vmatprep.subr.bf16.mxu0 0
  %638 = vmatpush1.bf16.msra.mxu0 0
  %639 = vmatprep.subr.bf16.mxu0 0
  %640 = vmatpush1.bf16.msra.mxu0 0
  %641 = vmatprep.subr.bf16.mxu0 0
  %642 = vmatpush1.bf16.msra.mxu0 0
  %643 = vmatprep.subr.bf16.mxu0 0
  %644 = vmatpush1.bf16.msra.mxu0 0
  %645 = vmatprep.subr.bf16.mxu0 0
  %646 = vmatpush1.bf16.msra.mxu0 0
  %647 = vmatprep.subr.bf16.mxu0 0
  %648 = vmatpush1.bf16.msra.mxu0 0
  %649 = vmatprep.subr.bf16.mxu0 0
  %650 = vmatpush1.bf16.msra.mxu0 0
  %651 = vmatprep.mubr.bf16.mxu0 0
  %652 = vmatmul.mubr.bf16.gmra.mrb[0].mxu0 %v617
  %v653 = vpop.f32.mrb[0].mxu0
  %v654 = vadd.f32 %v102, %v653
  %v655 = vpop.f32.mrb[0].mxu0
  %v656 = vpop.f32.mrb[0].mxu0
  %v657 = vpop.f32.mrb[0].mxu0
  %658 = vdwg.mxu0
  %v659 = vadd.f32 %v607, %v654
  %v660 = vxor.u32 %v659, 2147483648
  %v661 = vmul.f32 %v660, 1.442695
  %v662 = vpow.pop %v661
  %v663 = vadd.f32 %v662, 1.0
  %v664 = vrcp.pop %v663
  %v665 = vmul.f32 1.0, %v664
  %667 = vrot.lane.b32.xlu0 %v654, 64
  %v668 = vpop.permute.xlu0 %667
  %v670 = vmul.f32 %v665, %v668
  %672 = vrot.lane.b32.xlu0 %v670, 64
  %v673 = vpop.permute.xlu0 %672
  %v675 = vadd.f32 %v607, %v673
  %v676 = vtanh.pop %v675
  %v677 = vsub.f32 1.0, %v665
  %679 = vrot.lane.b32.xlu0 %v676, 96
  %v680 = vpop.permute.xlu0 %679
  %v682 = vmul.f32 %v677, %v680
  %v683 = vmul.f32 %v665, %v566
  %v684 = vadd.f32 %v682, %v683
  %vm685 = vcmp.ge.s32.totalorder %v34, 4
  %v686 = vsel %vm685, 1, 0
  %687 = vset.pattern.permute.xlu0 0
  %688 = vperm.xlu0 %687, %v686
  %v689 = vpop.permute.xlu0 %688
  %vm690 = vcmp.eq.s32.totalorder %v689, 1
  %v691 = vsel %vm690, %v684, %v566
  %693 = vrot.lane.b32.xlu0 %v691, 96
  %v694 = vpop.permute.xlu0 %693
  %696 = vst.msk [vmem:[%s6] sm:$0xff] %vm54, %v694
  // Predicated region
  $region26: #{dmn_forward.5} parent=0 // pred_check
    _
  $region27: #{dmn_forward.5} parent=0 // pred_check_branch
    %698 = sbr.rel (0) target = $region29
  $region28: #{dmn_forward.5} parent=0 // pred_region
    _
  $region29: #{dmn_forward.5} parent=0 // pred_fallthru
    _
  // Predicated region
  $region30: #{dmn_forward.5} parent=0 // pred_check
    _
  $region31: #{dmn_forward.5} parent=0 // pred_check_branch
    %700 = sbr.rel (0) target = $region33
  $region32: #{dmn_forward.5} parent=0 // pred_region
    _
  $region33: #{dmn_forward.5} parent=0 // pred_fallthru
    _

// kernel: dmn_forward.6
$region0: #{dmn_forward.6}
  #allocation0 [shape = 'u32[]', space=smem, size = 0x4, offset = 0x4, fixed_abs, tag = 'smem constant byte address 0x4 - core index']
  #allocation1 [shape = 'u32[144,128]{1,0:T(1,128)}', space=vmem, size = 0x12000, scoped, tag = 'internal scratch']
  %s0 = inlined_call_operand.vmem [shape: bf16[4,8,32], index: 0, kind: input, shape index: {}]
  %s1 = inlined_call_operand.vmem [shape: s32[8,1], index: 1, kind: input, shape index: {}]
  %s2 = inlined_call_operand.vmem [shape: bf16[32,96], index: 2, kind: input, shape index: {}]
  %s3 = inlined_call_operand.vmem [shape: bf16[32,96], index: 3, kind: input, shape index: {}]
  %s4 = inlined_call_operand.vmem [shape: f32[1,96], index: 4, kind: input, shape index: {}]
  %s5 = inlined_call_operand.vmem [shape: f32[1,96], index: 5, kind: input, shape index: {}]
  %s6 = inlined_call_operand.vmem [shape: f32[8,32], index: 6, kind: output, shape index: {}]
  %s7 = sld [smem:[#allocation0]]
  $region34: #{dmn_forward.6} parent=0
    _
  %s9 = ssub.s32 1, %s7
  %s10 = scalar_select 0, %s9, %s7
  // Predicated region
  $region2: #{dmn_forward.6} parent=0 // pred_check
    _
  $region3: #{dmn_forward.6} parent=0 // pred_check_branch
    %12 = sbr.rel (0) target = $region5
  $region4: #{dmn_forward.6} parent=0 // pred_region
    _
  $region5: #{dmn_forward.6} parent=0 // pred_fallthru
    _
  // Predicated region
  $region6: #{dmn_forward.6} parent=0 // pred_check
    _
  $region7: #{dmn_forward.6} parent=0 // pred_check_branch
    %14 = sbr.rel (0) target = $region9
  $region8: #{dmn_forward.6} parent=0 // pred_region
    _
  $region9: #{dmn_forward.6} parent=0 // pred_fallthru
    _
  // Predicated region
  $region10: #{dmn_forward.6} parent=0 // pred_check
    _
  $region11: #{dmn_forward.6} parent=0 // pred_check_branch
    %16 = sbr.rel (0) target = $region13
  $region12: #{dmn_forward.6} parent=0 // pred_region
    _
  $region13: #{dmn_forward.6} parent=0 // pred_fallthru
    _
  // Predicated region
  $region14: #{dmn_forward.6} parent=0 // pred_check
    _
  $region15: #{dmn_forward.6} parent=0 // pred_check_branch
    %18 = sbr.rel (0) target = $region17
  $region16: #{dmn_forward.6} parent=0 // pred_region
    _
  $region17: #{dmn_forward.6} parent=0 // pred_fallthru
    _
  // Predicated region
  $region18: #{dmn_forward.6} parent=0 // pred_check
    _
  $region19: #{dmn_forward.6} parent=0 // pred_check_branch
    %20 = sbr.rel (0) target = $region21
  $region20: #{dmn_forward.6} parent=0 // pred_region
    _
  $region21: #{dmn_forward.6} parent=0 // pred_fallthru
    _
  // Predicated region
  $region22: #{dmn_forward.6} parent=0 // pred_check
    _
  $region23: #{dmn_forward.6} parent=0 // pred_check_branch
    %22 = sbr.rel (0) target = $region25
  $region24: #{dmn_forward.6} parent=0 // pred_region
    _
  $region25: #{dmn_forward.6} parent=0 // pred_fallthru
    _
  %v24 = vld [vmem:[%s2] sm:$0xf]
  %v25 = vld [vmem:[%s2 + $0x4] sm:$0xf]
  %v26 = vld [vmem:[%s2 + $0x8] sm:$0xf]
  %v27 = vld [vmem:[%s2 + $0xc] sm:$0xf]
  %v28 = vld [vmem:[%s3] sm:$0xf]
  %v29 = vld [vmem:[%s3 + $0x4] sm:$0xf]
  %v30 = vld [vmem:[%s3 + $0x8] sm:$0xf]
  %v31 = vld [vmem:[%s3 + $0xc] sm:$0xf]
  %v32 = vld [vmem:[%s4] sm:$0x1]
  %v33 = vld [vmem:[%s5] sm:$0x1]
  %v34 = vld [vmem:[%s1] sm:$0xff]
  %v35 = vld [vmem:[%s0] sm:$0xf]
  %v37 = vlaneseq
  %v38 = vshrl.u32 %v37, 7
  %v39 = vsub.s32 0, %v38
  %v40 = vrot.slane %v32, %v39
  %v46 = vunpack.c.l.b16 %v24
  %v47 = vunpack.c.l.b16 %v25
  %v48 = vunpack.c.l.b16 %v26
  %v49 = vunpack.c.l.b16 %v27
  %v50 = vpack.c.b16 %v47, %v46
  %v51 = vpack.c.b16 %v49, %v48
  %vm54 = vcmask 261120
  %v56 = vsel %vm54, %v35, 0
  %58 = vmatprep.subr.bf16.mxu0 0
  %59 = vmatpush1.bf16.msra.mxu0 %v50
  %60 = vmatprep.subr.bf16.mxu0 0
  %61 = vmatpush1.bf16.msra.mxu0 %v51
  %62 = vmatprep.subr.bf16.mxu0 0
  %63 = vmatpush1.bf16.msra.mxu0 0
  %64 = vmatprep.subr.bf16.mxu0 0
  %65 = vmatpush1.bf16.msra.mxu0 0
  %66 = vmatprep.subr.bf16.mxu0 0
  %67 = vmatpush1.bf16.msra.mxu0 0
  %68 = vmatprep.subr.bf16.mxu0 0
  %69 = vmatpush1.bf16.msra.mxu0 0
  %70 = vmatprep.subr.bf16.mxu0 0
  %71 = vmatpush1.bf16.msra.mxu0 0
  %72 = vmatprep.subr.bf16.mxu0 0
  %73 = vmatpush1.bf16.msra.mxu0 0
  %74 = vmatprep.subr.bf16.mxu0 0
  %75 = vmatpush1.bf16.msra.mxu0 0
  %76 = vmatprep.subr.bf16.mxu0 0
  %77 = vmatpush1.bf16.msra.mxu0 0
  %78 = vmatprep.subr.bf16.mxu0 0
  %79 = vmatpush1.bf16.msra.mxu0 0
  %80 = vmatprep.subr.bf16.mxu0 0
  %81 = vmatpush1.bf16.msra.mxu0 0
  %82 = vmatprep.subr.bf16.mxu0 0
  %83 = vmatpush1.bf16.msra.mxu0 0
  %84 = vmatprep.subr.bf16.mxu0 0
  %85 = vmatpush1.bf16.msra.mxu0 0
  %86 = vmatprep.subr.bf16.mxu0 0
  %87 = vmatpush1.bf16.msra.mxu0 0
  %88 = vmatprep.subr.bf16.mxu0 0
  %89 = vmatpush1.bf16.msra.mxu0 0
  %90 = vmatprep.mubr.bf16.mxu0 0
  %91 = vmatmul.mubr.bf16.gmra.mrb[0].mxu0 %v56
  %v92 = vpop.f32.mrb[0].mxu0
  %v93 = vadd.f32 %v40, %v92
  %v94 = vpop.f32.mrb[0].mxu0
  %v95 = vpop.f32.mrb[0].mxu0
  %v96 = vpop.f32.mrb[0].mxu0
  %97 = vdwg.mxu0
  %v99 = vlaneseq
  %v100 = vshrl.u32 %v99, 7
  %v101 = vsub.s32 0, %v100
  %v102 = vrot.slane %v33, %v101
  %v108 = vunpack.c.l.b16 %v28
  %v109 = vunpack.c.l.b16 %v29
  %v110 = vunpack.c.l.b16 %v30
  %v111 = vunpack.c.l.b16 %v31
  %v112 = vpack.c.b16 %v109, %v108
  %v113 = vpack.c.b16 %v111, %v110
  %v117 = vsel %vm54, 0, 0
  %119 = vmatprep.subr.bf16.mxu0 0
  %120 = vmatpush1.bf16.msra.mxu0 %v112
  %121 = vmatprep.subr.bf16.mxu0 0
  %122 = vmatpush1.bf16.msra.mxu0 %v113
  %123 = vmatprep.subr.bf16.mxu0 0
  %124 = vmatpush1.bf16.msra.mxu0 0
  %125 = vmatprep.subr.bf16.mxu0 0
  %126 = vmatpush1.bf16.msra.mxu0 0
  %127 = vmatprep.subr.bf16.mxu0 0
  %128 = vmatpush1.bf16.msra.mxu0 0
  %129 = vmatprep.subr.bf16.mxu0 0
  %130 = vmatpush1.bf16.msra.mxu0 0
  %131 = vmatprep.subr.bf16.mxu0 0
  %132 = vmatpush1.bf16.msra.mxu0 0
  %133 = vmatprep.subr.bf16.mxu0 0
  %134 = vmatpush1.bf16.msra.mxu0 0
  %135 = vmatprep.subr.bf16.mxu0 0
  %136 = vmatpush1.bf16.msra.mxu0 0
  %137 = vmatprep.subr.bf16.mxu0 0
  %138 = vmatpush1.bf16.msra.mxu0 0
  %139 = vmatprep.subr.bf16.mxu0 0
  %140 = vmatpush1.bf16.msra.mxu0 0
  %141 = vmatprep.subr.bf16.mxu0 0
  %142 = vmatpush1.bf16.msra.mxu0 0
  %143 = vmatprep.subr.bf16.mxu0 0
  %144 = vmatpush1.bf16.msra.mxu0 0
  %145 = vmatprep.subr.bf16.mxu0 0
  %146 = vmatpush1.bf16.msra.mxu0 0
  %147 = vmatprep.subr.bf16.mxu0 0
  %148 = vmatpush1.bf16.msra.mxu0 0
  %149 = vmatprep.subr.bf16.mxu0 0
  %150 = vmatpush1.bf16.msra.mxu0 0
  %151 = vmatprep.mubr.bf16.mxu0 0
  %152 = vmatmul.mubr.bf16.gmra.mrb[0].mxu0 %v117
  %v153 = vpop.f32.mrb[0].mxu0
  %v154 = vadd.f32 %v102, %v153
  %v155 = vpop.f32.mrb[0].mxu0
  %v156 = vpop.f32.mrb[0].mxu0
  %v157 = vpop.f32.mrb[0].mxu0
  %158 = vdwg.mxu0
  %v159 = vadd.f32 %v93, %v154
  %v160 = vxor.u32 %v159, 2147483648
  %v161 = vmul.f32 %v160, 1.442695
  %v162 = vpow.pop %v161
  %v163 = vadd.f32 %v162, 1.0
  %v164 = vrcp.pop %v163
  %v165 = vmul.f32 1.0, %v164
  %167 = vrot.lane.b32.xlu0 %v154, 64
  %v168 = vpop.permute.xlu0 %167
  %v170 = vmul.f32 %v165, %v168
  %172 = vrot.lane.b32.xlu0 %v170, 64
  %v173 = vpop.permute.xlu0 %172
  %v175 = vadd.f32 %v93, %v173
  %v176 = vtanh.pop %v175
  %v177 = vsub.f32 1.0, %v165
  %179 = vrot.lane.b32.xlu0 %v176, 96
  %v180 = vpop.permute.xlu0 %179
  %v182 = vmul.f32 %v177, %v180
  %v183 = vmul.f32 %v165, 0.0
  %v184 = vadd.f32 %v182, %v183
  %vm185 = vcmp.ge.s32.totalorder %v34, 0
  %v186 = vsel %vm185, 1, 0
  %187 = vset.pattern.permute.xlu0 0
  %188 = vperm.xlu0 %187, %v186
  %v189 = vpop.permute.xlu0 %188
  %vm190 = vcmp.eq.s32.totalorder %v189, 1
  %v191 = vsel %vm190, %v184, 0.0
  %s192 = scalar_lea.vmem %s0, 4
  %v193 = vld [vmem:[%s192] sm:$0xf]
  %v195 = vsel %vm54, %v193, 0
  %197 = vmatprep.subr.bf16.mxu0 0
  %198 = vmatpush1.bf16.msra.mxu0 %v50
  %199 = vmatprep.subr.bf16.mxu0 0
  %200 = vmatpush1.bf16.msra.mxu0 %v51
  %201 = vmatprep.subr.bf16.mxu0 0
  %202 = vmatpush1.bf16.msra.mxu0 0
  %203 = vmatprep.subr.bf16.mxu0 0
  %204 = vmatpush1.bf16.msra.mxu0 0
  %205 = vmatprep.subr.bf16.mxu0 0
  %206 = vmatpush1.bf16.msra.mxu0 0
  %207 = vmatprep.subr.bf16.mxu0 0
  %208 = vmatpush1.bf16.msra.mxu0 0
  %209 = vmatprep.subr.bf16.mxu0 0
  %210 = vmatpush1.bf16.msra.mxu0 0
  %211 = vmatprep.subr.bf16.mxu0 0
  %212 = vmatpush1.bf16.msra.mxu0 0
  %213 = vmatprep.subr.bf16.mxu0 0
  %214 = vmatpush1.bf16.msra.mxu0 0
  %215 = vmatprep.subr.bf16.mxu0 0
  %216 = vmatpush1.bf16.msra.mxu0 0
  %217 = vmatprep.subr.bf16.mxu0 0
  %218 = vmatpush1.bf16.msra.mxu0 0
  %219 = vmatprep.subr.bf16.mxu0 0
  %220 = vmatpush1.bf16.msra.mxu0 0
  %221 = vmatprep.subr.bf16.mxu0 0
  %222 = vmatpush1.bf16.msra.mxu0 0
  %223 = vmatprep.subr.bf16.mxu0 0
  %224 = vmatpush1.bf16.msra.mxu0 0
  %225 = vmatprep.subr.bf16.mxu0 0
  %226 = vmatpush1.bf16.msra.mxu0 0
  %227 = vmatprep.subr.bf16.mxu0 0
  %228 = vmatpush1.bf16.msra.mxu0 0
  %229 = vmatprep.mubr.bf16.mxu0 0
  %230 = vmatmul.mubr.bf16.gmra.mrb[0].mxu0 %v195
  %v231 = vpop.f32.mrb[0].mxu0
  %v232 = vadd.f32 %v40, %v231
  %v233 = vpop.f32.mrb[0].mxu0
  %v234 = vpop.f32.mrb[0].mxu0
  %v235 = vpop.f32.mrb[0].mxu0
  %236 = vdwg.mxu0
  %v237 = vpack.c.bf16 %v191, %v191
  %239 = vrot.lane.b32.xlu0 %v237, 96
  %v240 = vpop.permute.xlu0 %239
  %v242 = vsel %vm54, %v240, 0
  %244 = vmatprep.subr.bf16.mxu0 0
  %245 = vmatpush1.bf16.msra.mxu0 %v112
  %246 = vmatprep.subr.bf16.mxu0 0
  %247 = vmatpush1.bf16.msra.mxu0 %v113
  %248 = vmatprep.subr.bf16.mxu0 0
  %249 = vmatpush1.bf16.msra.mxu0 0
  %250 = vmatprep.subr.bf16.mxu0 0
  %251 = vmatpush1.bf16.msra.mxu0 0
  %252 = vmatprep.subr.bf16.mxu0 0
  %253 = vmatpush1.bf16.msra.mxu0 0
  %254 = vmatprep.subr.bf16.mxu0 0
  %255 = vmatpush1.bf16.msra.mxu0 0
  %256 = vmatprep.subr.bf16.mxu0 0
  %257 = vmatpush1.bf16.msra.mxu0 0
  %258 = vmatprep.subr.bf16.mxu0 0
  %259 = vmatpush1.bf16.msra.mxu0 0
  %260 = vmatprep.subr.bf16.mxu0 0
  %261 = vmatpush1.bf16.msra.mxu0 0
  %262 = vmatprep.subr.bf16.mxu0 0
  %263 = vmatpush1.bf16.msra.mxu0 0
  %264 = vmatprep.subr.bf16.mxu0 0
  %265 = vmatpush1.bf16.msra.mxu0 0
  %266 = vmatprep.subr.bf16.mxu0 0
  %267 = vmatpush1.bf16.msra.mxu0 0
  %268 = vmatprep.subr.bf16.mxu0 0
  %269 = vmatpush1.bf16.msra.mxu0 0
  %270 = vmatprep.subr.bf16.mxu0 0
  %271 = vmatpush1.bf16.msra.mxu0 0
  %272 = vmatprep.subr.bf16.mxu0 0
  %273 = vmatpush1.bf16.msra.mxu0 0
  %274 = vmatprep.subr.bf16.mxu0 0
  %275 = vmatpush1.bf16.msra.mxu0 0
  %276 = vmatprep.mubr.bf16.mxu0 0
  %277 = vmatmul.mubr.bf16.gmra.mrb[0].mxu0 %v242
  %v278 = vpop.f32.mrb[0].mxu0
  %v279 = vadd.f32 %v102, %v278
  %v280 = vpop.f32.mrb[0].mxu0
  %v281 = vpop.f32.mrb[0].mxu0
  %v282 = vpop.f32.mrb[0].mxu0
  %283 = vdwg.mxu0
  %v284 = vadd.f32 %v232, %v279
  %v285 = vxor.u32 %v284, 2147483648
  %v286 = vmul.f32 %v285, 1.442695
  %v287 = vpow.pop %v286
  %v288 = vadd.f32 %v287, 1.0
  %v289 = vrcp.pop %v288
  %v290 = vmul.f32 1.0, %v289
  %292 = vrot.lane.b32.xlu0 %v279, 64
  %v293 = vpop.permute.xlu0 %292
  %v295 = vmul.f32 %v290, %v293
  %297 = vrot.lane.b32.xlu0 %v295, 64
  %v298 = vpop.permute.xlu0 %297
  %v300 = vadd.f32 %v232, %v298
  %v301 = vtanh.pop %v300
  %v302 = vsub.f32 1.0, %v290
  %304 = vrot.lane.b32.xlu0 %v301, 96
  %v305 = vpop.permute.xlu0 %304
  %v307 = vmul.f32 %v302, %v305
  %v308 = vmul.f32 %v290, %v191
  %v309 = vadd.f32 %v307, %v308
  %vm310 = vcmp.ge.s32.totalorder %v34, 1
  %v311 = vsel %vm310, 1, 0
  %312 = vset.pattern.permute.xlu0 0
  %313 = vperm.xlu0 %312, %v311
  %v314 = vpop.permute.xlu0 %313
  %vm315 = vcmp.eq.s32.totalorder %v314, 1
  %v316 = vsel %vm315, %v309, %v191
  %s317 = scalar_lea.vmem %s0, 8
  %v318 = vld [vmem:[%s317] sm:$0xf]
  %v320 = vsel %vm54, %v318, 0
  %322 = vmatprep.subr.bf16.mxu0 0
  %323 = vmatpush1.bf16.msra.mxu0 %v50
  %324 = vmatprep.subr.bf16.mxu0 0
  %325 = vmatpush1.bf16.msra.mxu0 %v51
  %326 = vmatprep.subr.bf16.mxu0 0
  %327 = vmatpush1.bf16.msra.mxu0 0
  %328 = vmatprep.subr.bf16.mxu0 0
  %329 = vmatpush1.bf16.msra.mxu0 0
  %330 = vmatprep.subr.bf16.mxu0 0
  %331 = vmatpush1.bf16.msra.mxu0 0
  %332 = vmatprep.subr.bf16.mxu0 0
  %333 = vmatpush1.bf16.msra.mxu0 0
  %334 = vmatprep.subr.bf16.mxu0 0
  %335 = vmatpush1.bf16.msra.mxu0 0
  %336 = vmatprep.subr.bf16.mxu0 0
  %337 = vmatpush1.bf16.msra.mxu0 0
  %338 = vmatprep.subr.bf16.mxu0 0
  %339 = vmatpush1.bf16.msra.mxu0 0
  %340 = vmatprep.subr.bf16.mxu0 0
  %341 = vmatpush1.bf16.msra.mxu0 0
  %342 = vmatprep.subr.bf16.mxu0 0
  %343 = vmatpush1.bf16.msra.mxu0 0
  %344 = vmatprep.subr.bf16.mxu0 0
  %345 = vmatpush1.bf16.msra.mxu0 0
  %346 = vmatprep.subr.bf16.mxu0 0
  %347 = vmatpush1.bf16.msra.mxu0 0
  %348 = vmatprep.subr.bf16.mxu0 0
  %349 = vmatpush1.bf16.msra.mxu0 0
  %350 = vmatprep.subr.bf16.mxu0 0
  %351 = vmatpush1.bf16.msra.mxu0 0
  %352 = vmatprep.subr.bf16.mxu0 0
  %353 = vmatpush1.bf16.msra.mxu0 0
  %354 = vmatprep.mubr.bf16.mxu0 0
  %355 = vmatmul.mubr.bf16.gmra.mrb[0].mxu0 %v320
  %v356 = vpop.f32.mrb[0].mxu0
  %v357 = vadd.f32 %v40, %v356
  %v358 = vpop.f32.mrb[0].mxu0
  %v359 = vpop.f32.mrb[0].mxu0
  %v360 = vpop.f32.mrb[0].mxu0
  %361 = vdwg.mxu0
  %v362 = vpack.c.bf16 %v316, %v316
  %364 = vrot.lane.b32.xlu0 %v362, 96
  %v365 = vpop.permute.xlu0 %364
  %v367 = vsel %vm54, %v365, 0
  %369 = vmatprep.subr.bf16.mxu0 0
  %370 = vmatpush1.bf16.msra.mxu0 %v112
  %371 = vmatprep.subr.bf16.mxu0 0
  %372 = vmatpush1.bf16.msra.mxu0 %v113
  %373 = vmatprep.subr.bf16.mxu0 0
  %374 = vmatpush1.bf16.msra.mxu0 0
  %375 = vmatprep.subr.bf16.mxu0 0
  %376 = vmatpush1.bf16.msra.mxu0 0
  %377 = vmatprep.subr.bf16.mxu0 0
  %378 = vmatpush1.bf16.msra.mxu0 0
  %379 = vmatprep.subr.bf16.mxu0 0
  %380 = vmatpush1.bf16.msra.mxu0 0
  %381 = vmatprep.subr.bf16.mxu0 0
  %382 = vmatpush1.bf16.msra.mxu0 0
  %383 = vmatprep.subr.bf16.mxu0 0
  %384 = vmatpush1.bf16.msra.mxu0 0
  %385 = vmatprep.subr.bf16.mxu0 0
  %386 = vmatpush1.bf16.msra.mxu0 0
  %387 = vmatprep.subr.bf16.mxu0 0
  %388 = vmatpush1.bf16.msra.mxu0 0
  %389 = vmatprep.subr.bf16.mxu0 0
  %390 = vmatpush1.bf16.msra.mxu0 0
  %391 = vmatprep.subr.bf16.mxu0 0
  %392 = vmatpush1.bf16.msra.mxu0 0
  %393 = vmatprep.subr.bf16.mxu0 0
  %394 = vmatpush1.bf16.msra.mxu0 0
  %395 = vmatprep.subr.bf16.mxu0 0
  %396 = vmatpush1.bf16.msra.mxu0 0
  %397 = vmatprep.subr.bf16.mxu0 0
  %398 = vmatpush1.bf16.msra.mxu0 0
  %399 = vmatprep.subr.bf16.mxu0 0
  %400 = vmatpush1.bf16.msra.mxu0 0
  %401 = vmatprep.mubr.bf16.mxu0 0
  %402 = vmatmul.mubr.bf16.gmra.mrb[0].mxu0 %v367
  %v403 = vpop.f32.mrb[0].mxu0
  %v404 = vadd.f32 %v102, %v403
  %v405 = vpop.f32.mrb[0].mxu0
  %v406 = vpop.f32.mrb[0].mxu0
  %v407 = vpop.f32.mrb[0].mxu0
  %408 = vdwg.mxu0
  %v409 = vadd.f32 %v357, %v404
  %v410 = vxor.u32 %v409, 2147483648
  %v411 = vmul.f32 %v410, 1.442695
  %v412 = vpow.pop %v411
  %v413 = vadd.f32 %v412, 1.0
  %v414 = vrcp.pop %v413
  %v415 = vmul.f32 1.0, %v414
  %417 = vrot.lane.b32.xlu0 %v404, 64
  %v418 = vpop.permute.xlu0 %417
  %v420 = vmul.f32 %v415, %v418
  %422 = vrot.lane.b32.xlu0 %v420, 64
  %v423 = vpop.permute.xlu0 %422
  %v425 = vadd.f32 %v357, %v423
  %v426 = vtanh.pop %v425
  %v427 = vsub.f32 1.0, %v415
  %429 = vrot.lane.b32.xlu0 %v426, 96
  %v430 = vpop.permute.xlu0 %429
  %v432 = vmul.f32 %v427, %v430
  %v433 = vmul.f32 %v415, %v316
  %v434 = vadd.f32 %v432, %v433
  %vm435 = vcmp.ge.s32.totalorder %v34, 2
  %v436 = vsel %vm435, 1, 0
  %437 = vset.pattern.permute.xlu0 0
  %438 = vperm.xlu0 %437, %v436
  %v439 = vpop.permute.xlu0 %438
  %vm440 = vcmp.eq.s32.totalorder %v439, 1
  %v441 = vsel %vm440, %v434, %v316
  %s442 = scalar_lea.vmem %s0, 12
  %v443 = vld [vmem:[%s442] sm:$0xf]
  %v445 = vsel %vm54, %v443, 0
  %447 = vmatprep.subr.bf16.mxu0 0
  %448 = vmatpush1.bf16.msra.mxu0 %v50
  %449 = vmatprep.subr.bf16.mxu0 0
  %450 = vmatpush1.bf16.msra.mxu0 %v51
  %451 = vmatprep.subr.bf16.mxu0 0
  %452 = vmatpush1.bf16.msra.mxu0 0
  %453 = vmatprep.subr.bf16.mxu0 0
  %454 = vmatpush1.bf16.msra.mxu0 0
  %455 = vmatprep.subr.bf16.mxu0 0
  %456 = vmatpush1.bf16.msra.mxu0 0
  %457 = vmatprep.subr.bf16.mxu0 0
  %458 = vmatpush1.bf16.msra.mxu0 0
  %459 = vmatprep.subr.bf16.mxu0 0
  %460 = vmatpush1.bf16.msra.mxu0 0
  %461 = vmatprep.subr.bf16.mxu0 0
  %462 = vmatpush1.bf16.msra.mxu0 0
  %463 = vmatprep.subr.bf16.mxu0 0
  %464 = vmatpush1.bf16.msra.mxu0 0
  %465 = vmatprep.subr.bf16.mxu0 0
  %466 = vmatpush1.bf16.msra.mxu0 0
  %467 = vmatprep.subr.bf16.mxu0 0
  %468 = vmatpush1.bf16.msra.mxu0 0
  %469 = vmatprep.subr.bf16.mxu0 0
  %470 = vmatpush1.bf16.msra.mxu0 0
  %471 = vmatprep.subr.bf16.mxu0 0
  %472 = vmatpush1.bf16.msra.mxu0 0
  %473 = vmatprep.subr.bf16.mxu0 0
  %474 = vmatpush1.bf16.msra.mxu0 0
  %475 = vmatprep.subr.bf16.mxu0 0
  %476 = vmatpush1.bf16.msra.mxu0 0
  %477 = vmatprep.subr.bf16.mxu0 0
  %478 = vmatpush1.bf16.msra.mxu0 0
  %479 = vmatprep.mubr.bf16.mxu0 0
  %480 = vmatmul.mubr.bf16.gmra.mrb[0].mxu0 %v445
  %v481 = vpop.f32.mrb[0].mxu0
  %v482 = vadd.f32 %v40, %v481
  %v483 = vpop.f32.mrb[0].mxu0
  %v484 = vpop.f32.mrb[0].mxu0
  %v485 = vpop.f32.mrb[0].mxu0
  %486 = vdwg.mxu0
  %v487 = vpack.c.bf16 %v441, %v441
  %489 = vrot.lane.b32.xlu0 %v487, 96
  %v490 = vpop.permute.xlu0 %489
  %v492 = vsel %vm54, %v490, 0
  %494 = vmatprep.subr.bf16.mxu0 0
  %495 = vmatpush1.bf16.msra.mxu0 %v112
  %496 = vmatprep.subr.bf16.mxu0 0
  %497 = vmatpush1.bf16.msra.mxu0 %v113
  %498 = vmatprep.subr.bf16.mxu0 0
  %499 = vmatpush1.bf16.msra.mxu0 0
  %500 = vmatprep.subr.bf16.mxu0 0
  %501 = vmatpush1.bf16.msra.mxu0 0
  %502 = vmatprep.subr.bf16.mxu0 0
  %503 = vmatpush1.bf16.msra.mxu0 0
  %504 = vmatprep.subr.bf16.mxu0 0
  %505 = vmatpush1.bf16.msra.mxu0 0
  %506 = vmatprep.subr.bf16.mxu0 0
  %507 = vmatpush1.bf16.msra.mxu0 0
  %508 = vmatprep.subr.bf16.mxu0 0
  %509 = vmatpush1.bf16.msra.mxu0 0
  %510 = vmatprep.subr.bf16.mxu0 0
  %511 = vmatpush1.bf16.msra.mxu0 0
  %512 = vmatprep.subr.bf16.mxu0 0
  %513 = vmatpush1.bf16.msra.mxu0 0
  %514 = vmatprep.subr.bf16.mxu0 0
  %515 = vmatpush1.bf16.msra.mxu0 0
  %516 = vmatprep.subr.bf16.mxu0 0
  %517 = vmatpush1.bf16.msra.mxu0 0
  %518 = vmatprep.subr.bf16.mxu0 0
  %519 = vmatpush1.bf16.msra.mxu0 0
  %520 = vmatprep.subr.bf16.mxu0 0
  %521 = vmatpush1.bf16.msra.mxu0 0
  %522 = vmatprep.subr.bf16.mxu0 0
  %523 = vmatpush1.bf16.msra.mxu0 0
  %524 = vmatprep.subr.bf16.mxu0 0
  %525 = vmatpush1.bf16.msra.mxu0 0
  %526 = vmatprep.mubr.bf16.mxu0 0
  %527 = vmatmul.mubr.bf16.gmra.mrb[0].mxu0 %v492
  %v528 = vpop.f32.mrb[0].mxu0
  %v529 = vadd.f32 %v102, %v528
  %v530 = vpop.f32.mrb[0].mxu0
  %v531 = vpop.f32.mrb[0].mxu0
  %v532 = vpop.f32.mrb[0].mxu0
  %533 = vdwg.mxu0
  %v534 = vadd.f32 %v482, %v529
  %v535 = vxor.u32 %v534, 2147483648
  %v536 = vmul.f32 %v535, 1.442695
  %v537 = vpow.pop %v536
  %v538 = vadd.f32 %v537, 1.0
  %v539 = vrcp.pop %v538
  %v540 = vmul.f32 1.0, %v539
  %542 = vrot.lane.b32.xlu0 %v529, 64
  %v543 = vpop.permute.xlu0 %542
  %v545 = vmul.f32 %v540, %v543
  %547 = vrot.lane.b32.xlu0 %v545, 64
  %v548 = vpop.permute.xlu0 %547
  %v550 = vadd.f32 %v482, %v548
  %v551 = vtanh.pop %v550
  %v552 = vsub.f32 1.0, %v540
  %554 = vrot.lane.b32.xlu0 %v551, 96
  %v555 = vpop.permute.xlu0 %554
  %v557 = vmul.f32 %v552, %v555
  %v558 = vmul.f32 %v540, %v441
  %v559 = vadd.f32 %v557, %v558
  %vm560 = vcmp.ge.s32.totalorder %v34, 3
  %v561 = vsel %vm560, 1, 0
  %562 = vset.pattern.permute.xlu0 0
  %563 = vperm.xlu0 %562, %v561
  %v564 = vpop.permute.xlu0 %563
  %vm565 = vcmp.eq.s32.totalorder %v564, 1
  %v566 = vsel %vm565, %v559, %v441
  %568 = vrot.lane.b32.xlu0 %v566, 96
  %v569 = vpop.permute.xlu0 %568
  %571 = vst.msk [vmem:[%s6] sm:$0xff] %vm54, %v569
  // Predicated region
  $region26: #{dmn_forward.6} parent=0 // pred_check
    _
  $region27: #{dmn_forward.6} parent=0 // pred_check_branch
    %573 = sbr.rel (0) target = $region29
  $region28: #{dmn_forward.6} parent=0 // pred_region
    _
  $region29: #{dmn_forward.6} parent=0 // pred_fallthru
    _
  // Predicated region
  $region30: #{dmn_forward.6} parent=0 // pred_check
    _
  $region31: #{dmn_forward.6} parent=0 // pred_check_branch
    %575 = sbr.rel (0) target = $region33
  $region32: #{dmn_forward.6} parent=0 // pred_region
    _
  $region33: #{dmn_forward.6} parent=0 // pred_fallthru
    _

// kernel: dmn_forward.4
$region0: #{dmn_forward.4}
  #allocation0 [shape = 'u32[]', space=smem, size = 0x4, offset = 0x4, fixed_abs, tag = 'smem constant byte address 0x4 - core index']
  #allocation1 [shape = 'u32[144,128]{1,0:T(1,128)}', space=vmem, size = 0x12000, scoped, tag = 'internal scratch']
  %s0 = inlined_call_operand.vmem [shape: bf16[6,8,32], index: 0, kind: input, shape index: {}]
  %s1 = inlined_call_operand.vmem [shape: s32[8,1], index: 1, kind: input, shape index: {}]
  %s2 = inlined_call_operand.vmem [shape: bf16[32,96], index: 2, kind: input, shape index: {}]
  %s3 = inlined_call_operand.vmem [shape: bf16[32,96], index: 3, kind: input, shape index: {}]
  %s4 = inlined_call_operand.vmem [shape: f32[1,96], index: 4, kind: input, shape index: {}]
  %s5 = inlined_call_operand.vmem [shape: f32[1,96], index: 5, kind: input, shape index: {}]
  %s6 = inlined_call_operand.vmem [shape: f32[8,32], index: 6, kind: output, shape index: {}]
  %s7 = sld [smem:[#allocation0]]
  $region34: #{dmn_forward.4} parent=0
    _
  %s9 = ssub.s32 1, %s7
  %s10 = scalar_select 0, %s9, %s7
  // Predicated region
  $region2: #{dmn_forward.4} parent=0 // pred_check
    _
  $region3: #{dmn_forward.4} parent=0 // pred_check_branch
    %12 = sbr.rel (0) target = $region5
  $region4: #{dmn_forward.4} parent=0 // pred_region
    _
  $region5: #{dmn_forward.4} parent=0 // pred_fallthru
    _
  // Predicated region
  $region6: #{dmn_forward.4} parent=0 // pred_check
    _
  $region7: #{dmn_forward.4} parent=0 // pred_check_branch
    %14 = sbr.rel (0) target = $region9
  $region8: #{dmn_forward.4} parent=0 // pred_region
    _
  $region9: #{dmn_forward.4} parent=0 // pred_fallthru
    _
  // Predicated region
  $region10: #{dmn_forward.4} parent=0 // pred_check
    _
  $region11: #{dmn_forward.4} parent=0 // pred_check_branch
    %16 = sbr.rel (0) target = $region13
  $region12: #{dmn_forward.4} parent=0 // pred_region
    _
  $region13: #{dmn_forward.4} parent=0 // pred_fallthru
    _
  // Predicated region
  $region14: #{dmn_forward.4} parent=0 // pred_check
    _
  $region15: #{dmn_forward.4} parent=0 // pred_check_branch
    %18 = sbr.rel (0) target = $region17
  $region16: #{dmn_forward.4} parent=0 // pred_region
    _
  $region17: #{dmn_forward.4} parent=0 // pred_fallthru
    _
  // Predicated region
  $region18: #{dmn_forward.4} parent=0 // pred_check
    _
  $region19: #{dmn_forward.4} parent=0 // pred_check_branch
    %20 = sbr.rel (0) target = $region21
  $region20: #{dmn_forward.4} parent=0 // pred_region
    _
  $region21: #{dmn_forward.4} parent=0 // pred_fallthru
    _
  // Predicated region
  $region22: #{dmn_forward.4} parent=0 // pred_check
    _
  $region23: #{dmn_forward.4} parent=0 // pred_check_branch
    %22 = sbr.rel (0) target = $region25
  $region24: #{dmn_forward.4} parent=0 // pred_region
    _
  $region25: #{dmn_forward.4} parent=0 // pred_fallthru
    _
  %v24 = vld [vmem:[%s2] sm:$0xf]
  %v25 = vld [vmem:[%s2 + $0x4] sm:$0xf]
  %v26 = vld [vmem:[%s2 + $0x8] sm:$0xf]
  %v27 = vld [vmem:[%s2 + $0xc] sm:$0xf]
  %v28 = vld [vmem:[%s3] sm:$0xf]
  %v29 = vld [vmem:[%s3 + $0x4] sm:$0xf]
  %v30 = vld [vmem:[%s3 + $0x8] sm:$0xf]
  %v31 = vld [vmem:[%s3 + $0xc] sm:$0xf]
  %v32 = vld [vmem:[%s4] sm:$0x1]
  %v33 = vld [vmem:[%s5] sm:$0x1]
  %v34 = vld [vmem:[%s1] sm:$0xff]
  %v35 = vld [vmem:[%s0] sm:$0xf]
  %v37 = vlaneseq
  %v38 = vshrl.u32 %v37, 7
  %v39 = vsub.s32 0, %v38
  %v40 = vrot.slane %v32, %v39
  %v46 = vunpack.c.l.b16 %v24
  %v47 = vunpack.c.l.b16 %v25
  %v48 = vunpack.c.l.b16 %v26
  %v49 = vunpack.c.l.b16 %v27
  %v50 = vpack.c.b16 %v47, %v46
  %v51 = vpack.c.b16 %v49, %v48
  %vm54 = vcmask 261120
  %v56 = vsel %vm54, %v35, 0
  %58 = vmatprep.subr.bf16.mxu0 0
  %59 = vmatpush1.bf16.msra.mxu0 %v50
  %60 = vmatprep.subr.bf16.mxu0 0
  %61 = vmatpush1.bf16.msra.mxu0 %v51
  %62 = vmatprep.subr.bf16.mxu0 0
  %63 = vmatpush1.bf16.msra.mxu0 0
  %64 = vmatprep.subr.bf16.mxu0 0
  %65 = vmatpush1.bf16.msra.mxu0 0
  %66 = vmatprep.subr.bf16.mxu0 0
  %67 = vmatpush1.bf16.msra.mxu0 0
  %68 = vmatprep.subr.bf16.mxu0 0
  %69 = vmatpush1.bf16.msra.mxu0 0
  %70 = vmatprep.subr.bf16.mxu0 0
  %71 = vmatpush1.bf16.msra.mxu0 0
  %72 = vmatprep.subr.bf16.mxu0 0
  %73 = vmatpush1.bf16.msra.mxu0 0
  %74 = vmatprep.subr.bf16.mxu0 0
  %75 = vmatpush1.bf16.msra.mxu0 0
  %76 = vmatprep.subr.bf16.mxu0 0
  %77 = vmatpush1.bf16.msra.mxu0 0
  %78 = vmatprep.subr.bf16.mxu0 0
  %79 = vmatpush1.bf16.msra.mxu0 0
  %80 = vmatprep.subr.bf16.mxu0 0
  %81 = vmatpush1.bf16.msra.mxu0 0
  %82 = vmatprep.subr.bf16.mxu0 0
  %83 = vmatpush1.bf16.msra.mxu0 0
  %84 = vmatprep.subr.bf16.mxu0 0
  %85 = vmatpush1.bf16.msra.mxu0 0
  %86 = vmatprep.subr.bf16.mxu0 0
  %87 = vmatpush1.bf16.msra.mxu0 0
  %88 = vmatprep.subr.bf16.mxu0 0
  %89 = vmatpush1.bf16.msra.mxu0 0
  %90 = vmatprep.mubr.bf16.mxu0 0
  %91 = vmatmul.mubr.bf16.gmra.mrb[0].mxu0 %v56
  %v92 = vpop.f32.mrb[0].mxu0
  %v93 = vadd.f32 %v40, %v92
  %v94 = vpop.f32.mrb[0].mxu0
  %v95 = vpop.f32.mrb[0].mxu0
  %v96 = vpop.f32.mrb[0].mxu0
  %97 = vdwg.mxu0
  %v99 = vlaneseq
  %v100 = vshrl.u32 %v99, 7
  %v101 = vsub.s32 0, %v100
  %v102 = vrot.slane %v33, %v101
  %v108 = vunpack.c.l.b16 %v28
  %v109 = vunpack.c.l.b16 %v29
  %v110 = vunpack.c.l.b16 %v30
  %v111 = vunpack.c.l.b16 %v31
  %v112 = vpack.c.b16 %v109, %v108
  %v113 = vpack.c.b16 %v111, %v110
  %v117 = vsel %vm54, 0, 0
  %119 = vmatprep.subr.bf16.mxu0 0
  %120 = vmatpush1.bf16.msra.mxu0 %v112
  %121 = vmatprep.subr.bf16.mxu0 0
  %122 = vmatpush1.bf16.msra.mxu0 %v113
  %123 = vmatprep.subr.bf16.mxu0 0
  %124 = vmatpush1.bf16.msra.mxu0 0
  %125 = vmatprep.subr.bf16.mxu0 0
  %126 = vmatpush1.bf16.msra.mxu0 0
  %127 = vmatprep.subr.bf16.mxu0 0
  %128 = vmatpush1.bf16.msra.mxu0 0
  %129 = vmatprep.subr.bf16.mxu0 0
  %130 = vmatpush1.bf16.msra.mxu0 0
  %131 = vmatprep.subr.bf16.mxu0 0
  %132 = vmatpush1.bf16.msra.mxu0 0
  %133 = vmatprep.subr.bf16.mxu0 0
  %134 = vmatpush1.bf16.msra.mxu0 0
  %135 = vmatprep.subr.bf16.mxu0 0
  %136 = vmatpush1.bf16.msra.mxu0 0
  %137 = vmatprep.subr.bf16.mxu0 0
  %138 = vmatpush1.bf16.msra.mxu0 0
  %139 = vmatprep.subr.bf16.mxu0 0
  %140 = vmatpush1.bf16.msra.mxu0 0
  %141 = vmatprep.subr.bf16.mxu0 0
  %142 = vmatpush1.bf16.msra.mxu0 0
  %143 = vmatprep.subr.bf16.mxu0 0
  %144 = vmatpush1.bf16.msra.mxu0 0
  %145 = vmatprep.subr.bf16.mxu0 0
  %146 = vmatpush1.bf16.msra.mxu0 0
  %147 = vmatprep.subr.bf16.mxu0 0
  %148 = vmatpush1.bf16.msra.mxu0 0
  %149 = vmatprep.subr.bf16.mxu0 0
  %150 = vmatpush1.bf16.msra.mxu0 0
  %151 = vmatprep.mubr.bf16.mxu0 0
  %152 = vmatmul.mubr.bf16.gmra.mrb[0].mxu0 %v117
  %v153 = vpop.f32.mrb[0].mxu0
  %v154 = vadd.f32 %v102, %v153
  %v155 = vpop.f32.mrb[0].mxu0
  %v156 = vpop.f32.mrb[0].mxu0
  %v157 = vpop.f32.mrb[0].mxu0
  %158 = vdwg.mxu0
  %v159 = vadd.f32 %v93, %v154
  %v160 = vxor.u32 %v159, 2147483648
  %v161 = vmul.f32 %v160, 1.442695
  %v162 = vpow.pop %v161
  %v163 = vadd.f32 %v162, 1.0
  %v164 = vrcp.pop %v163
  %v165 = vmul.f32 1.0, %v164
  %167 = vrot.lane.b32.xlu0 %v154, 64
  %v168 = vpop.permute.xlu0 %167
  %v170 = vmul.f32 %v165, %v168
  %172 = vrot.lane.b32.xlu0 %v170, 64
  %v173 = vpop.permute.xlu0 %172
  %v175 = vadd.f32 %v93, %v173
  %v176 = vtanh.pop %v175
  %v177 = vsub.f32 1.0, %v165
  %179 = vrot.lane.b32.xlu0 %v176, 96
  %v180 = vpop.permute.xlu0 %179
  %v182 = vmul.f32 %v177, %v180
  %v183 = vmul.f32 %v165, 0.0
  %v184 = vadd.f32 %v182, %v183
  %vm185 = vcmp.ge.s32.totalorder %v34, 0
  %v186 = vsel %vm185, 1, 0
  %187 = vset.pattern.permute.xlu0 0
  %188 = vperm.xlu0 %187, %v186
  %v189 = vpop.permute.xlu0 %188
  %vm190 = vcmp.eq.s32.totalorder %v189, 1
  %v191 = vsel %vm190, %v184, 0.0
  %s192 = scalar_lea.vmem %s0, 4
  %v193 = vld [vmem:[%s192] sm:$0xf]
  %v195 = vsel %vm54, %v193, 0
  %197 = vmatprep.subr.bf16.mxu0 0
  %198 = vmatpush1.bf16.msra.mxu0 %v50
  %199 = vmatprep.subr.bf16.mxu0 0
  %200 = vmatpush1.bf16.msra.mxu0 %v51
  %201 = vmatprep.subr.bf16.mxu0 0
  %202 = vmatpush1.bf16.msra.mxu0 0
  %203 = vmatprep.subr.bf16.mxu0 0
  %204 = vmatpush1.bf16.msra.mxu0 0
  %205 = vmatprep.subr.bf16.mxu0 0
  %206 = vmatpush1.bf16.msra.mxu0 0
  %207 = vmatprep.subr.bf16.mxu0 0
  %208 = vmatpush1.bf16.msra.mxu0 0
  %209 = vmatprep.subr.bf16.mxu0 0
  %210 = vmatpush1.bf16.msra.mxu0 0
  %211 = vmatprep.subr.bf16.mxu0 0
  %212 = vmatpush1.bf16.msra.mxu0 0
  %213 = vmatprep.subr.bf16.mxu0 0
  %214 = vmatpush1.bf16.msra.mxu0 0
  %215 = vmatprep.subr.bf16.mxu0 0
  %216 = vmatpush1.bf16.msra.mxu0 0
  %217 = vmatprep.subr.bf16.mxu0 0
  %218 = vmatpush1.bf16.msra.mxu0 0
  %219 = vmatprep.subr.bf16.mxu0 0
  %220 = vmatpush1.bf16.msra.mxu0 0
  %221 = vmatprep.subr.bf16.mxu0 0
  %222 = vmatpush1.bf16.msra.mxu0 0
  %223 = vmatprep.subr.bf16.mxu0 0
  %224 = vmatpush1.bf16.msra.mxu0 0
  %225 = vmatprep.subr.bf16.mxu0 0
  %226 = vmatpush1.bf16.msra.mxu0 0
  %227 = vmatprep.subr.bf16.mxu0 0
  %228 = vmatpush1.bf16.msra.mxu0 0
  %229 = vmatprep.mubr.bf16.mxu0 0
  %230 = vmatmul.mubr.bf16.gmra.mrb[0].mxu0 %v195
  %v231 = vpop.f32.mrb[0].mxu0
  %v232 = vadd.f32 %v40, %v231
  %v233 = vpop.f32.mrb[0].mxu0
  %v234 = vpop.f32.mrb[0].mxu0
  %v235 = vpop.f32.mrb[0].mxu0
  %236 = vdwg.mxu0
  %v237 = vpack.c.bf16 %v191, %v191
  %239 = vrot.lane.b32.xlu0 %v237, 96
  %v240 = vpop.permute.xlu0 %239
  %v242 = vsel %vm54, %v240, 0
  %244 = vmatprep.subr.bf16.mxu0 0
  %245 = vmatpush1.bf16.msra.mxu0 %v112
  %246 = vmatprep.subr.bf16.mxu0 0
  %247 = vmatpush1.bf16.msra.mxu0 %v113
  %248 = vmatprep.subr.bf16.mxu0 0
  %249 = vmatpush1.bf16.msra.mxu0 0
  %250 = vmatprep.subr.bf16.mxu0 0
  %251 = vmatpush1.bf16.msra.mxu0 0
  %252 = vmatprep.subr.bf16.mxu0 0
  %253 = vmatpush1.bf16.msra.mxu0 0
  %254 = vmatprep.subr.bf16.mxu0 0
  %255 = vmatpush1.bf16.msra.mxu0 0
  %256 = vmatprep.subr.bf16.mxu0 0
  %257 = vmatpush1.bf16.msra.mxu0 0
  %258 = vmatprep.subr.bf16.mxu0 0
  %259 = vmatpush1.bf16.msra.mxu0 0
  %260 = vmatprep.subr.bf16.mxu0 0
  %261 = vmatpush1.bf16.msra.mxu0 0
  %262 = vmatprep.subr.bf16.mxu0 0
  %263 = vmatpush1.bf16.msra.mxu0 0
  %264 = vmatprep.subr.bf16.mxu0 0
  %265 = vmatpush1.bf16.msra.mxu0 0
  %266 = vmatprep.subr.bf16.mxu0 0
  %267 = vmatpush1.bf16.msra.mxu0 0
  %268 = vmatprep.subr.bf16.mxu0 0
  %269 = vmatpush1.bf16.msra.mxu0 0
  %270 = vmatprep.subr.bf16.mxu0 0
  %271 = vmatpush1.bf16.msra.mxu0 0
  %272 = vmatprep.subr.bf16.mxu0 0
  %273 = vmatpush1.bf16.msra.mxu0 0
  %274 = vmatprep.subr.bf16.mxu0 0
  %275 = vmatpush1.bf16.msra.mxu0 0
  %276 = vmatprep.mubr.bf16.mxu0 0
  %277 = vmatmul.mubr.bf16.gmra.mrb[0].mxu0 %v242
  %v278 = vpop.f32.mrb[0].mxu0
  %v279 = vadd.f32 %v102, %v278
  %v280 = vpop.f32.mrb[0].mxu0
  %v281 = vpop.f32.mrb[0].mxu0
  %v282 = vpop.f32.mrb[0].mxu0
  %283 = vdwg.mxu0
  %v284 = vadd.f32 %v232, %v279
  %v285 = vxor.u32 %v284, 2147483648
  %v286 = vmul.f32 %v285, 1.442695
  %v287 = vpow.pop %v286
  %v288 = vadd.f32 %v287, 1.0
  %v289 = vrcp.pop %v288
  %v290 = vmul.f32 1.0, %v289
  %292 = vrot.lane.b32.xlu0 %v279, 64
  %v293 = vpop.permute.xlu0 %292
  %v295 = vmul.f32 %v290, %v293
  %297 = vrot.lane.b32.xlu0 %v295, 64
  %v298 = vpop.permute.xlu0 %297
  %v300 = vadd.f32 %v232, %v298
  %v301 = vtanh.pop %v300
  %v302 = vsub.f32 1.0, %v290
  %304 = vrot.lane.b32.xlu0 %v301, 96
  %v305 = vpop.permute.xlu0 %304
  %v307 = vmul.f32 %v302, %v305
  %v308 = vmul.f32 %v290, %v191
  %v309 = vadd.f32 %v307, %v308
  %vm310 = vcmp.ge.s32.totalorder %v34, 1
  %v311 = vsel %vm310, 1, 0
  %312 = vset.pattern.permute.xlu0 0
  %313 = vperm.xlu0 %312, %v311
  %v314 = vpop.permute.xlu0 %313
  %vm315 = vcmp.eq.s32.totalorder %v314, 1
  %v316 = vsel %vm315, %v309, %v191
  %s317 = scalar_lea.vmem %s0, 8
  %v318 = vld [vmem:[%s317] sm:$0xf]
  %v320 = vsel %vm54, %v318, 0
  %322 = vmatprep.subr.bf16.mxu0 0
  %323 = vmatpush1.bf16.msra.mxu0 %v50
  %324 = vmatprep.subr.bf16.mxu0 0
  %325 = vmatpush1.bf16.msra.mxu0 %v51
  %326 = vmatprep.subr.bf16.mxu0 0
  %327 = vmatpush1.bf16.msra.mxu0 0
  %328 = vmatprep.subr.bf16.mxu0 0
  %329 = vmatpush1.bf16.msra.mxu0 0
  %330 = vmatprep.subr.bf16.mxu0 0
  %331 = vmatpush1.bf16.msra.mxu0 0
  %332 = vmatprep.subr.bf16.mxu0 0
  %333 = vmatpush1.bf16.msra.mxu0 0
  %334 = vmatprep.subr.bf16.mxu0 0
  %335 = vmatpush1.bf16.msra.mxu0 0
  %336 = vmatprep.subr.bf16.mxu0 0
  %337 = vmatpush1.bf16.msra.mxu0 0
  %338 = vmatprep.subr.bf16.mxu0 0
  %339 = vmatpush1.bf16.msra.mxu0 0
  %340 = vmatprep.subr.bf16.mxu0 0
  %341 = vmatpush1.bf16.msra.mxu0 0
  %342 = vmatprep.subr.bf16.mxu0 0
  %343 = vmatpush1.bf16.msra.mxu0 0
  %344 = vmatprep.subr.bf16.mxu0 0
  %345 = vmatpush1.bf16.msra.mxu0 0
  %346 = vmatprep.subr.bf16.mxu0 0
  %347 = vmatpush1.bf16.msra.mxu0 0
  %348 = vmatprep.subr.bf16.mxu0 0
  %349 = vmatpush1.bf16.msra.mxu0 0
  %350 = vmatprep.subr.bf16.mxu0 0
  %351 = vmatpush1.bf16.msra.mxu0 0
  %352 = vmatprep.subr.bf16.mxu0 0
  %353 = vmatpush1.bf16.msra.mxu0 0
  %354 = vmatprep.mubr.bf16.mxu0 0
  %355 = vmatmul.mubr.bf16.gmra.mrb[0].mxu0 %v320
  %v356 = vpop.f32.mrb[0].mxu0
  %v357 = vadd.f32 %v40, %v356
  %v358 = vpop.f32.mrb[0].mxu0
  %v359 = vpop.f32.mrb[0].mxu0
  %v360 = vpop.f32.mrb[0].mxu0
  %361 = vdwg.mxu0
  %v362 = vpack.c.bf16 %v316, %v316
  %364 = vrot.lane.b32.xlu0 %v362, 96
  %v365 = vpop.permute.xlu0 %364
  %v367 = vsel %vm54, %v365, 0
  %369 = vmatprep.subr.bf16.mxu0 0
  %370 = vmatpush1.bf16.msra.mxu0 %v112
  %371 = vmatprep.subr.bf16.mxu0 0
  %372 = vmatpush1.bf16.msra.mxu0 %v113
  %373 = vmatprep.subr.bf16.mxu0 0
  %374 = vmatpush1.bf16.msra.mxu0 0
  %375 = vmatprep.subr.bf16.mxu0 0
  %376 = vmatpush1.bf16.msra.mxu0 0
  %377 = vmatprep.subr.bf16.mxu0 0
  %378 = vmatpush1.bf16.msra.mxu0 0
  %379 = vmatprep.subr.bf16.mxu0 0
  %380 = vmatpush1.bf16.msra.mxu0 0
  %381 = vmatprep.subr.bf16.mxu0 0
  %382 = vmatpush1.bf16.msra.mxu0 0
  %383 = vmatprep.subr.bf16.mxu0 0
  %384 = vmatpush1.bf16.msra.mxu0 0
  %385 = vmatprep.subr.bf16.mxu0 0
  %386 = vmatpush1.bf16.msra.mxu0 0
  %387 = vmatprep.subr.bf16.mxu0 0
  %388 = vmatpush1.bf16.msra.mxu0 0
  %389 = vmatprep.subr.bf16.mxu0 0
  %390 = vmatpush1.bf16.msra.mxu0 0
  %391 = vmatprep.subr.bf16.mxu0 0
  %392 = vmatpush1.bf16.msra.mxu0 0
  %393 = vmatprep.subr.bf16.mxu0 0
  %394 = vmatpush1.bf16.msra.mxu0 0
  %395 = vmatprep.subr.bf16.mxu0 0
  %396 = vmatpush1.bf16.msra.mxu0 0
  %397 = vmatprep.subr.bf16.mxu0 0
  %398 = vmatpush1.bf16.msra.mxu0 0
  %399 = vmatprep.subr.bf16.mxu0 0
  %400 = vmatpush1.bf16.msra.mxu0 0
  %401 = vmatprep.mubr.bf16.mxu0 0
  %402 = vmatmul.mubr.bf16.gmra.mrb[0].mxu0 %v367
  %v403 = vpop.f32.mrb[0].mxu0
  %v404 = vadd.f32 %v102, %v403
  %v405 = vpop.f32.mrb[0].mxu0
  %v406 = vpop.f32.mrb[0].mxu0
  %v407 = vpop.f32.mrb[0].mxu0
  %408 = vdwg.mxu0
  %v409 = vadd.f32 %v357, %v404
  %v410 = vxor.u32 %v409, 2147483648
  %v411 = vmul.f32 %v410, 1.442695
  %v412 = vpow.pop %v411
  %v413 = vadd.f32 %v412, 1.0
  %v414 = vrcp.pop %v413
  %v415 = vmul.f32 1.0, %v414
  %417 = vrot.lane.b32.xlu0 %v404, 64
  %v418 = vpop.permute.xlu0 %417
  %v420 = vmul.f32 %v415, %v418
  %422 = vrot.lane.b32.xlu0 %v420, 64
  %v423 = vpop.permute.xlu0 %422
  %v425 = vadd.f32 %v357, %v423
  %v426 = vtanh.pop %v425
  %v427 = vsub.f32 1.0, %v415
  %429 = vrot.lane.b32.xlu0 %v426, 96
  %v430 = vpop.permute.xlu0 %429
  %v432 = vmul.f32 %v427, %v430
  %v433 = vmul.f32 %v415, %v316
  %v434 = vadd.f32 %v432, %v433
  %vm435 = vcmp.ge.s32.totalorder %v34, 2
  %v436 = vsel %vm435, 1, 0
  %437 = vset.pattern.permute.xlu0 0
  %438 = vperm.xlu0 %437, %v436
  %v439 = vpop.permute.xlu0 %438
  %vm440 = vcmp.eq.s32.totalorder %v439, 1
  %v441 = vsel %vm440, %v434, %v316
  %s442 = scalar_lea.vmem %s0, 12
  %v443 = vld [vmem:[%s442] sm:$0xf]
  %v445 = vsel %vm54, %v443, 0
  %447 = vmatprep.subr.bf16.mxu0 0
  %448 = vmatpush1.bf16.msra.mxu0 %v50
  %449 = vmatprep.subr.bf16.mxu0 0
  %450 = vmatpush1.bf16.msra.mxu0 %v51
  %451 = vmatprep.subr.bf16.mxu0 0
  %452 = vmatpush1.bf16.msra.mxu0 0
  %453 = vmatprep.subr.bf16.mxu0 0
  %454 = vmatpush1.bf16.msra.mxu0 0
  %455 = vmatprep.subr.bf16.mxu0 0
  %456 = vmatpush1.bf16.msra.mxu0 0
  %457 = vmatprep.subr.bf16.mxu0 0
  %458 = vmatpush1.bf16.msra.mxu0 0
  %459 = vmatprep.subr.bf16.mxu0 0
  %460 = vmatpush1.bf16.msra.mxu0 0
  %461 = vmatprep.subr.bf16.mxu0 0
  %462 = vmatpush1.bf16.msra.mxu0 0
  %463 = vmatprep.subr.bf16.mxu0 0
  %464 = vmatpush1.bf16.msra.mxu0 0
  %465 = vmatprep.subr.bf16.mxu0 0
  %466 = vmatpush1.bf16.msra.mxu0 0
  %467 = vmatprep.subr.bf16.mxu0 0
  %468 = vmatpush1.bf16.msra.mxu0 0
  %469 = vmatprep.subr.bf16.mxu0 0
  %470 = vmatpush1.bf16.msra.mxu0 0
  %471 = vmatprep.subr.bf16.mxu0 0
  %472 = vmatpush1.bf16.msra.mxu0 0
  %473 = vmatprep.subr.bf16.mxu0 0
  %474 = vmatpush1.bf16.msra.mxu0 0
  %475 = vmatprep.subr.bf16.mxu0 0
  %476 = vmatpush1.bf16.msra.mxu0 0
  %477 = vmatprep.subr.bf16.mxu0 0
  %478 = vmatpush1.bf16.msra.mxu0 0
  %479 = vmatprep.mubr.bf16.mxu0 0
  %480 = vmatmul.mubr.bf16.gmra.mrb[0].mxu0 %v445
  %v481 = vpop.f32.mrb[0].mxu0
  %v482 = vadd.f32 %v40, %v481
  %v483 = vpop.f32.mrb[0].mxu0
  %v484 = vpop.f32.mrb[0].mxu0
  %v485 = vpop.f32.mrb[0].mxu0
  %486 = vdwg.mxu0
  %v487 = vpack.c.bf16 %v441, %v441
  %489 = vrot.lane.b32.xlu0 %v487, 96
  %v490 = vpop.permute.xlu0 %489
  %v492 = vsel %vm54, %v490, 0
  %494 = vmatprep.subr.bf16.mxu0 0
  %495 = vmatpush1.bf16.msra.mxu0 %v112
  %496 = vmatprep.subr.bf16.mxu0 0
  %497 = vmatpush1.bf16.msra.mxu0 %v113
  %498 = vmatprep.subr.bf16.mxu0 0
  %499 = vmatpush1.bf16.msra.mxu0 0
  %500 = vmatprep.subr.bf16.mxu0 0
  %501 = vmatpush1.bf16.msra.mxu0 0
  %502 = vmatprep.subr.bf16.mxu0 0
  %503 = vmatpush1.bf16.msra.mxu0 0
  %504 = vmatprep.subr.bf16.mxu0 0
  %505 = vmatpush1.bf16.msra.mxu0 0
  %506 = vmatprep.subr.bf16.mxu0 0
  %507 = vmatpush1.bf16.msra.mxu0 0
  %508 = vmatprep.subr.bf16.mxu0 0
  %509 = vmatpush1.bf16.msra.mxu0 0
  %510 = vmatprep.subr.bf16.mxu0 0
  %511 = vmatpush1.bf16.msra.mxu0 0
  %512 = vmatprep.subr.bf16.mxu0 0
  %513 = vmatpush1.bf16.msra.mxu0 0
  %514 = vmatprep.subr.bf16.mxu0 0
  %515 = vmatpush1.bf16.msra.mxu0 0
  %516 = vmatprep.subr.bf16.mxu0 0
  %517 = vmatpush1.bf16.msra.mxu0 0
  %518 = vmatprep.subr.bf16.mxu0 0
  %519 = vmatpush1.bf16.msra.mxu0 0
  %520 = vmatprep.subr.bf16.mxu0 0
  %521 = vmatpush1.bf16.msra.mxu0 0
  %522 = vmatprep.subr.bf16.mxu0 0
  %523 = vmatpush1.bf16.msra.mxu0 0
  %524 = vmatprep.subr.bf16.mxu0 0
  %525 = vmatpush1.bf16.msra.mxu0 0
  %526 = vmatprep.mubr.bf16.mxu0 0
  %527 = vmatmul.mubr.bf16.gmra.mrb[0].mxu0 %v492
  %v528 = vpop.f32.mrb[0].mxu0
  %v529 = vadd.f32 %v102, %v528
  %v530 = vpop.f32.mrb[0].mxu0
  %v531 = vpop.f32.mrb[0].mxu0
  %v532 = vpop.f32.mrb[0].mxu0
  %533 = vdwg.mxu0
  %v534 = vadd.f32 %v482, %v529
  %v535 = vxor.u32 %v534, 2147483648
  %v536 = vmul.f32 %v535, 1.442695
  %v537 = vpow.pop %v536
  %v538 = vadd.f32 %v537, 1.0
  %v539 = vrcp.pop %v538
  %v540 = vmul.f32 1.0, %v539
  %542 = vrot.lane.b32.xlu0 %v529, 64
  %v543 = vpop.permute.xlu0 %542
  %v545 = vmul.f32 %v540, %v543
  %547 = vrot.lane.b32.xlu0 %v545, 64
  %v548 = vpop.permute.xlu0 %547
  %v550 = vadd.f32 %v482, %v548
  %v551 = vtanh.pop %v550
  %v552 = vsub.f32 1.0, %v540
  %554 = vrot.lane.b32.xlu0 %v551, 96
  %v555 = vpop.permute.xlu0 %554
  %v557 = vmul.f32 %v552, %v555
  %v558 = vmul.f32 %v540, %v441
  %v559 = vadd.f32 %v557, %v558
  %vm560 = vcmp.ge.s32.totalorder %v34, 3
  %v561 = vsel %vm560, 1, 0
  %562 = vset.pattern.permute.xlu0 0
  %563 = vperm.xlu0 %562, %v561
  %v564 = vpop.permute.xlu0 %563
  %vm565 = vcmp.eq.s32.totalorder %v564, 1
  %v566 = vsel %vm565, %v559, %v441
  %s567 = scalar_lea.vmem %s0, 16
  %v568 = vld [vmem:[%s567] sm:$0xf]
  %v570 = vsel %vm54, %v568, 0
  %572 = vmatprep.subr.bf16.mxu0 0
  %573 = vmatpush1.bf16.msra.mxu0 %v50
  %574 = vmatprep.subr.bf16.mxu0 0
  %575 = vmatpush1.bf16.msra.mxu0 %v51
  %576 = vmatprep.subr.bf16.mxu0 0
  %577 = vmatpush1.bf16.msra.mxu0 0
  %578 = vmatprep.subr.bf16.mxu0 0
  %579 = vmatpush1.bf16.msra.mxu0 0
  %580 = vmatprep.subr.bf16.mxu0 0
  %581 = vmatpush1.bf16.msra.mxu0 0
  %582 = vmatprep.subr.bf16.mxu0 0
  %583 = vmatpush1.bf16.msra.mxu0 0
  %584 = vmatprep.subr.bf16.mxu0 0
  %585 = vmatpush1.bf16.msra.mxu0 0
  %586 = vmatprep.subr.bf16.mxu0 0
  %587 = vmatpush1.bf16.msra.mxu0 0
  %588 = vmatprep.subr.bf16.mxu0 0
  %589 = vmatpush1.bf16.msra.mxu0 0
  %590 = vmatprep.subr.bf16.mxu0 0
  %591 = vmatpush1.bf16.msra.mxu0 0
  %592 = vmatprep.subr.bf16.mxu0 0
  %593 = vmatpush1.bf16.msra.mxu0 0
  %594 = vmatprep.subr.bf16.mxu0 0
  %595 = vmatpush1.bf16.msra.mxu0 0
  %596 = vmatprep.subr.bf16.mxu0 0
  %597 = vmatpush1.bf16.msra.mxu0 0
  %598 = vmatprep.subr.bf16.mxu0 0
  %599 = vmatpush1.bf16.msra.mxu0 0
  %600 = vmatprep.subr.bf16.mxu0 0
  %601 = vmatpush1.bf16.msra.mxu0 0
  %602 = vmatprep.subr.bf16.mxu0 0
  %603 = vmatpush1.bf16.msra.mxu0 0
  %604 = vmatprep.mubr.bf16.mxu0 0
  %605 = vmatmul.mubr.bf16.gmra.mrb[0].mxu0 %v570
  %v606 = vpop.f32.mrb[0].mxu0
  %v607 = vadd.f32 %v40, %v606
  %v608 = vpop.f32.mrb[0].mxu0
  %v609 = vpop.f32.mrb[0].mxu0
  %v610 = vpop.f32.mrb[0].mxu0
  %611 = vdwg.mxu0
  %v612 = vpack.c.bf16 %v566, %v566
  %614 = vrot.lane.b32.xlu0 %v612, 96
  %v615 = vpop.permute.xlu0 %614
  %v617 = vsel %vm54, %v615, 0
  %619 = vmatprep.subr.bf16.mxu0 0
  %620 = vmatpush1.bf16.msra.mxu0 %v112
  %621 = vmatprep.subr.bf16.mxu0 0
  %622 = vmatpush1.bf16.msra.mxu0 %v113
  %623 = vmatprep.subr.bf16.mxu0 0
  %624 = vmatpush1.bf16.msra.mxu0 0
  %625 = vmatprep.subr.bf16.mxu0 0
  %626 = vmatpush1.bf16.msra.mxu0 0
  %627 = vmatprep.subr.bf16.mxu0 0
  %628 = vmatpush1.bf16.msra.mxu0 0
  %629 = vmatprep.subr.bf16.mxu0 0
  %630 = vmatpush1.bf16.msra.mxu0 0
  %631 = vmatprep.subr.bf16.mxu0 0
  %632 = vmatpush1.bf16.msra.mxu0 0
  %633 = vmatprep.subr.bf16.mxu0 0
  %634 = vmatpush1.bf16.msra.mxu0 0
  %635 = vmatprep.subr.bf16.mxu0 0
  %636 = vmatpush1.bf16.msra.mxu0 0
  %637 = vmatprep.subr.bf16.mxu0 0
  %638 = vmatpush1.bf16.msra.mxu0 0
  %639 = vmatprep.subr.bf16.mxu0 0
  %640 = vmatpush1.bf16.msra.mxu0 0
  %641 = vmatprep.subr.bf16.mxu0 0
  %642 = vmatpush1.bf16.msra.mxu0 0
  %643 = vmatprep.subr.bf16.mxu0 0
  %644 = vmatpush1.bf16.msra.mxu0 0
  %645 = vmatprep.subr.bf16.mxu0 0
  %646 = vmatpush1.bf16.msra.mxu0 0
  %647 = vmatprep.subr.bf16.mxu0 0
  %648 = vmatpush1.bf16.msra.mxu0 0
  %649 = vmatprep.subr.bf16.mxu0 0
  %650 = vmatpush1.bf16.msra.mxu0 0
  %651 = vmatprep.mubr.bf16.mxu0 0
  %652 = vmatmul.mubr.bf16.gmra.mrb[0].mxu0 %v617
  %v653 = vpop.f32.mrb[0].mxu0
  %v654 = vadd.f32 %v102, %v653
  %v655 = vpop.f32.mrb[0].mxu0
  %v656 = vpop.f32.mrb[0].mxu0
  %v657 = vpop.f32.mrb[0].mxu0
  %658 = vdwg.mxu0
  %v659 = vadd.f32 %v607, %v654
  %v660 = vxor.u32 %v659, 2147483648
  %v661 = vmul.f32 %v660, 1.442695
  %v662 = vpow.pop %v661
  %v663 = vadd.f32 %v662, 1.0
  %v664 = vrcp.pop %v663
  %v665 = vmul.f32 1.0, %v664
  %667 = vrot.lane.b32.xlu0 %v654, 64
  %v668 = vpop.permute.xlu0 %667
  %v670 = vmul.f32 %v665, %v668
  %672 = vrot.lane.b32.xlu0 %v670, 64
  %v673 = vpop.permute.xlu0 %672
  %v675 = vadd.f32 %v607, %v673
  %v676 = vtanh.pop %v675
  %v677 = vsub.f32 1.0, %v665
  %679 = vrot.lane.b32.xlu0 %v676, 96
  %v680 = vpop.permute.xlu0 %679
  %v682 = vmul.f32 %v677, %v680
  %v683 = vmul.f32 %v665, %v566
  %v684 = vadd.f32 %v682, %v683
  %vm685 = vcmp.ge.s32.totalorder %v34, 4
  %v686 = vsel %vm685, 1, 0
  %687 = vset.pattern.permute.xlu0 0
  %688 = vperm.xlu0 %687, %v686
  %v689 = vpop.permute.xlu0 %688
  %vm690 = vcmp.eq.s32.totalorder %v689, 1
  %v691 = vsel %vm690, %v684, %v566
  %s692 = scalar_lea.vmem %s0, 20
  %v693 = vld [vmem:[%s692] sm:$0xf]
  %v695 = vsel %vm54, %v693, 0
  %697 = vmatprep.subr.bf16.mxu0 0
  %698 = vmatpush1.bf16.msra.mxu0 %v50
  %699 = vmatprep.subr.bf16.mxu0 0
  %700 = vmatpush1.bf16.msra.mxu0 %v51
  %701 = vmatprep.subr.bf16.mxu0 0
  %702 = vmatpush1.bf16.msra.mxu0 0
  %703 = vmatprep.subr.bf16.mxu0 0
  %704 = vmatpush1.bf16.msra.mxu0 0
  %705 = vmatprep.subr.bf16.mxu0 0
  %706 = vmatpush1.bf16.msra.mxu0 0
  %707 = vmatprep.subr.bf16.mxu0 0
  %708 = vmatpush1.bf16.msra.mxu0 0
  %709 = vmatprep.subr.bf16.mxu0 0
  %710 = vmatpush1.bf16.msra.mxu0 0
  %711 = vmatprep.subr.bf16.mxu0 0
  %712 = vmatpush1.bf16.msra.mxu0 0
  %713 = vmatprep.subr.bf16.mxu0 0
  %714 = vmatpush1.bf16.msra.mxu0 0
  %715 = vmatprep.subr.bf16.mxu0 0
  %716 = vmatpush1.bf16.msra.mxu0 0
  %717 = vmatprep.subr.bf16.mxu0 0
  %718 = vmatpush1.bf16.msra.mxu0 0
  %719 = vmatprep.subr.bf16.mxu0 0
  %720 = vmatpush1.bf16.msra.mxu0 0
  %721 = vmatprep.subr.bf16.mxu0 0
  %722 = vmatpush1.bf16.msra.mxu0 0
  %723 = vmatprep.subr.bf16.mxu0 0
  %724 = vmatpush1.bf16.msra.mxu0 0
  %725 = vmatprep.subr.bf16.mxu0 0
  %726 = vmatpush1.bf16.msra.mxu0 0
  %727 = vmatprep.subr.bf16.mxu0 0
  %728 = vmatpush1.bf16.msra.mxu0 0
  %729 = vmatprep.mubr.bf16.mxu0 0
  %730 = vmatmul.mubr.bf16.gmra.mrb[0].mxu0 %v695
  %v731 = vpop.f32.mrb[0].mxu0
  %v732 = vadd.f32 %v40, %v731
  %v733 = vpop.f32.mrb[0].mxu0
  %v734 = vpop.f32.mrb[0].mxu0
  %v735 = vpop.f32.mrb[0].mxu0
  %736 = vdwg.mxu0
  %v737 = vpack.c.bf16 %v691, %v691
  %739 = vrot.lane.b32.xlu0 %v737, 96
  %v740 = vpop.permute.xlu0 %739
  %v742 = vsel %vm54, %v740, 0
  %744 = vmatprep.subr.bf16.mxu0 0
  %745 = vmatpush1.bf16.msra.mxu0 %v112
  %746 = vmatprep.subr.bf16.mxu0 0
  %747 = vmatpush1.bf16.msra.mxu0 %v113
  %748 = vmatprep.subr.bf16.mxu0 0
  %749 = vmatpush1.bf16.msra.mxu0 0
  %750 = vmatprep.subr.bf16.mxu0 0
  %751 = vmatpush1.bf16.msra.mxu0 0
  %752 = vmatprep.subr.bf16.mxu0 0
  %753 = vmatpush1.bf16.msra.mxu0 0
  %754 = vmatprep.subr.bf16.mxu0 0
  %755 = vmatpush1.bf16.msra.mxu0 0
  %756 = vmatprep.subr.bf16.mxu0 0
  %757 = vmatpush1.bf16.msra.mxu0 0
  %758 = vmatprep.subr.bf16.mxu0 0
  %759 = vmatpush1.bf16.msra.mxu0 0
  %760 = vmatprep.subr.bf16.mxu0 0
  %761 = vmatpush1.bf16.msra.mxu0 0
  %762 = vmatprep.subr.bf16.mxu0 0
  %763 = vmatpush1.bf16.msra.mxu0 0
  %764 = vmatprep.subr.bf16.mxu0 0
  %765 = vmatpush1.bf16.msra.mxu0 0
  %766 = vmatprep.subr.bf16.mxu0 0
  %767 = vmatpush1.bf16.msra.mxu0 0
  %768 = vmatprep.subr.bf16.mxu0 0
  %769 = vmatpush1.bf16.msra.mxu0 0
  %770 = vmatprep.subr.bf16.mxu0 0
  %771 = vmatpush1.bf16.msra.mxu0 0
  %772 = vmatprep.subr.bf16.mxu0 0
  %773 = vmatpush1.bf16.msra.mxu0 0
  %774 = vmatprep.subr.bf16.mxu0 0
  %775 = vmatpush1.bf16.msra.mxu0 0
  %776 = vmatprep.mubr.bf16.mxu0 0
  %777 = vmatmul.mubr.bf16.gmra.mrb[0].mxu0 %v742
  %v778 = vpop.f32.mrb[0].mxu0
  %v779 = vadd.f32 %v102, %v778
  %v780 = vpop.f32.mrb[0].mxu0
  %v781 = vpop.f32.mrb[0].mxu0
  %v782 = vpop.f32.mrb[0].mxu0
  %783 = vdwg.mxu0
  %v784 = vadd.f32 %v732, %v779
  %v785 = vxor.u32 %v784, 2147483648
  %v786 = vmul.f32 %v785, 1.442695
  %v787 = vpow.pop %v786
  %v788 = vadd.f32 %v787, 1.0
  %v789 = vrcp.pop %v788
  %v790 = vmul.f32 1.0, %v789
  %792 = vrot.lane.b32.xlu0 %v779, 64
  %v793 = vpop.permute.xlu0 %792
  %v795 = vmul.f32 %v790, %v793
  %797 = vrot.lane.b32.xlu0 %v795, 64
  %v798 = vpop.permute.xlu0 %797
  %v800 = vadd.f32 %v732, %v798
  %v801 = vtanh.pop %v800
  %v802 = vsub.f32 1.0, %v790
  %804 = vrot.lane.b32.xlu0 %v801, 96
  %v805 = vpop.permute.xlu0 %804
  %v807 = vmul.f32 %v802, %v805
  %v808 = vmul.f32 %v790, %v691
  %v809 = vadd.f32 %v807, %v808
  %vm810 = vcmp.ge.s32.totalorder %v34, 5
  %v811 = vsel %vm810, 1, 0
  %812 = vset.pattern.permute.xlu0 0
  %813 = vperm.xlu0 %812, %v811
  %v814 = vpop.permute.xlu0 %813
  %vm815 = vcmp.eq.s32.totalorder %v814, 1
  %v816 = vsel %vm815, %v809, %v691
  %818 = vrot.lane.b32.xlu0 %v816, 96
  %v819 = vpop.permute.xlu0 %818
  %821 = vst.msk [vmem:[%s6] sm:$0xff] %vm54, %v819
  // Predicated region
  $region26: #{dmn_forward.4} parent=0 // pred_check
    _
  $region27: #{dmn_forward.4} parent=0 // pred_check_branch
    %823 = sbr.rel (0) target = $region29
  $region28: #{dmn_forward.4} parent=0 // pred_region
    _
  $region29: #{dmn_forward.4} parent=0 // pred_fallthru
    _
  // Predicated region
  $region30: #{dmn_forward.4} parent=0 // pred_check
    _
  $region31: #{dmn_forward.4} parent=0 // pred_check_branch
    %825 = sbr.rel (0) target = $region33
  $region32: #{dmn_forward.4} parent=0 // pred_region
    _
  $region33: #{dmn_forward.4} parent=0 // pred_fallthru
    _

// kernel: dmn_forward.7
$region0: #{dmn_forward.7}
  #allocation0 [shape = 'u32[]', space=smem, size = 0x4, offset = 0x4, fixed_abs, tag = 'smem constant byte address 0x4 - core index']
  #allocation1 [shape = 'u32[144,128]{1,0:T(1,128)}', space=vmem, size = 0x12000, scoped, tag = 'internal scratch']
  #allocation2 [shape = 'f32[1,1]{1,0:T(1,128)S(1)}', space=vmem, size = 0x200, scoped, tag = 'scoped memory for dmn_forward.7']
  %s0 = inlined_call_operand.vmem [shape: f32[3,8,32], index: 0, kind: input, shape index: {}]
  %s1 = inlined_call_operand.vmem [shape: f32[8,32], index: 1, kind: input, shape index: {}]
  %s2 = inlined_call_operand.vmem [shape: f32[8,32], index: 2, kind: input, shape index: {}]
  %s3 = inlined_call_operand.vmem [shape: f32[8,32], index: 3, kind: input, shape index: {}]
  %s4 = inlined_call_operand.vmem [shape: bf16[160,32], index: 4, kind: input, shape index: {}]
  %s5 = inlined_call_operand.vmem [shape: bf16[32,32], index: 5, kind: input, shape index: {}]
  %s6 = inlined_call_operand.vmem [shape: bf16[32,32], index: 6, kind: input, shape index: {}]
  %s7 = inlined_call_operand.vmem [shape: f32[1,32], index: 7, kind: input, shape index: {}]
  %s8 = inlined_call_operand.vmem [shape: f32[1,32], index: 8, kind: input, shape index: {}]
  %s9 = inlined_call_operand.<no memory space> [shape: f32[1,1], index: 9, kind: input, shape index: {}]
  %s10 = inlined_call_operand.vmem [shape: bf16[32,96], index: 10, kind: input, shape index: {}]
  %s11 = inlined_call_operand.vmem [shape: bf16[32,96], index: 11, kind: input, shape index: {}]
  %s12 = inlined_call_operand.vmem [shape: f32[1,96], index: 12, kind: input, shape index: {}]
  %s13 = inlined_call_operand.vmem [shape: f32[1,96], index: 13, kind: input, shape index: {}]
  %s14 = inlined_call_operand.vmem [shape: bf16[32,96], index: 14, kind: input, shape index: {}]
  %s15 = inlined_call_operand.vmem [shape: bf16[32,96], index: 15, kind: input, shape index: {}]
  %s16 = inlined_call_operand.vmem [shape: f32[1,96], index: 16, kind: input, shape index: {}]
  %s17 = inlined_call_operand.vmem [shape: f32[1,96], index: 17, kind: input, shape index: {}]
  %s18 = inlined_call_operand.vmem [shape: bf16[96,32], index: 18, kind: input, shape index: {}]
  %s19 = inlined_call_operand.vmem [shape: f32[1,32], index: 19, kind: input, shape index: {}]
  %s20 = inlined_call_operand.vmem [shape: bf16[32,2], index: 20, kind: input, shape index: {}]
  %s21 = inlined_call_operand.vmem [shape: f32[1,2], index: 21, kind: input, shape index: {}]
  %s22 = inlined_call_operand.vmem [shape: f32[8,2], index: 22, kind: output, shape index: {}]
  %s23 = sld [smem:[#allocation0]]
  $region98: #{dmn_forward.7} parent=0
    _
  %s25 = ssub.s32 1, %s23
  %s26 = scalar_select 0, %s25, %s23
  %v27 = vstv %s9
  %28 = vst [vmem:[#allocation2] sm:$0x1] %v27
  // Predicated region
  $region2: #{dmn_forward.7} parent=0 // pred_check
    _
  $region3: #{dmn_forward.7} parent=0 // pred_check_branch
    %30 = sbr.rel (0) target = $region5
  $region4: #{dmn_forward.7} parent=0 // pred_region
    _
  $region5: #{dmn_forward.7} parent=0 // pred_fallthru
    _
  // Predicated region
  $region6: #{dmn_forward.7} parent=0 // pred_check
    _
  $region7: #{dmn_forward.7} parent=0 // pred_check_branch
    %32 = sbr.rel (0) target = $region9
  $region8: #{dmn_forward.7} parent=0 // pred_region
    _
  $region9: #{dmn_forward.7} parent=0 // pred_fallthru
    _
  // Predicated region
  $region10: #{dmn_forward.7} parent=0 // pred_check
    _
  $region11: #{dmn_forward.7} parent=0 // pred_check_branch
    %34 = sbr.rel (0) target = $region13
  $region12: #{dmn_forward.7} parent=0 // pred_region
    _
  $region13: #{dmn_forward.7} parent=0 // pred_fallthru
    _
  // Predicated region
  $region14: #{dmn_forward.7} parent=0 // pred_check
    _
  $region15: #{dmn_forward.7} parent=0 // pred_check_branch
    %36 = sbr.rel (0) target = $region17
  $region16: #{dmn_forward.7} parent=0 // pred_region
    _
  $region17: #{dmn_forward.7} parent=0 // pred_fallthru
    _
  // Predicated region
  $region18: #{dmn_forward.7} parent=0 // pred_check
    _
  $region19: #{dmn_forward.7} parent=0 // pred_check_branch
    %38 = sbr.rel (0) target = $region21
  $region20: #{dmn_forward.7} parent=0 // pred_region
    _
  $region21: #{dmn_forward.7} parent=0 // pred_fallthru
    _
  // Predicated region
  $region22: #{dmn_forward.7} parent=0 // pred_check
    _
  $region23: #{dmn_forward.7} parent=0 // pred_check_branch
    %40 = sbr.rel (0) target = $region25
  $region24: #{dmn_forward.7} parent=0 // pred_region
    _
  $region25: #{dmn_forward.7} parent=0 // pred_fallthru
    _
  // Predicated region
  $region26: #{dmn_forward.7} parent=0 // pred_check
    _
  $region27: #{dmn_forward.7} parent=0 // pred_check_branch
    %42 = sbr.rel (0) target = $region29
  $region28: #{dmn_forward.7} parent=0 // pred_region
    _
  $region29: #{dmn_forward.7} parent=0 // pred_fallthru
    _
  // Predicated region
  $region30: #{dmn_forward.7} parent=0 // pred_check
    _
  $region31: #{dmn_forward.7} parent=0 // pred_check_branch
    %44 = sbr.rel (0) target = $region33
  $region32: #{dmn_forward.7} parent=0 // pred_region
    _
  $region33: #{dmn_forward.7} parent=0 // pred_fallthru
    _
  // Predicated region
  $region34: #{dmn_forward.7} parent=0 // pred_check
    _
  $region35: #{dmn_forward.7} parent=0 // pred_check_branch
    %46 = sbr.rel (0) target = $region37
  $region36: #{dmn_forward.7} parent=0 // pred_region
    _
  $region37: #{dmn_forward.7} parent=0 // pred_fallthru
    _
  // Predicated region
  $region38: #{dmn_forward.7} parent=0 // pred_check
    _
  $region39: #{dmn_forward.7} parent=0 // pred_check_branch
    %48 = sbr.rel (0) target = $region41
  $region40: #{dmn_forward.7} parent=0 // pred_region
    _
  $region41: #{dmn_forward.7} parent=0 // pred_fallthru
    _
  // Predicated region
  $region42: #{dmn_forward.7} parent=0 // pred_check
    _
  $region43: #{dmn_forward.7} parent=0 // pred_check_branch
    %50 = sbr.rel (0) target = $region45
  $region44: #{dmn_forward.7} parent=0 // pred_region
    _
  $region45: #{dmn_forward.7} parent=0 // pred_fallthru
    _
  // Predicated region
  $region46: #{dmn_forward.7} parent=0 // pred_check
    _
  $region47: #{dmn_forward.7} parent=0 // pred_check_branch
    %52 = sbr.rel (0) target = $region49
  $region48: #{dmn_forward.7} parent=0 // pred_region
    _
  $region49: #{dmn_forward.7} parent=0 // pred_fallthru
    _
  // Predicated region
  $region50: #{dmn_forward.7} parent=0 // pred_check
    _
  $region51: #{dmn_forward.7} parent=0 // pred_check_branch
    %54 = sbr.rel (0) target = $region53
  $region52: #{dmn_forward.7} parent=0 // pred_region
    _
  $region53: #{dmn_forward.7} parent=0 // pred_fallthru
    _
  // Predicated region
  $region54: #{dmn_forward.7} parent=0 // pred_check
    _
  $region55: #{dmn_forward.7} parent=0 // pred_check_branch
    %56 = sbr.rel (0) target = $region57
  $region56: #{dmn_forward.7} parent=0 // pred_region
    _
  $region57: #{dmn_forward.7} parent=0 // pred_fallthru
    _
  // Predicated region
  $region58: #{dmn_forward.7} parent=0 // pred_check
    _
  $region59: #{dmn_forward.7} parent=0 // pred_check_branch
    %58 = sbr.rel (0) target = $region61
  $region60: #{dmn_forward.7} parent=0 // pred_region
    _
  $region61: #{dmn_forward.7} parent=0 // pred_fallthru
    _
  // Predicated region
  $region62: #{dmn_forward.7} parent=0 // pred_check
    _
  $region63: #{dmn_forward.7} parent=0 // pred_check_branch
    %60 = sbr.rel (0) target = $region65
  $region64: #{dmn_forward.7} parent=0 // pred_region
    _
  $region65: #{dmn_forward.7} parent=0 // pred_fallthru
    _
  // Predicated region
  $region66: #{dmn_forward.7} parent=0 // pred_check
    _
  $region67: #{dmn_forward.7} parent=0 // pred_check_branch
    %62 = sbr.rel (0) target = $region69
  $region68: #{dmn_forward.7} parent=0 // pred_region
    _
  $region69: #{dmn_forward.7} parent=0 // pred_fallthru
    _
  // Predicated region
  $region70: #{dmn_forward.7} parent=0 // pred_check
    _
  $region71: #{dmn_forward.7} parent=0 // pred_check_branch
    %64 = sbr.rel (0) target = $region73
  $region72: #{dmn_forward.7} parent=0 // pred_region
    _
  $region73: #{dmn_forward.7} parent=0 // pred_fallthru
    _
  // Predicated region
  $region74: #{dmn_forward.7} parent=0 // pred_check
    _
  $region75: #{dmn_forward.7} parent=0 // pred_check_branch
    %66 = sbr.rel (0) target = $region77
  $region76: #{dmn_forward.7} parent=0 // pred_region
    _
  $region77: #{dmn_forward.7} parent=0 // pred_fallthru
    _
  // Predicated region
  $region78: #{dmn_forward.7} parent=0 // pred_check
    _
  $region79: #{dmn_forward.7} parent=0 // pred_check_branch
    %68 = sbr.rel (0) target = $region81
  $region80: #{dmn_forward.7} parent=0 // pred_region
    _
  $region81: #{dmn_forward.7} parent=0 // pred_fallthru
    _
  // Predicated region
  $region82: #{dmn_forward.7} parent=0 // pred_check
    _
  $region83: #{dmn_forward.7} parent=0 // pred_check_branch
    %70 = sbr.rel (0) target = $region85
  $region84: #{dmn_forward.7} parent=0 // pred_region
    _
  $region85: #{dmn_forward.7} parent=0 // pred_fallthru
    _
  // Predicated region
  $region86: #{dmn_forward.7} parent=0 // pred_check
    _
  $region87: #{dmn_forward.7} parent=0 // pred_check_branch
    %72 = sbr.rel (0) target = $region89
  $region88: #{dmn_forward.7} parent=0 // pred_region
    _
  $region89: #{dmn_forward.7} parent=0 // pred_fallthru
    _
  %v74 = vld [vmem:[%s1] sm:$0xff]
  %v75 = vld [vmem:[%s4] sm:$0xf]
  %v76 = vld [vmem:[%s4 + $0x4] sm:$0xf]
  %v77 = vld [vmem:[%s4 + $0x8] sm:$0xf]
  %v78 = vld [vmem:[%s4 + $0xc] sm:$0xf]
  %v79 = vld [vmem:[%s4 + $0x10] sm:$0xf]
  %v80 = vld [vmem:[%s4 + $0x14] sm:$0xf]
  %v81 = vld [vmem:[%s4 + $0x18] sm:$0xf]
  %v82 = vld [vmem:[%s4 + $0x1c] sm:$0xf]
  %v83 = vld [vmem:[%s4 + $0x20] sm:$0xf]
  %v84 = vld [vmem:[%s4 + $0x24] sm:$0xf]
  %v85 = vld [vmem:[%s4 + $0x28] sm:$0xf]
  %v86 = vld [vmem:[%s4 + $0x2c] sm:$0xf]
  %v87 = vld [vmem:[%s4 + $0x30] sm:$0xf]
  %v88 = vld [vmem:[%s4 + $0x34] sm:$0xf]
  %v89 = vld [vmem:[%s4 + $0x38] sm:$0xf]
  %v90 = vld [vmem:[%s4 + $0x3c] sm:$0xf]
  %v91 = vld [vmem:[%s4 + $0x40] sm:$0xf]
  %v92 = vld [vmem:[%s4 + $0x44] sm:$0xf]
  %v93 = vld [vmem:[%s4 + $0x48] sm:$0xf]
  %v94 = vld [vmem:[%s4 + $0x4c] sm:$0xf]
  %v95 = vld [vmem:[%s5] sm:$0xf]
  %v96 = vld [vmem:[%s5 + $0x4] sm:$0xf]
  %v97 = vld [vmem:[%s5 + $0x8] sm:$0xf]
  %v98 = vld [vmem:[%s5 + $0xc] sm:$0xf]
  %v99 = vld [vmem:[%s6] sm:$0xf]
  %v100 = vld [vmem:[%s6 + $0x4] sm:$0xf]
  %v101 = vld [vmem:[%s6 + $0x8] sm:$0xf]
  %v102 = vld [vmem:[%s6 + $0xc] sm:$0xf]
  %v103 = vld [vmem:[%s7] sm:$0x1]
  %v104 = vld [vmem:[%s8] sm:$0x1]
  %v105 = vld [vmem:[#allocation2] sm:$0x1]
  %v106 = vld [vmem:[%s10] sm:$0xf]
  %v107 = vld [vmem:[%s10 + $0x4] sm:$0xf]
  %v108 = vld [vmem:[%s10 + $0x8] sm:$0xf]
  %v109 = vld [vmem:[%s10 + $0xc] sm:$0xf]
  %v110 = vld [vmem:[%s11] sm:$0xf]
  %v111 = vld [vmem:[%s11 + $0x4] sm:$0xf]
  %v112 = vld [vmem:[%s11 + $0x8] sm:$0xf]
  %v113 = vld [vmem:[%s11 + $0xc] sm:$0xf]
  %v114 = vld [vmem:[%s12] sm:$0x1]
  %v115 = vld [vmem:[%s13] sm:$0x1]
  %v116 = vld [vmem:[%s14] sm:$0xf]
  %v117 = vld [vmem:[%s14 + $0x4] sm:$0xf]
  %v118 = vld [vmem:[%s14 + $0x8] sm:$0xf]
  %v119 = vld [vmem:[%s14 + $0xc] sm:$0xf]
  %v120 = vld [vmem:[%s15] sm:$0xf]
  %v121 = vld [vmem:[%s15 + $0x4] sm:$0xf]
  %v122 = vld [vmem:[%s15 + $0x8] sm:$0xf]
  %v123 = vld [vmem:[%s15 + $0xc] sm:$0xf]
  %v124 = vld [vmem:[%s16] sm:$0x1]
  %v125 = vld [vmem:[%s17] sm:$0x1]
  %v126 = vpack.c.bf16 %v74, %v74
  %v131 = vunpack.c.l.b16 %v95
  %v132 = vunpack.c.l.b16 %v96
  %v133 = vunpack.c.l.b16 %v97
  %v134 = vunpack.c.l.b16 %v98
  %v135 = vpack.c.b16 %v132, %v131
  %v136 = vpack.c.b16 %v134, %v133
  %vm139 = vcmask 261120
  %v141 = vsel %vm139, %v126, 0
  %143 = vmatprep.subr.bf16.mxu0 0
  %144 = vmatpush1.bf16.msra.mxu0 %v135
  %145 = vmatprep.subr.bf16.mxu0 0
  %146 = vmatpush1.bf16.msra.mxu0 %v136
  %147 = vmatprep.subr.bf16.mxu0 0
  %148 = vmatpush1.bf16.msra.mxu0 0
  %149 = vmatprep.subr.bf16.mxu0 0
  %150 = vmatpush1.bf16.msra.mxu0 0
  %151 = vmatprep.subr.bf16.mxu0 0
  %152 = vmatpush1.bf16.msra.mxu0 0
  %153 = vmatprep.subr.bf16.mxu0 0
  %154 = vmatpush1.bf16.msra.mxu0 0
  %155 = vmatprep.subr.bf16.mxu0 0
  %156 = vmatpush1.bf16.msra.mxu0 0
  %157 = vmatprep.subr.bf16.mxu0 0
  %158 = vmatpush1.bf16.msra.mxu0 0
  %159 = vmatprep.subr.bf16.mxu0 0
  %160 = vmatpush1.bf16.msra.mxu0 0
  %161 = vmatprep.subr.bf16.mxu0 0
  %162 = vmatpush1.bf16.msra.mxu0 0
  %163 = vmatprep.subr.bf16.mxu0 0
  %164 = vmatpush1.bf16.msra.mxu0 0
  %165 = vmatprep.subr.bf16.mxu0 0
  %166 = vmatpush1.bf16.msra.mxu0 0
  %167 = vmatprep.subr.bf16.mxu0 0
  %168 = vmatpush1.bf16.msra.mxu0 0
  %169 = vmatprep.subr.bf16.mxu0 0
  %170 = vmatpush1.bf16.msra.mxu0 0
  %171 = vmatprep.subr.bf16.mxu0 0
  %172 = vmatpush1.bf16.msra.mxu0 0
  %173 = vmatprep.subr.bf16.mxu0 0
  %174 = vmatpush1.bf16.msra.mxu0 0
  %175 = vmatprep.mubr.bf16.mxu0 0
  %176 = vmatmul.mubr.bf16.gmra.mrb[0].mxu0 %v141
  %v177 = vpop.f32.mrb[0].mxu0
  %v178 = vadd.f32 0.0, %v177
  %v179 = vpop.f32.mrb[0].mxu0
  %v180 = vpop.f32.mrb[0].mxu0
  %v181 = vpop.f32.mrb[0].mxu0
  %182 = vdwg.mxu0
  %v187 = vunpack.c.l.b16 %v99
  %v188 = vunpack.c.l.b16 %v100
  %v189 = vunpack.c.l.b16 %v101
  %v190 = vunpack.c.l.b16 %v102
  %v191 = vpack.c.b16 %v188, %v187
  %v192 = vpack.c.b16 %v190, %v189
  %195 = vmatprep.subr.bf16.mxu0 0
  %196 = vmatpush1.bf16.msra.mxu0 %v191
  %197 = vmatprep.subr.bf16.mxu0 0
  %198 = vmatpush1.bf16.msra.mxu0 %v192
  %199 = vmatprep.subr.bf16.mxu0 0
  %200 = vmatpush1.bf16.msra.mxu0 0
  %201 = vmatprep.subr.bf16.mxu0 0
  %202 = vmatpush1.bf16.msra.mxu0 0
  %203 = vmatprep.subr.bf16.mxu0 0
  %204 = vmatpush1.bf16.msra.mxu0 0
  %205 = vmatprep.subr.bf16.mxu0 0
  %206 = vmatpush1.bf16.msra.mxu0 0
  %207 = vmatprep.subr.bf16.mxu0 0
  %208 = vmatpush1.bf16.msra.mxu0 0
  %209 = vmatprep.subr.bf16.mxu0 0
  %210 = vmatpush1.bf16.msra.mxu0 0
  %211 = vmatprep.subr.bf16.mxu0 0
  %212 = vmatpush1.bf16.msra.mxu0 0
  %213 = vmatprep.subr.bf16.mxu0 0
  %214 = vmatpush1.bf16.msra.mxu0 0
  %215 = vmatprep.subr.bf16.mxu0 0
  %216 = vmatpush1.bf16.msra.mxu0 0
  %217 = vmatprep.subr.bf16.mxu0 0
  %218 = vmatpush1.bf16.msra.mxu0 0
  %219 = vmatprep.subr.bf16.mxu0 0
  %220 = vmatpush1.bf16.msra.mxu0 0
  %221 = vmatprep.subr.bf16.mxu0 0
  %222 = vmatpush1.bf16.msra.mxu0 0
  %223 = vmatprep.subr.bf16.mxu0 0
  %224 = vmatpush1.bf16.msra.mxu0 0
  %225 = vmatprep.subr.bf16.mxu0 0
  %226 = vmatpush1.bf16.msra.mxu0 0
  %227 = vmatprep.mubr.bf16.mxu0 0
  %228 = vmatmul.mubr.bf16.gmra.mrb[0].mxu0 %v141
  %v229 = vpop.f32.mrb[0].mxu0
  %v230 = vadd.f32 0.0, %v229
  %v231 = vpop.f32.mrb[0].mxu0
  %v232 = vpop.f32.mrb[0].mxu0
  %v233 = vpop.f32.mrb[0].mxu0
  %234 = vdwg.mxu0
  %v235 = vadd.f32 %v178, %v230
  %v237 = vlaneseq
  %v238 = vshrl.u32 %v237, 7
  %v239 = vsub.s32 0, %v238
  %v240 = vrot.slane %v103, %v239
  %v242 = vadd.f32 %v235, %v240
  %v243 = vld [vmem:[%s0] sm:$0xff]
  %v244 = vmul.f32 %v243, %v74
  %v245 = vsub.f32 %v243, %v74
  %v246 = vand.u32 2147483647, %v245
  %248 = vrot.lane.b32.xlu0 %v244, 32
  %v249 = vpop.permute.xlu0 %248
  %251 = vrot.lane.b32.xlu0 %v244, 64
  %v252 = vpop.permute.xlu0 %251
  %255 = vrot.lane.b32.xlu0 %v246, 96
  %v256 = vpop.permute.xlu0 %255
  %v258 = vsel %vm139, %v243, %v249
  %vm259 = vcmask 523264
  %v260 = vsel %vm259, %v258, %v252
  %vm261 = vcmask 785408
  %v262 = vsel %vm261, %v260, %v256
  %v263 = vpack.c.bf16 %v262, %v262
  %v264 = vpack.c.bf16 %v246, %v246
  %v285 = vunpack.c.l.b16 %v75
  %v286 = vunpack.c.l.b16 %v76
  %v287 = vunpack.c.l.b16 %v77
  %v288 = vunpack.c.l.b16 %v78
  %v289 = vunpack.c.l.b16 %v79
  %v290 = vunpack.c.l.b16 %v80
  %v291 = vunpack.c.l.b16 %v81
  %v292 = vunpack.c.l.b16 %v82
  %v293 = vunpack.c.l.b16 %v83
  %v294 = vunpack.c.l.b16 %v84
  %v295 = vunpack.c.l.b16 %v85
  %v296 = vunpack.c.l.b16 %v86
  %v297 = vunpack.c.l.b16 %v87
  %v298 = vunpack.c.l.b16 %v88
  %v299 = vunpack.c.l.b16 %v89
  %v300 = vunpack.c.l.b16 %v90
  %v301 = vunpack.c.l.b16 %v91
  %v302 = vunpack.c.l.b16 %v92
  %v303 = vunpack.c.l.b16 %v93
  %v304 = vunpack.c.l.b16 %v94
  %v305 = vpack.c.b16 %v286, %v285
  %v306 = vpack.c.b16 %v288, %v287
  %v307 = vpack.c.b16 %v290, %v289
  %v308 = vpack.c.b16 %v292, %v291
  %v309 = vpack.c.b16 %v294, %v293
  %v310 = vpack.c.b16 %v296, %v295
  %v311 = vpack.c.b16 %v298, %v297
  %v312 = vpack.c.b16 %v300, %v299
  %v313 = vpack.c.b16 %v302, %v301
  %v314 = vpack.c.b16 %v304, %v303
  %v326 = vsel %vm139, %v264, 0
  %328 = vmatprep.subr.bf16.mxu0 0
  %329 = vmatpush1.bf16.msra.mxu0 %v305
  %330 = vmatprep.subr.bf16.mxu0 0
  %331 = vmatpush1.bf16.msra.mxu0 %v306
  %332 = vmatprep.subr.bf16.mxu0 0
  %333 = vmatpush1.bf16.msra.mxu0 %v307
  %334 = vmatprep.subr.bf16.mxu0 0
  %335 = vmatpush1.bf16.msra.mxu0 %v308
  %336 = vmatprep.subr.bf16.mxu0 0
  %337 = vmatpush1.bf16.msra.mxu0 %v309
  %338 = vmatprep.subr.bf16.mxu0 0
  %339 = vmatpush1.bf16.msra.mxu0 %v310
  %340 = vmatprep.subr.bf16.mxu0 0
  %341 = vmatpush1.bf16.msra.mxu0 %v311
  %342 = vmatprep.subr.bf16.mxu0 0
  %343 = vmatpush1.bf16.msra.mxu0 %v312
  %344 = vmatprep.subr.bf16.mxu0 0
  %345 = vmatpush1.bf16.msra.mxu0 %v313
  %346 = vmatprep.subr.bf16.mxu0 0
  %347 = vmatpush1.bf16.msra.mxu0 %v314
  %348 = vmatprep.subr.bf16.mxu0 0
  %349 = vmatpush1.bf16.msra.mxu0 0
  %350 = vmatprep.subr.bf16.mxu0 0
  %351 = vmatpush1.bf16.msra.mxu0 0
  %352 = vmatprep.subr.bf16.mxu0 0
  %353 = vmatpush1.bf16.msra.mxu0 0
  %354 = vmatprep.subr.bf16.mxu0 0
  %355 = vmatpush1.bf16.msra.mxu0 0
  %356 = vmatprep.subr.bf16.mxu0 0
  %357 = vmatpush1.bf16.msra.mxu0 0
  %358 = vmatprep.subr.bf16.mxu0 0
  %359 = vmatpush1.bf16.msra.mxu0 0
  %360 = vmatprep.mubr.bf16.mxu0 %v326
  %361 = vmatmul.mubr.bf16.gmra.mrb[0].mxu0 %v263
  %v362 = vpop.f32.mrb[0].mxu0
  %v363 = vadd.f32 %v242, %v362
  %v364 = vpop.f32.mrb[0].mxu0
  %v365 = vpop.f32.mrb[0].mxu0
  %v366 = vpop.f32.mrb[0].mxu0
  %367 = vdwg.mxu0
  %v368 = vtanh.pop %v363
  %v370 = vlaneseq
  %v371 = vshrl.u32 %v370, 7
  %v372 = vsub.s32 0, %v371
  %v373 = vrot.slane %v104, %v372
  %v375 = vmul.f32 %v368, %v373
  %v376 = vsel %vm139, %v375, 0.0
  %377 = vadd.xlane.f32.xlu0 %v376
  %v378 = vpop.xlane.xlu0 %377
  %v380 = vlaneseq
  %v381 = vshrl.u32 %v380, 7
  %v382 = vsub.s32 0, %v381
  %v383 = vrot.slane %v105, %v382
  %v385 = vadd.f32 %v378, %v383
  %v386 = vxor.u32 %v385, 2147483648
  %v387 = vmul.f32 %v386, 1.442695
  %v388 = vpow.pop %v387
  %v389 = vadd.f32 %v388, 1.0
  %v390 = vrcp.pop %v389
  %v391 = vmul.f32 1.0, %v390
  %v392 = vpack.c.bf16 %v243, %v243
  %v394 = vlaneseq
  %v395 = vshrl.u32 %v394, 7
  %v396 = vsub.s32 0, %v395
  %v397 = vrot.slane %v114, %v396
  %v403 = vunpack.c.l.b16 %v106
  %v404 = vunpack.c.l.b16 %v107
  %v405 = vunpack.c.l.b16 %v108
  %v406 = vunpack.c.l.b16 %v109
  %v407 = vpack.c.b16 %v404, %v403
  %v408 = vpack.c.b16 %v406, %v405
  %v412 = vsel %vm139, %v392, 0
  %414 = vmatprep.subr.bf16.mxu0 0
  %415 = vmatpush1.bf16.msra.mxu0 %v407
  %416 = vmatprep.subr.bf16.mxu0 0
  %417 = vmatpush1.bf16.msra.mxu0 %v408
  %418 = vmatprep.subr.bf16.mxu0 0
  %419 = vmatpush1.bf16.msra.mxu0 0
  %420 = vmatprep.subr.bf16.mxu0 0
  %421 = vmatpush1.bf16.msra.mxu0 0
  %422 = vmatprep.subr.bf16.mxu0 0
  %423 = vmatpush1.bf16.msra.mxu0 0
  %424 = vmatprep.subr.bf16.mxu0 0
  %425 = vmatpush1.bf16.msra.mxu0 0
  %426 = vmatprep.subr.bf16.mxu0 0
  %427 = vmatpush1.bf16.msra.mxu0 0
  %428 = vmatprep.subr.bf16.mxu0 0
  %429 = vmatpush1.bf16.msra.mxu0 0
  %430 = vmatprep.subr.bf16.mxu0 0
  %431 = vmatpush1.bf16.msra.mxu0 0
  %432 = vmatprep.subr.bf16.mxu0 0
  %433 = vmatpush1.bf16.msra.mxu0 0
  %434 = vmatprep.subr.bf16.mxu0 0
  %435 = vmatpush1.bf16.msra.mxu0 0
  %436 = vmatprep.subr.bf16.mxu0 0
  %437 = vmatpush1.bf16.msra.mxu0 0
  %438 = vmatprep.subr.bf16.mxu0 0
  %439 = vmatpush1.bf16.msra.mxu0 0
  %440 = vmatprep.subr.bf16.mxu0 0
  %441 = vmatpush1.bf16.msra.mxu0 0
  %442 = vmatprep.subr.bf16.mxu0 0
  %443 = vmatpush1.bf16.msra.mxu0 0
  %444 = vmatprep.subr.bf16.mxu0 0
  %445 = vmatpush1.bf16.msra.mxu0 0
  %446 = vmatprep.mubr.bf16.mxu0 0
  %447 = vmatmul.mubr.bf16.gmra.mrb[0].mxu0 %v412
  %v448 = vpop.f32.mrb[0].mxu0
  %v449 = vadd.f32 %v397, %v448
  %v450 = vpop.f32.mrb[0].mxu0
  %v451 = vpop.f32.mrb[0].mxu0
  %v452 = vpop.f32.mrb[0].mxu0
  %453 = vdwg.mxu0
  %v455 = vlaneseq
  %v456 = vshrl.u32 %v455, 7
  %v457 = vsub.s32 0, %v456
  %v458 = vrot.slane %v115, %v457
  %v464 = vunpack.c.l.b16 %v110
  %v465 = vunpack.c.l.b16 %v111
  %v466 = vunpack.c.l.b16 %v112
  %v467 = vunpack.c.l.b16 %v113
  %v468 = vpack.c.b16 %v465, %v464
  %v469 = vpack.c.b16 %v467, %v466
  %v473 = vsel %vm139, 0, 0
  %475 = vmatprep.subr.bf16.mxu0 0
  %476 = vmatpush1.bf16.msra.mxu0 %v468
  %477 = vmatprep.subr.bf16.mxu0 0
  %478 = vmatpush1.bf16.msra.mxu0 %v469
  %479 = vmatprep.subr.bf16.mxu0 0
  %480 = vmatpush1.bf16.msra.mxu0 0
  %481 = vmatprep.subr.bf16.mxu0 0
  %482 = vmatpush1.bf16.msra.mxu0 0
  %483 = vmatprep.subr.bf16.mxu0 0
  %484 = vmatpush1.bf16.msra.mxu0 0
  %485 = vmatprep.subr.bf16.mxu0 0
  %486 = vmatpush1.bf16.msra.mxu0 0
  %487 = vmatprep.subr.bf16.mxu0 0
  %488 = vmatpush1.bf16.msra.mxu0 0
  %489 = vmatprep.subr.bf16.mxu0 0
  %490 = vmatpush1.bf16.msra.mxu0 0
  %491 = vmatprep.subr.bf16.mxu0 0
  %492 = vmatpush1.bf16.msra.mxu0 0
  %493 = vmatprep.subr.bf16.mxu0 0
  %494 = vmatpush1.bf16.msra.mxu0 0
  %495 = vmatprep.subr.bf16.mxu0 0
  %496 = vmatpush1.bf16.msra.mxu0 0
  %497 = vmatprep.subr.bf16.mxu0 0
  %498 = vmatpush1.bf16.msra.mxu0 0
  %499 = vmatprep.subr.bf16.mxu0 0
  %500 = vmatpush1.bf16.msra.mxu0 0
  %501 = vmatprep.subr.bf16.mxu0 0
  %502 = vmatpush1.bf16.msra.mxu0 0
  %503 = vmatprep.subr.bf16.mxu0 0
  %504 = vmatpush1.bf16.msra.mxu0 0
  %505 = vmatprep.subr.bf16.mxu0 0
  %506 = vmatpush1.bf16.msra.mxu0 0
  %507 = vmatprep.mubr.bf16.mxu0 0
  %508 = vmatmul.mubr.bf16.gmra.mrb[0].mxu0 %v473
  %v509 = vpop.f32.mrb[0].mxu0
  %v510 = vadd.f32 %v458, %v509
  %v511 = vpop.f32.mrb[0].mxu0
  %v512 = vpop.f32.mrb[0].mxu0
  %v513 = vpop.f32.mrb[0].mxu0
  %514 = vdwg.mxu0
  %v515 = vadd.f32 %v449, %v510
  %v516 = vxor.u32 %v515, 2147483648
  %v517 = vmul.f32 %v516, 1.442695
  %v518 = vpow.pop %v517
  %v519 = vadd.f32 %v518, 1.0
  %v520 = vrcp.pop %v519
  %v521 = vmul.f32 1.0, %v520
  %523 = vrot.lane.b32.xlu0 %v510, 64
  %v524 = vpop.permute.xlu0 %523
  %v526 = vmul.f32 %v521, %v524
  %528 = vrot.lane.b32.xlu0 %v526, 64
  %v529 = vpop.permute.xlu0 %528
  %v531 = vadd.f32 %v449, %v529
  %v532 = vtanh.pop %v531
  %v533 = vsub.f32 1.0, %v521
  %535 = vrot.lane.b32.xlu0 %v532, 96
  %v536 = vpop.permute.xlu0 %535
  %v538 = vmul.f32 %v533, %v536
  %v539 = vmul.f32 %v521, 0.0
  %v540 = vadd.f32 %v538, %v539
  %542 = vset.pattern.permute.xlu0 0
  %543 = vperm.xlu0 %542, %v391
  %v544 = vpop.permute.xlu0 %543
  %v546 = vmul.f32 %v544, %v540
  %v547 = vsub.f32 1.0, %v391
  %549 = vset.pattern.permute.xlu0 0
  %550 = vperm.xlu0 %549, %v547
  %v551 = vpop.permute.xlu0 %550
  %v553 = vmul.f32 %v551, 0.0
  %v554 = vadd.f32 %v546, %v553
  %s555 = scalar_lea.vmem %s0, 8
  %v556 = vld [vmem:[%s555] sm:$0xff]
  %v557 = vmul.f32 %v556, %v74
  %v558 = vsub.f32 %v556, %v74
  %v559 = vand.u32 2147483647, %v558
  %561 = vrot.lane.b32.xlu0 %v557, 32
  %v562 = vpop.permute.xlu0 %561
  %564 = vrot.lane.b32.xlu0 %v557, 64
  %v565 = vpop.permute.xlu0 %564
  %568 = vrot.lane.b32.xlu0 %v559, 96
  %v569 = vpop.permute.xlu0 %568
  %v571 = vsel %vm139, %v556, %v562
  %v572 = vsel %vm259, %v571, %v565
  %v573 = vsel %vm261, %v572, %v569
  %v574 = vpack.c.bf16 %v573, %v573
  %v575 = vpack.c.bf16 %v559, %v559
  %v577 = vsel %vm139, %v575, 0
  %579 = vmatprep.subr.bf16.mxu0 0
  %580 = vmatpush1.bf16.msra.mxu0 %v305
  %581 = vmatprep.subr.bf16.mxu0 0
  %582 = vmatpush1.bf16.msra.mxu0 %v306
  %583 = vmatprep.subr.bf16.mxu0 0
  %584 = vmatpush1.bf16.msra.mxu0 %v307
  %585 = vmatprep.subr.bf16.mxu0 0
  %586 = vmatpush1.bf16.msra.mxu0 %v308
  %587 = vmatprep.subr.bf16.mxu0 0
  %588 = vmatpush1.bf16.msra.mxu0 %v309
  %589 = vmatprep.subr.bf16.mxu0 0
  %590 = vmatpush1.bf16.msra.mxu0 %v310
  %591 = vmatprep.subr.bf16.mxu0 0
  %592 = vmatpush1.bf16.msra.mxu0 %v311
  %593 = vmatprep.subr.bf16.mxu0 0
  %594 = vmatpush1.bf16.msra.mxu0 %v312
  %595 = vmatprep.subr.bf16.mxu0 0
  %596 = vmatpush1.bf16.msra.mxu0 %v313
  %597 = vmatprep.subr.bf16.mxu0 0
  %598 = vmatpush1.bf16.msra.mxu0 %v314
  %599 = vmatprep.subr.bf16.mxu0 0
  %600 = vmatpush1.bf16.msra.mxu0 0
  %601 = vmatprep.subr.bf16.mxu0 0
  %602 = vmatpush1.bf16.msra.mxu0 0
  %603 = vmatprep.subr.bf16.mxu0 0
  %604 = vmatpush1.bf16.msra.mxu0 0
  %605 = vmatprep.subr.bf16.mxu0 0
  %606 = vmatpush1.bf16.msra.mxu0 0
  %607 = vmatprep.subr.bf16.mxu0 0
  %608 = vmatpush1.bf16.msra.mxu0 0
  %609 = vmatprep.subr.bf16.mxu0 0
  %610 = vmatpush1.bf16.msra.mxu0 0
  %611 = vmatprep.mubr.bf16.mxu0 %v577
  %612 = vmatmul.mubr.bf16.gmra.mrb[0].mxu0 %v574
  %v613 = vpop.f32.mrb[0].mxu0
  %v614 = vadd.f32 %v242, %v613
  %v615 = vpop.f32.mrb[0].mxu0
  %v616 = vpop.f32.mrb[0].mxu0
  %v617 = vpop.f32.mrb[0].mxu0
  %618 = vdwg.mxu0
  %v619 = vtanh.pop %v614
  %v620 = vmul.f32 %v619, %v373
  %v621 = vsel %vm139, %v620, 0.0
  %622 = vadd.xlane.f32.xlu0 %v621
  %v623 = vpop.xlane.xlu0 %622
  %v624 = vadd.f32 %v623, %v383
  %v625 = vxor.u32 %v624, 2147483648
  %v626 = vmul.f32 %v625, 1.442695
  %v627 = vpow.pop %v626
  %v628 = vadd.f32 %v627, 1.0
  %v629 = vrcp.pop %v628
  %v630 = vmul.f32 1.0, %v629
  %v631 = vpack.c.bf16 %v556, %v556
  %v633 = vsel %vm139, %v631, 0
  %635 = vmatprep.subr.bf16.mxu0 0
  %636 = vmatpush1.bf16.msra.mxu0 %v407
  %637 = vmatprep.subr.bf16.mxu0 0
  %638 = vmatpush1.bf16.msra.mxu0 %v408
  %639 = vmatprep.subr.bf16.mxu0 0
  %640 = vmatpush1.bf16.msra.mxu0 0
  %641 = vmatprep.subr.bf16.mxu0 0
  %642 = vmatpush1.bf16.msra.mxu0 0
  %643 = vmatprep.subr.bf16.mxu0 0
  %644 = vmatpush1.bf16.msra.mxu0 0
  %645 = vmatprep.subr.bf16.mxu0 0
  %646 = vmatpush1.bf16.msra.mxu0 0
  %647 = vmatprep.subr.bf16.mxu0 0
  %648 = vmatpush1.bf16.msra.mxu0 0
  %649 = vmatprep.subr.bf16.mxu0 0
  %650 = vmatpush1.bf16.msra.mxu0 0
  %651 = vmatprep.subr.bf16.mxu0 0
  %652 = vmatpush1.bf16.msra.mxu0 0
  %653 = vmatprep.subr.bf16.mxu0 0
  %654 = vmatpush1.bf16.msra.mxu0 0
  %655 = vmatprep.subr.bf16.mxu0 0
  %656 = vmatpush1.bf16.msra.mxu0 0
  %657 = vmatprep.subr.bf16.mxu0 0
  %658 = vmatpush1.bf16.msra.mxu0 0
  %659 = vmatprep.subr.bf16.mxu0 0
  %660 = vmatpush1.bf16.msra.mxu0 0
  %661 = vmatprep.subr.bf16.mxu0 0
  %662 = vmatpush1.bf16.msra.mxu0 0
  %663 = vmatprep.subr.bf16.mxu0 0
  %664 = vmatpush1.bf16.msra.mxu0 0
  %665 = vmatprep.subr.bf16.mxu0 0
  %666 = vmatpush1.bf16.msra.mxu0 0
  %667 = vmatprep.mubr.bf16.mxu0 0
  %668 = vmatmul.mubr.bf16.gmra.mrb[0].mxu0 %v633
  %v669 = vpop.f32.mrb[0].mxu0
  %v670 = vadd.f32 %v397, %v669
  %v671 = vpop.f32.mrb[0].mxu0
  %v672 = vpop.f32.mrb[0].mxu0
  %v673 = vpop.f32.mrb[0].mxu0
  %674 = vdwg.mxu0
  %v675 = vpack.c.bf16 %v554, %v554
  %677 = vrot.lane.b32.xlu0 %v675, 96
  %v678 = vpop.permute.xlu0 %677
  %v680 = vsel %vm139, %v678, 0
  %682 = vmatprep.subr.bf16.mxu0 0
  %683 = vmatpush1.bf16.msra.mxu0 %v468
  %684 = vmatprep.subr.bf16.mxu0 0
  %685 = vmatpush1.bf16.msra.mxu0 %v469
  %686 = vmatprep.subr.bf16.mxu0 0
  %687 = vmatpush1.bf16.msra.mxu0 0
  %688 = vmatprep.subr.bf16.mxu0 0
  %689 = vmatpush1.bf16.msra.mxu0 0
  %690 = vmatprep.subr.bf16.mxu0 0
  %691 = vmatpush1.bf16.msra.mxu0 0
  %692 = vmatprep.subr.bf16.mxu0 0
  %693 = vmatpush1.bf16.msra.mxu0 0
  %694 = vmatprep.subr.bf16.mxu0 0
  %695 = vmatpush1.bf16.msra.mxu0 0
  %696 = vmatprep.subr.bf16.mxu0 0
  %697 = vmatpush1.bf16.msra.mxu0 0
  %698 = vmatprep.subr.bf16.mxu0 0
  %699 = vmatpush1.bf16.msra.mxu0 0
  %700 = vmatprep.subr.bf16.mxu0 0
  %701 = vmatpush1.bf16.msra.mxu0 0
  %702 = vmatprep.subr.bf16.mxu0 0
  %703 = vmatpush1.bf16.msra.mxu0 0
  %704 = vmatprep.subr.bf16.mxu0 0
  %705 = vmatpush1.bf16.msra.mxu0 0
  %706 = vmatprep.subr.bf16.mxu0 0
  %707 = vmatpush1.bf16.msra.mxu0 0
  %708 = vmatprep.subr.bf16.mxu0 0
  %709 = vmatpush1.bf16.msra.mxu0 0
  %710 = vmatprep.subr.bf16.mxu0 0
  %711 = vmatpush1.bf16.msra.mxu0 0
  %712 = vmatprep.subr.bf16.mxu0 0
  %713 = vmatpush1.bf16.msra.mxu0 0
  %714 = vmatprep.mubr.bf16.mxu0 0
  %715 = vmatmul.mubr.bf16.gmra.mrb[0].mxu0 %v680
  %v716 = vpop.f32.mrb[0].mxu0
  %v717 = vadd.f32 %v458, %v716
  %v718 = vpop.f32.mrb[0].mxu0
  %v719 = vpop.f32.mrb[0].mxu0
  %v720 = vpop.f32.mrb[0].mxu0
  %721 = vdwg.mxu0
  %v722 = vadd.f32 %v670, %v717
  %v723 = vxor.u32 %v722, 2147483648
  %v724 = vmul.f32 %v723, 1.442695
  %v725 = vpow.pop %v724
  %v726 = vadd.f32 %v725, 1.0
  %v727 = vrcp.pop %v726
  %v728 = vmul.f32 1.0, %v727
  %730 = vrot.lane.b32.xlu0 %v717, 64
  %v731 = vpop.permute.xlu0 %730
  %v733 = vmul.f32 %v728, %v731
  %735 = vrot.lane.b32.xlu0 %v733, 64
  %v736 = vpop.permute.xlu0 %735
  %v738 = vadd.f32 %v670, %v736
  %v739 = vtanh.pop %v738
  %v740 = vsub.f32 1.0, %v728
  %742 = vrot.lane.b32.xlu0 %v739, 96
  %v743 = vpop.permute.xlu0 %742
  %v745 = vmul.f32 %v740, %v743
  %v746 = vmul.f32 %v728, %v554
  %v747 = vadd.f32 %v745, %v746
  %749 = vset.pattern.permute.xlu0 0
  %750 = vperm.xlu0 %749, %v630
  %v751 = vpop.permute.xlu0 %750
  %v753 = vmul.f32 %v751, %v747
  %v754 = vsub.f32 1.0, %v630
  %756 = vset.pattern.permute.xlu0 0
  %757 = vperm.xlu0 %756, %v754
  %v758 = vpop.permute.xlu0 %757
  %v760 = vmul.f32 %v758, %v554
  %v761 = vadd.f32 %v753, %v760
  %s762 = scalar_lea.vmem %s0, 16
  %v763 = vld [vmem:[%s762] sm:$0xff]
  %v764 = vmul.f32 %v763, %v74
  %v765 = vsub.f32 %v763, %v74
  %v766 = vand.u32 2147483647, %v765
  %768 = vrot.lane.b32.xlu0 %v764, 32
  %v769 = vpop.permute.xlu0 %768
  %771 = vrot.lane.b32.xlu0 %v764, 64
  %v772 = vpop.permute.xlu0 %771
  %775 = vrot.lane.b32.xlu0 %v766, 96
  %v776 = vpop.permute.xlu0 %775
  %v778 = vsel %vm139, %v763, %v769
  %v779 = vsel %vm259, %v778, %v772
  %v780 = vsel %vm261, %v779, %v776
  %v781 = vpack.c.bf16 %v780, %v780
  %v782 = vpack.c.bf16 %v766, %v766
  %v784 = vsel %vm139, %v782, 0
  %786 = vmatprep.subr.bf16.mxu0 0
  %787 = vmatpush1.bf16.msra.mxu0 %v305
  %788 = vmatprep.subr.bf16.mxu0 0
  %789 = vmatpush1.bf16.msra.mxu0 %v306
  %790 = vmatprep.subr.bf16.mxu0 0
  %791 = vmatpush1.bf16.msra.mxu0 %v307
  %792 = vmatprep.subr.bf16.mxu0 0
  %793 = vmatpush1.bf16.msra.mxu0 %v308
  %794 = vmatprep.subr.bf16.mxu0 0
  %795 = vmatpush1.bf16.msra.mxu0 %v309
  %796 = vmatprep.subr.bf16.mxu0 0
  %797 = vmatpush1.bf16.msra.mxu0 %v310
  %798 = vmatprep.subr.bf16.mxu0 0
  %799 = vmatpush1.bf16.msra.mxu0 %v311
  %800 = vmatprep.subr.bf16.mxu0 0
  %801 = vmatpush1.bf16.msra.mxu0 %v312
  %802 = vmatprep.subr.bf16.mxu0 0
  %803 = vmatpush1.bf16.msra.mxu0 %v313
  %804 = vmatprep.subr.bf16.mxu0 0
  %805 = vmatpush1.bf16.msra.mxu0 %v314
  %806 = vmatprep.subr.bf16.mxu0 0
  %807 = vmatpush1.bf16.msra.mxu0 0
  %808 = vmatprep.subr.bf16.mxu0 0
  %809 = vmatpush1.bf16.msra.mxu0 0
  %810 = vmatprep.subr.bf16.mxu0 0
  %811 = vmatpush1.bf16.msra.mxu0 0
  %812 = vmatprep.subr.bf16.mxu0 0
  %813 = vmatpush1.bf16.msra.mxu0 0
  %814 = vmatprep.subr.bf16.mxu0 0
  %815 = vmatpush1.bf16.msra.mxu0 0
  %816 = vmatprep.subr.bf16.mxu0 0
  %817 = vmatpush1.bf16.msra.mxu0 0
  %818 = vmatprep.mubr.bf16.mxu0 %v784
  %819 = vmatmul.mubr.bf16.gmra.mrb[0].mxu0 %v781
  %v820 = vpop.f32.mrb[0].mxu0
  %v821 = vadd.f32 %v242, %v820
  %v822 = vpop.f32.mrb[0].mxu0
  %v823 = vpop.f32.mrb[0].mxu0
  %v824 = vpop.f32.mrb[0].mxu0
  %825 = vdwg.mxu0
  %v826 = vtanh.pop %v821
  %v827 = vmul.f32 %v826, %v373
  %v828 = vsel %vm139, %v827, 0.0
  %829 = vadd.xlane.f32.xlu0 %v828
  %v830 = vpop.xlane.xlu0 %829
  %v831 = vadd.f32 %v830, %v383
  %v832 = vxor.u32 %v831, 2147483648
  %v833 = vmul.f32 %v832, 1.442695
  %v834 = vpow.pop %v833
  %v835 = vadd.f32 %v834, 1.0
  %v836 = vrcp.pop %v835
  %v837 = vmul.f32 1.0, %v836
  %v838 = vpack.c.bf16 %v763, %v763
  %v840 = vsel %vm139, %v838, 0
  %842 = vmatprep.subr.bf16.mxu0 0
  %843 = vmatpush1.bf16.msra.mxu0 %v407
  %844 = vmatprep.subr.bf16.mxu0 0
  %845 = vmatpush1.bf16.msra.mxu0 %v408
  %846 = vmatprep.subr.bf16.mxu0 0
  %847 = vmatpush1.bf16.msra.mxu0 0
  %848 = vmatprep.subr.bf16.mxu0 0
  %849 = vmatpush1.bf16.msra.mxu0 0
  %850 = vmatprep.subr.bf16.mxu0 0
  %851 = vmatpush1.bf16.msra.mxu0 0
  %852 = vmatprep.subr.bf16.mxu0 0
  %853 = vmatpush1.bf16.msra.mxu0 0
  %854 = vmatprep.subr.bf16.mxu0 0
  %855 = vmatpush1.bf16.msra.mxu0 0
  %856 = vmatprep.subr.bf16.mxu0 0
  %857 = vmatpush1.bf16.msra.mxu0 0
  %858 = vmatprep.subr.bf16.mxu0 0
  %859 = vmatpush1.bf16.msra.mxu0 0
  %860 = vmatprep.subr.bf16.mxu0 0
  %861 = vmatpush1.bf16.msra.mxu0 0
  %862 = vmatprep.subr.bf16.mxu0 0
  %863 = vmatpush1.bf16.msra.mxu0 0
  %864 = vmatprep.subr.bf16.mxu0 0
  %865 = vmatpush1.bf16.msra.mxu0 0
  %866 = vmatprep.subr.bf16.mxu0 0
  %867 = vmatpush1.bf16.msra.mxu0 0
  %868 = vmatprep.subr.bf16.mxu0 0
  %869 = vmatpush1.bf16.msra.mxu0 0
  %870 = vmatprep.subr.bf16.mxu0 0
  %871 = vmatpush1.bf16.msra.mxu0 0
  %872 = vmatprep.subr.bf16.mxu0 0
  %873 = vmatpush1.bf16.msra.mxu0 0
  %874 = vmatprep.mubr.bf16.mxu0 0
  %875 = vmatmul.mubr.bf16.gmra.mrb[0].mxu0 %v840
  %v876 = vpop.f32.mrb[0].mxu0
  %v877 = vadd.f32 %v397, %v876
  %v878 = vpop.f32.mrb[0].mxu0
  %v879 = vpop.f32.mrb[0].mxu0
  %v880 = vpop.f32.mrb[0].mxu0
  %881 = vdwg.mxu0
  %v882 = vpack.c.bf16 %v761, %v761
  %884 = vrot.lane.b32.xlu0 %v882, 96
  %v885 = vpop.permute.xlu0 %884
  %v887 = vsel %vm139, %v885, 0
  %889 = vmatprep.subr.bf16.mxu0 0
  %890 = vmatpush1.bf16.msra.mxu0 %v468
  %891 = vmatprep.subr.bf16.mxu0 0
  %892 = vmatpush1.bf16.msra.mxu0 %v469
  %893 = vmatprep.subr.bf16.mxu0 0
  %894 = vmatpush1.bf16.msra.mxu0 0
  %895 = vmatprep.subr.bf16.mxu0 0
  %896 = vmatpush1.bf16.msra.mxu0 0
  %897 = vmatprep.subr.bf16.mxu0 0
  %898 = vmatpush1.bf16.msra.mxu0 0
  %899 = vmatprep.subr.bf16.mxu0 0
  %900 = vmatpush1.bf16.msra.mxu0 0
  %901 = vmatprep.subr.bf16.mxu0 0
  %902 = vmatpush1.bf16.msra.mxu0 0
  %903 = vmatprep.subr.bf16.mxu0 0
  %904 = vmatpush1.bf16.msra.mxu0 0
  %905 = vmatprep.subr.bf16.mxu0 0
  %906 = vmatpush1.bf16.msra.mxu0 0
  %907 = vmatprep.subr.bf16.mxu0 0
  %908 = vmatpush1.bf16.msra.mxu0 0
  %909 = vmatprep.subr.bf16.mxu0 0
  %910 = vmatpush1.bf16.msra.mxu0 0
  %911 = vmatprep.subr.bf16.mxu0 0
  %912 = vmatpush1.bf16.msra.mxu0 0
  %913 = vmatprep.subr.bf16.mxu0 0
  %914 = vmatpush1.bf16.msra.mxu0 0
  %915 = vmatprep.subr.bf16.mxu0 0
  %916 = vmatpush1.bf16.msra.mxu0 0
  %917 = vmatprep.subr.bf16.mxu0 0
  %918 = vmatpush1.bf16.msra.mxu0 0
  %919 = vmatprep.subr.bf16.mxu0 0
  %920 = vmatpush1.bf16.msra.mxu0 0
  %921 = vmatprep.mubr.bf16.mxu0 0
  %922 = vmatmul.mubr.bf16.gmra.mrb[0].mxu0 %v887
  %v923 = vpop.f32.mrb[0].mxu0
  %v924 = vadd.f32 %v458, %v923
  %v925 = vpop.f32.mrb[0].mxu0
  %v926 = vpop.f32.mrb[0].mxu0
  %v927 = vpop.f32.mrb[0].mxu0
  %928 = vdwg.mxu0
  %v929 = vadd.f32 %v877, %v924
  %v930 = vxor.u32 %v929, 2147483648
  %v931 = vmul.f32 %v930, 1.442695
  %v932 = vpow.pop %v931
  %v933 = vadd.f32 %v932, 1.0
  %v934 = vrcp.pop %v933
  %v935 = vmul.f32 1.0, %v934
  %937 = vrot.lane.b32.xlu0 %v924, 64
  %v938 = vpop.permute.xlu0 %937
  %v940 = vmul.f32 %v935, %v938
  %942 = vrot.lane.b32.xlu0 %v940, 64
  %v943 = vpop.permute.xlu0 %942
  %v945 = vadd.f32 %v877, %v943
  %v946 = vtanh.pop %v945
  %v947 = vsub.f32 1.0, %v935
  %949 = vrot.lane.b32.xlu0 %v946, 96
  %v950 = vpop.permute.xlu0 %949
  %v952 = vmul.f32 %v947, %v950
  %v953 = vmul.f32 %v935, %v761
  %v954 = vadd.f32 %v952, %v953
  %956 = vset.pattern.permute.xlu0 0
  %957 = vperm.xlu0 %956, %v837
  %v958 = vpop.permute.xlu0 %957
  %v960 = vmul.f32 %v958, %v954
  %v961 = vsub.f32 1.0, %v837
  %963 = vset.pattern.permute.xlu0 0
  %964 = vperm.xlu0 %963, %v961
  %v965 = vpop.permute.xlu0 %964
  %v967 = vmul.f32 %v965, %v761
  %v968 = vadd.f32 %v960, %v967
  %v969 = vpack.c.bf16 %v968, %v968
  %v971 = vlaneseq
  %v972 = vshrl.u32 %v971, 7
  %v973 = vsub.s32 0, %v972
  %v974 = vrot.slane %v124, %v973
  %977 = vrot.lane.b32.xlu0 %v969, 96
  %v978 = vpop.permute.xlu0 %977
  %v983 = vunpack.c.l.b16 %v116
  %v984 = vunpack.c.l.b16 %v117
  %v985 = vunpack.c.l.b16 %v118
  %v986 = vunpack.c.l.b16 %v119
  %v987 = vpack.c.b16 %v984, %v983
  %v988 = vpack.c.b16 %v986, %v985
  %v992 = vsel %vm139, %v978, 0
  %994 = vmatprep.subr.bf16.mxu0 0
  %995 = vmatpush1.bf16.msra.mxu0 %v987
  %996 = vmatprep.subr.bf16.mxu0 0
  %997 = vmatpush1.bf16.msra.mxu0 %v988
  %998 = vmatprep.subr.bf16.mxu0 0
  %999 = vmatpush1.bf16.msra.mxu0 0
  %1000 = vmatprep.subr.bf16.mxu0 0
  %1001 = vmatpush1.bf16.msra.mxu0 0
  %1002 = vmatprep.subr.bf16.mxu0 0
  %1003 = vmatpush1.bf16.msra.mxu0 0
  %1004 = vmatprep.subr.bf16.mxu0 0
  %1005 = vmatpush1.bf16.msra.mxu0 0
  %1006 = vmatprep.subr.bf16.mxu0 0
  %1007 = vmatpush1.bf16.msra.mxu0 0
  %1008 = vmatprep.subr.bf16.mxu0 0
  %1009 = vmatpush1.bf16.msra.mxu0 0
  %1010 = vmatprep.subr.bf16.mxu0 0
  %1011 = vmatpush1.bf16.msra.mxu0 0
  %1012 = vmatprep.subr.bf16.mxu0 0
  %1013 = vmatpush1.bf16.msra.mxu0 0
  %1014 = vmatprep.subr.bf16.mxu0 0
  %1015 = vmatpush1.bf16.msra.mxu0 0
  %1016 = vmatprep.subr.bf16.mxu0 0
  %1017 = vmatpush1.bf16.msra.mxu0 0
  %1018 = vmatprep.subr.bf16.mxu0 0
  %1019 = vmatpush1.bf16.msra.mxu0 0
  %1020 = vmatprep.subr.bf16.mxu0 0
  %1021 = vmatpush1.bf16.msra.mxu0 0
  %1022 = vmatprep.subr.bf16.mxu0 0
  %1023 = vmatpush1.bf16.msra.mxu0 0
  %1024 = vmatprep.subr.bf16.mxu0 0
  %1025 = vmatpush1.bf16.msra.mxu0 0
  %1026 = vmatprep.mubr.bf16.mxu0 0
  %1027 = vmatmul.mubr.bf16.gmra.mrb[0].mxu0 %v992
  %v1028 = vpop.f32.mrb[0].mxu0
  %v1029 = vadd.f32 %v974, %v1028
  %v1030 = vpop.f32.mrb[0].mxu0
  %v1031 = vpop.f32.mrb[0].mxu0
  %v1032 = vpop.f32.mrb[0].mxu0
  %1033 = vdwg.mxu0
  %v1035 = vlaneseq
  %v1036 = vshrl.u32 %v1035, 7
  %v1037 = vsub.s32 0, %v1036
  %v1038 = vrot.slane %v125, %v1037
  %v1044 = vunpack.c.l.b16 %v120
  %v1045 = vunpack.c.l.b16 %v121
  %v1046 = vunpack.c.l.b16 %v122
  %v1047 = vunpack.c.l.b16 %v123
  %v1048 = vpack.c.b16 %v1045, %v1044
  %v1049 = vpack.c.b16 %v1047, %v1046
  %1052 = vmatprep.subr.bf16.mxu0 0
  %1053 = vmatpush1.bf16.msra.mxu0 %v1048
  %1054 = vmatprep.subr.bf16.mxu0 0
  %1055 = vmatpush1.bf16.msra.mxu0 %v1049
  %1056 = vmatprep.subr.bf16.mxu0 0
  %1057 = vmatpush1.bf16.msra.mxu0 0
  %1058 = vmatprep.subr.bf16.mxu0 0
  %1059 = vmatpush1.bf16.msra.mxu0 0
  %1060 = vmatprep.subr.bf16.mxu0 0
  %1061 = vmatpush1.bf16.msra.mxu0 0
  %1062 = vmatprep.subr.bf16.mxu0 0
  %1063 = vmatpush1.bf16.msra.mxu0 0
  %1064 = vmatprep.subr.bf16.mxu0 0
  %1065 = vmatpush1.bf16.msra.mxu0 0
  %1066 = vmatprep.subr.bf16.mxu0 0
  %1067 = vmatpush1.bf16.msra.mxu0 0
  %1068 = vmatprep.subr.bf16.mxu0 0
  %1069 = vmatpush1.bf16.msra.mxu0 0
  %1070 = vmatprep.subr.bf16.mxu0 0
  %1071 = vmatpush1.bf16.msra.mxu0 0
  %1072 = vmatprep.subr.bf16.mxu0 0
  %1073 = vmatpush1.bf16.msra.mxu0 0
  %1074 = vmatprep.subr.bf16.mxu0 0
  %1075 = vmatpush1.bf16.msra.mxu0 0
  %1076 = vmatprep.subr.bf16.mxu0 0
  %1077 = vmatpush1.bf16.msra.mxu0 0
  %1078 = vmatprep.subr.bf16.mxu0 0
  %1079 = vmatpush1.bf16.msra.mxu0 0
  %1080 = vmatprep.subr.bf16.mxu0 0
  %1081 = vmatpush1.bf16.msra.mxu0 0
  %1082 = vmatprep.subr.bf16.mxu0 0
  %1083 = vmatpush1.bf16.msra.mxu0 0
  %1084 = vmatprep.mubr.bf16.mxu0 0
  %1085 = vmatmul.mubr.bf16.gmra.mrb[0].mxu0 %v141
  %v1086 = vpop.f32.mrb[0].mxu0
  %v1087 = vadd.f32 %v1038, %v1086
  %v1088 = vpop.f32.mrb[0].mxu0
  %v1089 = vpop.f32.mrb[0].mxu0
  %v1090 = vpop.f32.mrb[0].mxu0
  %1091 = vdwg.mxu0
  %v1092 = vadd.f32 %v1029, %v1087
  %v1093 = vxor.u32 %v1092, 2147483648
  %v1094 = vmul.f32 %v1093, 1.442695
  %v1095 = vpow.pop %v1094
  %v1096 = vadd.f32 %v1095, 1.0
  %v1097 = vrcp.pop %v1096
  %v1098 = vmul.f32 1.0, %v1097
  %1100 = vrot.lane.b32.xlu0 %v1087, 64
  %v1101 = vpop.permute.xlu0 %1100
  %v1103 = vmul.f32 %v1098, %v1101
  %1105 = vrot.lane.b32.xlu0 %v1103, 64
  %v1106 = vpop.permute.xlu0 %1105
  %v1108 = vadd.f32 %v1029, %v1106
  %v1109 = vtanh.pop %v1108
  %v1110 = vsub.f32 1.0, %v1098
  %1112 = vrot.lane.b32.xlu0 %v1109, 96
  %v1113 = vpop.permute.xlu0 %1112
  %v1115 = vmul.f32 %v1110, %v1113
  %1117 = vrot.lane.b32.xlu0 %v74, 32
  %v1118 = vpop.permute.xlu0 %1117
  %v1120 = vmul.f32 %v1098, %v1118
  %v1121 = vadd.f32 %v1115, %v1120
  %v1122 = vpack.c.bf16 %v1121, %v1121
  %1124 = vrot.lane.b32.xlu0 %v1122, 96
  %v1125 = vpop.permute.xlu0 %1124
  %v1127 = vsel %vm139, %v1125, 0
  %1129 = vmatprep.subr.bf16.mxu0 0
  %1130 = vmatpush1.bf16.msra.mxu0 %v191
  %1131 = vmatprep.subr.bf16.mxu0 0
  %1132 = vmatpush1.bf16.msra.mxu0 %v192
  %1133 = vmatprep.subr.bf16.mxu0 0
  %1134 = vmatpush1.bf16.msra.mxu0 0
  %1135 = vmatprep.subr.bf16.mxu0 0
  %1136 = vmatpush1.bf16.msra.mxu0 0
  %1137 = vmatprep.subr.bf16.mxu0 0
  %1138 = vmatpush1.bf16.msra.mxu0 0
  %1139 = vmatprep.subr.bf16.mxu0 0
  %1140 = vmatpush1.bf16.msra.mxu0 0
  %1141 = vmatprep.subr.bf16.mxu0 0
  %1142 = vmatpush1.bf16.msra.mxu0 0
  %1143 = vmatprep.subr.bf16.mxu0 0
  %1144 = vmatpush1.bf16.msra.mxu0 0
  %1145 = vmatprep.subr.bf16.mxu0 0
  %1146 = vmatpush1.bf16.msra.mxu0 0
  %1147 = vmatprep.subr.bf16.mxu0 0
  %1148 = vmatpush1.bf16.msra.mxu0 0
  %1149 = vmatprep.subr.bf16.mxu0 0
  %1150 = vmatpush1.bf16.msra.mxu0 0
  %1151 = vmatprep.subr.bf16.mxu0 0
  %1152 = vmatpush1.bf16.msra.mxu0 0
  %1153 = vmatprep.subr.bf16.mxu0 0
  %1154 = vmatpush1.bf16.msra.mxu0 0
  %1155 = vmatprep.subr.bf16.mxu0 0
  %1156 = vmatpush1.bf16.msra.mxu0 0
  %1157 = vmatprep.subr.bf16.mxu0 0
  %1158 = vmatpush1.bf16.msra.mxu0 0
  %1159 = vmatprep.subr.bf16.mxu0 0
  %1160 = vmatpush1.bf16.msra.mxu0 0
  %1161 = vmatprep.mubr.bf16.mxu0 0
  %1162 = vmatmul.mubr.bf16.gmra.mrb[0].mxu0 %v1127
  %v1163 = vpop.f32.mrb[0].mxu0
  %v1164 = vadd.f32 0.0, %v1163
  %v1165 = vpop.f32.mrb[0].mxu0
  %v1166 = vpop.f32.mrb[0].mxu0
  %v1167 = vpop.f32.mrb[0].mxu0
  %1168 = vdwg.mxu0
  %v1169 = vadd.f32 %v178, %v1164
  %v1170 = vadd.f32 %v1169, %v240
  %1172 = vrot.lane.b32.xlu0 %v1121, 96
  %v1173 = vpop.permute.xlu0 %1172
  %v1175 = vmul.f32 %v243, %v1173
  %v1176 = vsub.f32 %v243, %v1173
  %v1177 = vand.u32 2147483647, %v1176
  %1179 = vrot.lane.b32.xlu0 %v1175, 64
  %v1180 = vpop.permute.xlu0 %1179
  %v1182 = vsel %vm259, %v258, %v1180
  %v1183 = vsel %vm261, %v1182, %v256
  %v1184 = vpack.c.bf16 %v1183, %v1183
  %v1185 = vpack.c.bf16 %v1177, %v1177
  %v1187 = vsel %vm139, %v1185, 0
  %1189 = vmatprep.subr.bf16.mxu0 0
  %1190 = vmatpush1.bf16.msra.mxu0 %v305
  %1191 = vmatprep.subr.bf16.mxu0 0
  %1192 = vmatpush1.bf16.msra.mxu0 %v306
  %1193 = vmatprep.subr.bf16.mxu0 0
  %1194 = vmatpush1.bf16.msra.mxu0 %v307
  %1195 = vmatprep.subr.bf16.mxu0 0
  %1196 = vmatpush1.bf16.msra.mxu0 %v308
  %1197 = vmatprep.subr.bf16.mxu0 0
  %1198 = vmatpush1.bf16.msra.mxu0 %v309
  %1199 = vmatprep.subr.bf16.mxu0 0
  %1200 = vmatpush1.bf16.msra.mxu0 %v310
  %1201 = vmatprep.subr.bf16.mxu0 0
  %1202 = vmatpush1.bf16.msra.mxu0 %v311
  %1203 = vmatprep.subr.bf16.mxu0 0
  %1204 = vmatpush1.bf16.msra.mxu0 %v312
  %1205 = vmatprep.subr.bf16.mxu0 0
  %1206 = vmatpush1.bf16.msra.mxu0 %v313
  %1207 = vmatprep.subr.bf16.mxu0 0
  %1208 = vmatpush1.bf16.msra.mxu0 %v314
  %1209 = vmatprep.subr.bf16.mxu0 0
  %1210 = vmatpush1.bf16.msra.mxu0 0
  %1211 = vmatprep.subr.bf16.mxu0 0
  %1212 = vmatpush1.bf16.msra.mxu0 0
  %1213 = vmatprep.subr.bf16.mxu0 0
  %1214 = vmatpush1.bf16.msra.mxu0 0
  %1215 = vmatprep.subr.bf16.mxu0 0
  %1216 = vmatpush1.bf16.msra.mxu0 0
  %1217 = vmatprep.subr.bf16.mxu0 0
  %1218 = vmatpush1.bf16.msra.mxu0 0
  %1219 = vmatprep.subr.bf16.mxu0 0
  %1220 = vmatpush1.bf16.msra.mxu0 0
  %1221 = vmatprep.mubr.bf16.mxu0 %v1187
  %1222 = vmatmul.mubr.bf16.gmra.mrb[0].mxu0 %v1184
  %v1223 = vpop.f32.mrb[0].mxu0
  %v1224 = vadd.f32 %v1170, %v1223
  %v1225 = vpop.f32.mrb[0].mxu0
  %v1226 = vpop.f32.mrb[0].mxu0
  %v1227 = vpop.f32.mrb[0].mxu0
  %1228 = vdwg.mxu0
  %v1229 = vtanh.pop %v1224
  %v1230 = vmul.f32 %v1229, %v373
  %v1231 = vsel %vm139, %v1230, 0.0
  %1232 = vadd.xlane.f32.xlu0 %v1231
  %v1233 = vpop.xlane.xlu0 %1232
  %v1234 = vadd.f32 %v1233, %v383
  %v1235 = vxor.u32 %v1234, 2147483648
  %v1236 = vmul.f32 %v1235, 1.442695
  %v1237 = vpow.pop %v1236
  %v1238 = vadd.f32 %v1237, 1.0
  %v1239 = vrcp.pop %v1238
  %v1240 = vmul.f32 1.0, %v1239
  %1242 = vset.pattern.permute.xlu0 0
  %1243 = vperm.xlu0 %1242, %v1240
  %v1244 = vpop.permute.xlu0 %1243
  %v1246 = vmul.f32 %v1244, %v540
  %v1247 = vsub.f32 1.0, %v1240
  %1249 = vset.pattern.permute.xlu0 0
  %1250 = vperm.xlu0 %1249, %v1247
  %v1251 = vpop.permute.xlu0 %1250
  %v1253 = vmul.f32 %v1251, 0.0
  %v1254 = vadd.f32 %v1246, %v1253
  %v1255 = vmul.f32 %v556, %v1173
  %v1256 = vsub.f32 %v556, %v1173
  %v1257 = vand.u32 2147483647, %v1256
  %1259 = vrot.lane.b32.xlu0 %v1255, 64
  %v1260 = vpop.permute.xlu0 %1259
  %v1262 = vsel %vm259, %v571, %v1260
  %v1263 = vsel %vm261, %v1262, %v569
  %v1264 = vpack.c.bf16 %v1263, %v1263
  %v1265 = vpack.c.bf16 %v1257, %v1257
  %v1267 = vsel %vm139, %v1265, 0
  %1269 = vmatprep.subr.bf16.mxu0 0
  %1270 = vmatpush1.bf16.msra.mxu0 %v305
  %1271 = vmatprep.subr.bf16.mxu0 0
  %1272 = vmatpush1.bf16.msra.mxu0 %v306
  %1273 = vmatprep.subr.bf16.mxu0 0
  %1274 = vmatpush1.bf16.msra.mxu0 %v307
  %1275 = vmatprep.subr.bf16.mxu0 0
  %1276 = vmatpush1.bf16.msra.mxu0 %v308
  %1277 = vmatprep.subr.bf16.mxu0 0
  %1278 = vmatpush1.bf16.msra.mxu0 %v309
  %1279 = vmatprep.subr.bf16.mxu0 0
  %1280 = vmatpush1.bf16.msra.mxu0 %v310
  %1281 = vmatprep.subr.bf16.mxu0 0
  %1282 = vmatpush1.bf16.msra.mxu0 %v311
  %1283 = vmatprep.subr.bf16.mxu0 0
  %1284 = vmatpush1.bf16.msra.mxu0 %v312
  %1285 = vmatprep.subr.bf16.mxu0 0
  %1286 = vmatpush1.bf16.msra.mxu0 %v313
  %1287 = vmatprep.subr.bf16.mxu0 0
  %1288 = vmatpush1.bf16.msra.mxu0 %v314
  %1289 = vmatprep.subr.bf16.mxu0 0
  %1290 = vmatpush1.bf16.msra.mxu0 0
  %1291 = vmatprep.subr.bf16.mxu0 0
  %1292 = vmatpush1.bf16.msra.mxu0 0
  %1293 = vmatprep.subr.bf16.mxu0 0
  %1294 = vmatpush1.bf16.msra.mxu0 0
  %1295 = vmatprep.subr.bf16.mxu0 0
  %1296 = vmatpush1.bf16.msra.mxu0 0
  %1297 = vmatprep.subr.bf16.mxu0 0
  %1298 = vmatpush1.bf16.msra.mxu0 0
  %1299 = vmatprep.subr.bf16.mxu0 0
  %1300 = vmatpush1.bf16.msra.mxu0 0
  %1301 = vmatprep.mubr.bf16.mxu0 %v1267
  %1302 = vmatmul.mubr.bf16.gmra.mrb[0].mxu0 %v1264
  %v1303 = vpop.f32.mrb[0].mxu0
  %v1304 = vadd.f32 %v1170, %v1303
  %v1305 = vpop.f32.mrb[0].mxu0
  %v1306 = vpop.f32.mrb[0].mxu0
  %v1307 = vpop.f32.mrb[0].mxu0
  %1308 = vdwg.mxu0
  %v1309 = vtanh.pop %v1304
  %v1310 = vmul.f32 %v1309, %v373
  %v1311 = vsel %vm139, %v1310, 0.0
  %1312 = vadd.xlane.f32.xlu0 %v1311
  %v1313 = vpop.xlane.xlu0 %1312
  %v1314 = vadd.f32 %v1313, %v383
  %v1315 = vxor.u32 %v1314, 2147483648
  %v1316 = vmul.f32 %v1315, 1.442695
  %v1317 = vpow.pop %v1316
  %v1318 = vadd.f32 %v1317, 1.0
  %v1319 = vrcp.pop %v1318
  %v1320 = vmul.f32 1.0, %v1319
  %v1321 = vpack.c.bf16 %v1254, %v1254
  %1323 = vrot.lane.b32.xlu0 %v1321, 96
  %v1324 = vpop.permute.xlu0 %1323
  %v1326 = vsel %vm139, %v1324, 0
  %1328 = vmatprep.subr.bf16.mxu0 0
  %1329 = vmatpush1.bf16.msra.mxu0 %v468
  %1330 = vmatprep.subr.bf16.mxu0 0
  %1331 = vmatpush1.bf16.msra.mxu0 %v469
  %1332 = vmatprep.subr.bf16.mxu0 0
  %1333 = vmatpush1.bf16.msra.mxu0 0
  %1334 = vmatprep.subr.bf16.mxu0 0
  %1335 = vmatpush1.bf16.msra.mxu0 0
  %1336 = vmatprep.subr.bf16.mxu0 0
  %1337 = vmatpush1.bf16.msra.mxu0 0
  %1338 = vmatprep.subr.bf16.mxu0 0
  %1339 = vmatpush1.bf16.msra.mxu0 0
  %1340 = vmatprep.subr.bf16.mxu0 0
  %1341 = vmatpush1.bf16.msra.mxu0 0
  %1342 = vmatprep.subr.bf16.mxu0 0
  %1343 = vmatpush1.bf16.msra.mxu0 0
  %1344 = vmatprep.subr.bf16.mxu0 0
  %1345 = vmatpush1.bf16.msra.mxu0 0
  %1346 = vmatprep.subr.bf16.mxu0 0
  %1347 = vmatpush1.bf16.msra.mxu0 0
  %1348 = vmatprep.subr.bf16.mxu0 0
  %1349 = vmatpush1.bf16.msra.mxu0 0
  %1350 = vmatprep.subr.bf16.mxu0 0
  %1351 = vmatpush1.bf16.msra.mxu0 0
  %1352 = vmatprep.subr.bf16.mxu0 0
  %1353 = vmatpush1.bf16.msra.mxu0 0
  %1354 = vmatprep.subr.bf16.mxu0 0
  %1355 = vmatpush1.bf16.msra.mxu0 0
  %1356 = vmatprep.subr.bf16.mxu0 0
  %1357 = vmatpush1.bf16.msra.mxu0 0
  %1358 = vmatprep.subr.bf16.mxu0 0
  %1359 = vmatpush1.bf16.msra.mxu0 0
  %1360 = vmatprep.mubr.bf16.mxu0 0
  %1361 = vmatmul.mubr.bf16.gmra.mrb[0].mxu0 %v1326
  %v1362 = vpop.f32.mrb[0].mxu0
  %v1363 = vadd.f32 %v458, %v1362
  %v1364 = vpop.f32.mrb[0].mxu0
  %v1365 = vpop.f32.mrb[0].mxu0
  %v1366 = vpop.f32.mrb[0].mxu0
  %1367 = vdwg.mxu0
  %v1368 = vadd.f32 %v670, %v1363
  %v1369 = vxor.u32 %v1368, 2147483648
  %v1370 = vmul.f32 %v1369, 1.442695
  %v1371 = vpow.pop %v1370
  %v1372 = vadd.f32 %v1371, 1.0
  %v1373 = vrcp.pop %v1372
  %v1374 = vmul.f32 1.0, %v1373
  %1376 = vrot.lane.b32.xlu0 %v1363, 64
  %v1377 = vpop.permute.xlu0 %1376
  %v1379 = vmul.f32 %v1374, %v1377
  %1381 = vrot.lane.b32.xlu0 %v1379, 64
  %v1382 = vpop.permute.xlu0 %1381
  %v1384 = vadd.f32 %v670, %v1382
  %v1385 = vtanh.pop %v1384
  %v1386 = vsub.f32 1.0, %v1374
  %1388 = vrot.lane.b32.xlu0 %v1385, 96
  %v1389 = vpop.permute.xlu0 %1388
  %v1391 = vmul.f32 %v1386, %v1389
  %v1392 = vmul.f32 %v1374, %v1254
  %v1393 = vadd.f32 %v1391, %v1392
  %1395 = vset.pattern.permute.xlu0 0
  %1396 = vperm.xlu0 %1395, %v1320
  %v1397 = vpop.permute.xlu0 %1396
  %v1399 = vmul.f32 %v1397, %v1393
  %v1400 = vsub.f32 1.0, %v1320
  %1402 = vset.pattern.permute.xlu0 0
  %1403 = vperm.xlu0 %1402, %v1400
  %v1404 = vpop.permute.xlu0 %1403
  %v1406 = vmul.f32 %v1404, %v1254
  %v1407 = vadd.f32 %v1399, %v1406
  %v1408 = vmul.f32 %v763, %v1173
  %v1409 = vsub.f32 %v763, %v1173
  %v1410 = vand.u32 2147483647, %v1409
  %1412 = vrot.lane.b32.xlu0 %v1408, 64
  %v1413 = vpop.permute.xlu0 %1412
  %v1415 = vsel %vm259, %v778, %v1413
  %v1416 = vsel %vm261, %v1415, %v776
  %v1417 = vpack.c.bf16 %v1416, %v1416
  %v1418 = vpack.c.bf16 %v1410, %v1410
  %v1420 = vsel %vm139, %v1418, 0
  %1422 = vmatprep.subr.bf16.mxu0 0
  %1423 = vmatpush1.bf16.msra.mxu0 %v305
  %1424 = vmatprep.subr.bf16.mxu0 0
  %1425 = vmatpush1.bf16.msra.mxu0 %v306
  %1426 = vmatprep.subr.bf16.mxu0 0
  %1427 = vmatpush1.bf16.msra.mxu0 %v307
  %1428 = vmatprep.subr.bf16.mxu0 0
  %1429 = vmatpush1.bf16.msra.mxu0 %v308
  %1430 = vmatprep.subr.bf16.mxu0 0
  %1431 = vmatpush1.bf16.msra.mxu0 %v309
  %1432 = vmatprep.subr.bf16.mxu0 0
  %1433 = vmatpush1.bf16.msra.mxu0 %v310
  %1434 = vmatprep.subr.bf16.mxu0 0
  %1435 = vmatpush1.bf16.msra.mxu0 %v311
  %1436 = vmatprep.subr.bf16.mxu0 0
  %1437 = vmatpush1.bf16.msra.mxu0 %v312
  %1438 = vmatprep.subr.bf16.mxu0 0
  %1439 = vmatpush1.bf16.msra.mxu0 %v313
  %1440 = vmatprep.subr.bf16.mxu0 0
  %1441 = vmatpush1.bf16.msra.mxu0 %v314
  %1442 = vmatprep.subr.bf16.mxu0 0
  %1443 = vmatpush1.bf16.msra.mxu0 0
  %1444 = vmatprep.subr.bf16.mxu0 0
  %1445 = vmatpush1.bf16.msra.mxu0 0
  %1446 = vmatprep.subr.bf16.mxu0 0
  %1447 = vmatpush1.bf16.msra.mxu0 0
  %1448 = vmatprep.subr.bf16.mxu0 0
  %1449 = vmatpush1.bf16.msra.mxu0 0
  %1450 = vmatprep.subr.bf16.mxu0 0
  %1451 = vmatpush1.bf16.msra.mxu0 0
  %1452 = vmatprep.subr.bf16.mxu0 0
  %1453 = vmatpush1.bf16.msra.mxu0 0
  %1454 = vmatprep.mubr.bf16.mxu0 %v1420
  %1455 = vmatmul.mubr.bf16.gmra.mrb[0].mxu0 %v1417
  %v1456 = vpop.f32.mrb[0].mxu0
  %v1457 = vadd.f32 %v1170, %v1456
  %v1458 = vpop.f32.mrb[0].mxu0
  %v1459 = vpop.f32.mrb[0].mxu0
  %v1460 = vpop.f32.mrb[0].mxu0
  %1461 = vdwg.mxu0
  %v1462 = vtanh.pop %v1457
  %v1463 = vmul.f32 %v1462, %v373
  %v1464 = vsel %vm139, %v1463, 0.0
  %1465 = vadd.xlane.f32.xlu0 %v1464
  %v1466 = vpop.xlane.xlu0 %1465
  %v1467 = vadd.f32 %v1466, %v383
  %v1468 = vxor.u32 %v1467, 2147483648
  %v1469 = vmul.f32 %v1468, 1.442695
  %v1470 = vpow.pop %v1469
  %v1471 = vadd.f32 %v1470, 1.0
  %v1472 = vrcp.pop %v1471
  %v1473 = vmul.f32 1.0, %v1472
  %v1474 = vpack.c.bf16 %v1407, %v1407
  %1476 = vrot.lane.b32.xlu0 %v1474, 96
  %v1477 = vpop.permute.xlu0 %1476
  %v1479 = vsel %vm139, %v1477, 0
  %1481 = vmatprep.subr.bf16.mxu0 0
  %1482 = vmatpush1.bf16.msra.mxu0 %v468
  %1483 = vmatprep.subr.bf16.mxu0 0
  %1484 = vmatpush1.bf16.msra.mxu0 %v469
  %1485 = vmatprep.subr.bf16.mxu0 0
  %1486 = vmatpush1.bf16.msra.mxu0 0
  %1487 = vmatprep.subr.bf16.mxu0 0
  %1488 = vmatpush1.bf16.msra.mxu0 0
  %1489 = vmatprep.subr.bf16.mxu0 0
  %1490 = vmatpush1.bf16.msra.mxu0 0
  %1491 = vmatprep.subr.bf16.mxu0 0
  %1492 = vmatpush1.bf16.msra.mxu0 0
  %1493 = vmatprep.subr.bf16.mxu0 0
  %1494 = vmatpush1.bf16.msra.mxu0 0
  %1495 = vmatprep.subr.bf16.mxu0 0
  %1496 = vmatpush1.bf16.msra.mxu0 0
  %1497 = vmatprep.subr.bf16.mxu0 0
  %1498 = vmatpush1.bf16.msra.mxu0 0
  %1499 = vmatprep.subr.bf16.mxu0 0
  %1500 = vmatpush1.bf16.msra.mxu0 0
  %1501 = vmatprep.subr.bf16.mxu0 0
  %1502 = vmatpush1.bf16.msra.mxu0 0
  %1503 = vmatprep.subr.bf16.mxu0 0
  %1504 = vmatpush1.bf16.msra.mxu0 0
  %1505 = vmatprep.subr.bf16.mxu0 0
  %1506 = vmatpush1.bf16.msra.mxu0 0
  %1507 = vmatprep.subr.bf16.mxu0 0
  %1508 = vmatpush1.bf16.msra.mxu0 0
  %1509 = vmatprep.subr.bf16.mxu0 0
  %1510 = vmatpush1.bf16.msra.mxu0 0
  %1511 = vmatprep.subr.bf16.mxu0 0
  %1512 = vmatpush1.bf16.msra.mxu0 0
  %1513 = vmatprep.mubr.bf16.mxu0 0
  %1514 = vmatmul.mubr.bf16.gmra.mrb[0].mxu0 %v1479
  %v1515 = vpop.f32.mrb[0].mxu0
  %v1516 = vadd.f32 %v458, %v1515
  %v1517 = vpop.f32.mrb[0].mxu0
  %v1518 = vpop.f32.mrb[0].mxu0
  %v1519 = vpop.f32.mrb[0].mxu0
  %1520 = vdwg.mxu0
  %v1521 = vadd.f32 %v877, %v1516
  %v1522 = vxor.u32 %v1521, 2147483648
  %v1523 = vmul.f32 %v1522, 1.442695
  %v1524 = vpow.pop %v1523
  %v1525 = vadd.f32 %v1524, 1.0
  %v1526 = vrcp.pop %v1525
  %v1527 = vmul.f32 1.0, %v1526
  %1529 = vrot.lane.b32.xlu0 %v1516, 64
  %v1530 = vpop.permute.xlu0 %1529
  %v1532 = vmul.f32 %v1527, %v1530
  %1534 = vrot.lane.b32.xlu0 %v1532, 64
  %v1535 = vpop.permute.xlu0 %1534
  %v1537 = vadd.f32 %v877, %v1535
  %v1538 = vtanh.pop %v1537
  %v1539 = vsub.f32 1.0, %v1527
  %1541 = vrot.lane.b32.xlu0 %v1538, 96
  %v1542 = vpop.permute.xlu0 %1541
  %v1544 = vmul.f32 %v1539, %v1542
  %v1545 = vmul.f32 %v1527, %v1407
  %v1546 = vadd.f32 %v1544, %v1545
  %1548 = vset.pattern.permute.xlu0 0
  %1549 = vperm.xlu0 %1548, %v1473
  %v1550 = vpop.permute.xlu0 %1549
  %v1552 = vmul.f32 %v1550, %v1546
  %v1553 = vsub.f32 1.0, %v1473
  %1555 = vset.pattern.permute.xlu0 0
  %1556 = vperm.xlu0 %1555, %v1553
  %v1557 = vpop.permute.xlu0 %1556
  %v1559 = vmul.f32 %v1557, %v1407
  %v1560 = vadd.f32 %v1552, %v1559
  %v1561 = vpack.c.bf16 %v1560, %v1560
  %1563 = vrot.lane.b32.xlu0 %v1561, 96
  %v1564 = vpop.permute.xlu0 %1563
  %v1566 = vsel %vm139, %v1564, 0
  %1568 = vmatprep.subr.bf16.mxu0 0
  %1569 = vmatpush1.bf16.msra.mxu0 %v987
  %1570 = vmatprep.subr.bf16.mxu0 0
  %1571 = vmatpush1.bf16.msra.mxu0 %v988
  %1572 = vmatprep.subr.bf16.mxu0 0
  %1573 = vmatpush1.bf16.msra.mxu0 0
  %1574 = vmatprep.subr.bf16.mxu0 0
  %1575 = vmatpush1.bf16.msra.mxu0 0
  %1576 = vmatprep.subr.bf16.mxu0 0
  %1577 = vmatpush1.bf16.msra.mxu0 0
  %1578 = vmatprep.subr.bf16.mxu0 0
  %1579 = vmatpush1.bf16.msra.mxu0 0
  %1580 = vmatprep.subr.bf16.mxu0 0
  %1581 = vmatpush1.bf16.msra.mxu0 0
  %1582 = vmatprep.subr.bf16.mxu0 0
  %1583 = vmatpush1.bf16.msra.mxu0 0
  %1584 = vmatprep.subr.bf16.mxu0 0
  %1585 = vmatpush1.bf16.msra.mxu0 0
  %1586 = vmatprep.subr.bf16.mxu0 0
  %1587 = vmatpush1.bf16.msra.mxu0 0
  %1588 = vmatprep.subr.bf16.mxu0 0
  %1589 = vmatpush1.bf16.msra.mxu0 0
  %1590 = vmatprep.subr.bf16.mxu0 0
  %1591 = vmatpush1.bf16.msra.mxu0 0
  %1592 = vmatprep.subr.bf16.mxu0 0
  %1593 = vmatpush1.bf16.msra.mxu0 0
  %1594 = vmatprep.subr.bf16.mxu0 0
  %1595 = vmatpush1.bf16.msra.mxu0 0
  %1596 = vmatprep.subr.bf16.mxu0 0
  %1597 = vmatpush1.bf16.msra.mxu0 0
  %1598 = vmatprep.subr.bf16.mxu0 0
  %1599 = vmatpush1.bf16.msra.mxu0 0
  %1600 = vmatprep.mubr.bf16.mxu0 0
  %1601 = vmatmul.mubr.bf16.gmra.mrb[0].mxu0 %v1566
  %v1602 = vpop.f32.mrb[0].mxu0
  %v1603 = vadd.f32 %v974, %v1602
  %v1604 = vpop.f32.mrb[0].mxu0
  %v1605 = vpop.f32.mrb[0].mxu0
  %v1606 = vpop.f32.mrb[0].mxu0
  %1607 = vdwg.mxu0
  %1608 = vmatprep.subr.bf16.mxu0 0
  %1609 = vmatpush1.bf16.msra.mxu0 %v1048
  %1610 = vmatprep.subr.bf16.mxu0 0
  %1611 = vmatpush1.bf16.msra.mxu0 %v1049
  %1612 = vmatprep.subr.bf16.mxu0 0
  %1613 = vmatpush1.bf16.msra.mxu0 0
  %1614 = vmatprep.subr.bf16.mxu0 0
  %1615 = vmatpush1.bf16.msra.mxu0 0
  %1616 = vmatprep.subr.bf16.mxu0 0
  %1617 = vmatpush1.bf16.msra.mxu0 0
  %1618 = vmatprep.subr.bf16.mxu0 0
  %1619 = vmatpush1.bf16.msra.mxu0 0
  %1620 = vmatprep.subr.bf16.mxu0 0
  %1621 = vmatpush1.bf16.msra.mxu0 0
  %1622 = vmatprep.subr.bf16.mxu0 0
  %1623 = vmatpush1.bf16.msra.mxu0 0
  %1624 = vmatprep.subr.bf16.mxu0 0
  %1625 = vmatpush1.bf16.msra.mxu0 0
  %1626 = vmatprep.subr.bf16.mxu0 0
  %1627 = vmatpush1.bf16.msra.mxu0 0
  %1628 = vmatprep.subr.bf16.mxu0 0
  %1629 = vmatpush1.bf16.msra.mxu0 0
  %1630 = vmatprep.subr.bf16.mxu0 0
  %1631 = vmatpush1.bf16.msra.mxu0 0
  %1632 = vmatprep.subr.bf16.mxu0 0
  %1633 = vmatpush1.bf16.msra.mxu0 0
  %1634 = vmatprep.subr.bf16.mxu0 0
  %1635 = vmatpush1.bf16.msra.mxu0 0
  %1636 = vmatprep.subr.bf16.mxu0 0
  %1637 = vmatpush1.bf16.msra.mxu0 0
  %1638 = vmatprep.subr.bf16.mxu0 0
  %1639 = vmatpush1.bf16.msra.mxu0 0
  %1640 = vmatprep.mubr.bf16.mxu0 0
  %1641 = vmatmul.mubr.bf16.gmra.mrb[0].mxu0 %v1127
  %v1642 = vpop.f32.mrb[0].mxu0
  %v1643 = vadd.f32 %v1038, %v1642
  %v1644 = vpop.f32.mrb[0].mxu0
  %v1645 = vpop.f32.mrb[0].mxu0
  %v1646 = vpop.f32.mrb[0].mxu0
  %1647 = vdwg.mxu0
  %v1648 = vadd.f32 %v1603, %v1643
  %v1649 = vxor.u32 %v1648, 2147483648
  %v1650 = vmul.f32 %v1649, 1.442695
  %v1651 = vpow.pop %v1650
  %v1652 = vadd.f32 %v1651, 1.0
  %v1653 = vrcp.pop %v1652
  %v1654 = vmul.f32 1.0, %v1653
  %1656 = vrot.lane.b32.xlu0 %v1643, 64
  %v1657 = vpop.permute.xlu0 %1656
  %v1659 = vmul.f32 %v1654, %v1657
  %1661 = vrot.lane.b32.xlu0 %v1659, 64
  %v1662 = vpop.permute.xlu0 %1661
  %v1664 = vadd.f32 %v1603, %v1662
  %v1665 = vtanh.pop %v1664
  %v1666 = vsub.f32 1.0, %v1654
  %1668 = vrot.lane.b32.xlu0 %v1665, 96
  %v1669 = vpop.permute.xlu0 %1668
  %v1671 = vmul.f32 %v1666, %v1669
  %v1672 = vmul.f32 %v1654, %v1121
  %v1673 = vadd.f32 %v1671, %v1672
  %v1674 = vld [vmem:[%s2] sm:$0xff]
  %v1675 = vld [vmem:[%s3] sm:$0xff]
  %1677 = vrot.lane.b32.xlu0 %v1673, 96
  %v1678 = vpop.permute.xlu0 %1677
  %1681 = vrot.lane.b32.xlu0 %v1674, 32
  %v1682 = vpop.permute.xlu0 %1681
  %1685 = vrot.lane.b32.xlu0 %v1675, 64
  %v1686 = vpop.permute.xlu0 %1685
  %v1688 = vsel %vm139, %v1678, %v1682
  %v1689 = vsel %vm259, %v1688, %v1686
  %v1690 = vpack.c.bf16 %v1689, %v1689
  %v1691 = vld [vmem:[%s18] sm:$0xf]
  %v1692 = vld [vmem:[%s18 + $0x4] sm:$0xf]
  %v1693 = vld [vmem:[%s18 + $0x8] sm:$0xf]
  %v1694 = vld [vmem:[%s18 + $0xc] sm:$0xf]
  %v1695 = vld [vmem:[%s18 + $0x10] sm:$0xf]
  %v1696 = vld [vmem:[%s18 + $0x14] sm:$0xf]
  %v1697 = vld [vmem:[%s18 + $0x18] sm:$0xf]
  %v1698 = vld [vmem:[%s18 + $0x1c] sm:$0xf]
  %v1699 = vld [vmem:[%s18 + $0x20] sm:$0xf]
  %v1700 = vld [vmem:[%s18 + $0x24] sm:$0xf]
  %v1701 = vld [vmem:[%s18 + $0x28] sm:$0xf]
  %v1702 = vld [vmem:[%s18 + $0x2c] sm:$0xf]
  %v1703 = vld [vmem:[%s19] sm:$0x1]
  %v1705 = vlaneseq
  %v1706 = vshrl.u32 %v1705, 7
  %v1707 = vsub.s32 0, %v1706
  %v1708 = vrot.slane %v1703, %v1707
  %v1722 = vunpack.c.l.b16 %v1691
  %v1723 = vunpack.c.l.b16 %v1692
  %v1724 = vunpack.c.l.b16 %v1693
  %v1725 = vunpack.c.l.b16 %v1694
  %v1726 = vunpack.c.l.b16 %v1695
  %v1727 = vunpack.c.l.b16 %v1696
  %v1728 = vunpack.c.l.b16 %v1697
  %v1729 = vunpack.c.l.b16 %v1698
  %v1730 = vunpack.c.l.b16 %v1699
  %v1731 = vunpack.c.l.b16 %v1700
  %v1732 = vunpack.c.l.b16 %v1701
  %v1733 = vunpack.c.l.b16 %v1702
  %v1734 = vpack.c.b16 %v1723, %v1722
  %v1735 = vpack.c.b16 %v1725, %v1724
  %v1736 = vpack.c.b16 %v1727, %v1726
  %v1737 = vpack.c.b16 %v1729, %v1728
  %v1738 = vpack.c.b16 %v1731, %v1730
  %v1739 = vpack.c.b16 %v1733, %v1732
  %v1747 = vsel %vm261, %v1690, 0
  %1749 = vmatprep.subr.bf16.mxu0 0
  %1750 = vmatpush1.bf16.msra.mxu0 %v1734
  %1751 = vmatprep.subr.bf16.mxu0 0
  %1752 = vmatpush1.bf16.msra.mxu0 %v1735
  %1753 = vmatprep.subr.bf16.mxu0 0
  %1754 = vmatpush1.bf16.msra.mxu0 %v1736
  %1755 = vmatprep.subr.bf16.mxu0 0
  %1756 = vmatpush1.bf16.msra.mxu0 %v1737
  %1757 = vmatprep.subr.bf16.mxu0 0
  %1758 = vmatpush1.bf16.msra.mxu0 %v1738
  %1759 = vmatprep.subr.bf16.mxu0 0
  %1760 = vmatpush1.bf16.msra.mxu0 %v1739
  %1761 = vmatprep.subr.bf16.mxu0 0
  %1762 = vmatpush1.bf16.msra.mxu0 0
  %1763 = vmatprep.subr.bf16.mxu0 0
  %1764 = vmatpush1.bf16.msra.mxu0 0
  %1765 = vmatprep.subr.bf16.mxu0 0
  %1766 = vmatpush1.bf16.msra.mxu0 0
  %1767 = vmatprep.subr.bf16.mxu0 0
  %1768 = vmatpush1.bf16.msra.mxu0 0
  %1769 = vmatprep.subr.bf16.mxu0 0
  %1770 = vmatpush1.bf16.msra.mxu0 0
  %1771 = vmatprep.subr.bf16.mxu0 0
  %1772 = vmatpush1.bf16.msra.mxu0 0
  %1773 = vmatprep.subr.bf16.mxu0 0
  %1774 = vmatpush1.bf16.msra.mxu0 0
  %1775 = vmatprep.subr.bf16.mxu0 0
  %1776 = vmatpush1.bf16.msra.mxu0 0
  %1777 = vmatprep.subr.bf16.mxu0 0
  %1778 = vmatpush1.bf16.msra.mxu0 0
  %1779 = vmatprep.subr.bf16.mxu0 0
  %1780 = vmatpush1.bf16.msra.mxu0 0
  %1781 = vmatprep.mubr.bf16.mxu0 0
  %1782 = vmatmul.mubr.bf16.gmra.mrb[0].mxu0 %v1747
  %v1783 = vpop.f32.mrb[0].mxu0
  %v1784 = vadd.f32 %v1708, %v1783
  %v1785 = vpop.f32.mrb[0].mxu0
  %v1786 = vpop.f32.mrb[0].mxu0
  %v1787 = vpop.f32.mrb[0].mxu0
  %1788 = vdwg.mxu0
  %v1789 = vtanh.pop %v1784
  %v1790 = vpack.c.bf16 %v1789, %v1789
  %v1791 = vld [vmem:[%s20] sm:$0xf]
  %v1792 = vld [vmem:[%s20 + $0x4] sm:$0xf]
  %v1793 = vld [vmem:[%s20 + $0x8] sm:$0xf]
  %v1794 = vld [vmem:[%s20 + $0xc] sm:$0xf]
  %v1795 = vld [vmem:[%s21] sm:$0x1]
  %v1797 = vlaneseq
  %v1798 = vshrl.u32 %v1797, 7
  %v1799 = vsub.s32 0, %v1798
  %v1800 = vrot.slane %v1795, %v1799
  %v1806 = vunpack.c.l.b16 %v1791
  %v1807 = vunpack.c.l.b16 %v1792
  %v1808 = vunpack.c.l.b16 %v1793
  %v1809 = vunpack.c.l.b16 %v1794
  %v1810 = vpack.c.b16 %v1807, %v1806
  %v1811 = vpack.c.b16 %v1809, %v1808
  %v1815 = vsel %vm139, %v1790, 0
  %1817 = vmatprep.subr.bf16.mxu0 0
  %1818 = vmatpush1.bf16.msra.mxu0 %v1810
  %1819 = vmatprep.subr.bf16.mxu0 0
  %1820 = vmatpush1.bf16.msra.mxu0 %v1811
  %1821 = vmatprep.subr.bf16.mxu0 0
  %1822 = vmatpush1.bf16.msra.mxu0 0
  %1823 = vmatprep.subr.bf16.mxu0 0
  %1824 = vmatpush1.bf16.msra.mxu0 0
  %1825 = vmatprep.subr.bf16.mxu0 0
  %1826 = vmatpush1.bf16.msra.mxu0 0
  %1827 = vmatprep.subr.bf16.mxu0 0
  %1828 = vmatpush1.bf16.msra.mxu0 0
  %1829 = vmatprep.subr.bf16.mxu0 0
  %1830 = vmatpush1.bf16.msra.mxu0 0
  %1831 = vmatprep.subr.bf16.mxu0 0
  %1832 = vmatpush1.bf16.msra.mxu0 0
  %1833 = vmatprep.subr.bf16.mxu0 0
  %1834 = vmatpush1.bf16.msra.mxu0 0
  %1835 = vmatprep.subr.bf16.mxu0 0
  %1836 = vmatpush1.bf16.msra.mxu0 0
  %1837 = vmatprep.subr.bf16.mxu0 0
  %1838 = vmatpush1.bf16.msra.mxu0 0
  %1839 = vmatprep.subr.bf16.mxu0 0
  %1840 = vmatpush1.bf16.msra.mxu0 0
  %1841 = vmatprep.subr.bf16.mxu0 0
  %1842 = vmatpush1.bf16.msra.mxu0 0
  %1843 = vmatprep.subr.bf16.mxu0 0
  %1844 = vmatpush1.bf16.msra.mxu0 0
  %1845 = vmatprep.subr.bf16.mxu0 0
  %1846 = vmatpush1.bf16.msra.mxu0 0
  %1847 = vmatprep.subr.bf16.mxu0 0
  %1848 = vmatpush1.bf16.msra.mxu0 0
  %1849 = vmatprep.mubr.bf16.mxu0 0
  %1850 = vmatmul.mubr.bf16.gmra.mrb[0].mxu0 %v1815
  %v1851 = vpop.f32.mrb[0].mxu0
  %v1852 = vadd.f32 %v1800, %v1851
  %v1853 = vpop.f32.mrb[0].mxu0
  %v1854 = vpop.f32.mrb[0].mxu0
  %v1855 = vpop.f32.mrb[0].mxu0
  %1856 = vdwg.mxu0
  %vm1857 = vcmask 15360
  %v1858 = vsel %vm1857, %v1852, -inf
  %1859 = vmax.xlane.f32.xlu0 %v1858
  %v1860 = vpop.xlane.xlu0 %1859
  %v1861 = vsub.f32 %v1852, %v1860
  %v1862 = vmul.f32 %v1861, 1.442695
  %v1863 = vpow.pop %v1862
  %v1864 = vsel %vm1857, %v1863, 0.0
  %1865 = vadd.xlane.f32.xlu0 %v1864
  %v1866 = vpop.xlane.xlu0 %1865
  %v1867 = vrcp.pop %v1866
  %v1868 = vmul.f32 %v1863, %v1867
  %1869 = vst.msk [vmem:[%s22] sm:$0xff] %vm1857, %v1868
  // Predicated region
  $region90: #{dmn_forward.7} parent=0 // pred_check
    _
  $region91: #{dmn_forward.7} parent=0 // pred_check_branch
    %1871 = sbr.rel (0) target = $region93
  $region92: #{dmn_forward.7} parent=0 // pred_region
    _
  $region93: #{dmn_forward.7} parent=0 // pred_fallthru
    _
  // Predicated region
  $region94: #{dmn_forward.7} parent=0 // pred_check
    _
  $region95: #{dmn_forward.7} parent=0 // pred_check_branch
    %1873 = sbr.rel (0) target = $region97
  $region96: #{dmn_forward.7} parent=0 // pred_region
    _
  $region97: #{dmn_forward.7} parent=0 // pred_fallthru
    _

</llo_original>
